<compile_context>
chip_gen: v7x
topology: tpu7x:2x2x1
jax: 0.10.0
libtpu: 0.0.40
codegen_flags: <defaults>
</compile_context>

<pallas_src>
import functools

import jax
import jax.numpy as jnp
from jax.experimental import pallas as pl
from jax.experimental.pallas import tpu as pltpu


# ----------------------------------------------------------------------------------
# In-kernel helpers
# ----------------------------------------------------------------------------------
def _conv3x3_im2col(x_hwc, w2d):
    """'Same' 3x3 conv of one image as a single MXU matmul.

    x_hwc : (H, W, Cin) f32 value (unpadded)
    w2d   : (9*Cin, Cout) HWIO weights flattened over (kh, kw, cin)

    Zero padding is built in-register with two concatenations (no HBM pad pass);
    the 9 shifted taps are concatenated on the channel axis into one (H*W, 9*Cin)
    operand, so the MXU sees one K=9*Cin contraction.
    """
    H, W, Cin = x_hwc.shape
    zrow = jnp.zeros((1, W, Cin), x_hwc.dtype)
    xp = jnp.concatenate([zrow, x_hwc, zrow], axis=0)          # (H+2, W,   Cin)
    zcol = jnp.zeros((H + 2, 1, Cin), x_hwc.dtype)
    xp = jnp.concatenate([zcol, xp, zcol], axis=1)             # (H+2, W+2, Cin)
    taps = [xp[kh:kh + H, kw:kw + W, :]
            for kh in range(3) for kw in range(3)]             # 9 x (H, W, Cin)
    patch = jnp.concatenate(taps, axis=-1).reshape(H * W, 9 * Cin)
    return jnp.dot(patch, w2d, preferred_element_type=jnp.float32)   # (H*W, Cout)


def _leaky_relu(x, slope):
    return jnp.where(x > 0, x, slope * x)


# ----------------------------------------------------------------------------------
# Kernels
# ----------------------------------------------------------------------------------
def _conv_stats_kernel(x_ref, w_ref, y_ref, st_ref, *, H, W):
    """conv1 (bias-free) on one image + per-image partial BN stats (sum, sumsq).

    x_ref : (1, Cin, H*W)   channel-major (NCHW-native) input block
    w_ref : (9*Cin, Cout)   matmul-form conv weights
    y_ref : (1, Cout, H*W)  raw conv output (lane-dense store)
    st_ref: (1, 2, Cout)    per-image [sum; sumsq]
    """
    cin = x_ref.shape[1]
    x_hwc = jnp.transpose(x_ref[0]).reshape(H, W, cin)         # (H, W, Cin)
    acc = _conv3x3_im2col(x_hwc, w_ref[...])                   # (H*W, Cout) f32
    y_ref[0] = jnp.transpose(acc)                              # (Cout, H*W)
    s = jnp.sum(acc, axis=0, keepdims=True)                    # (1, Cout)
    ss = jnp.sum(acc * acc, axis=0, keepdims=True)             # (1, Cout)
    st_ref[0] = jnp.concatenate([s, ss], axis=0)               # (2, Cout)


def _bn_lrelu_conv_stats_kernel(y_ref, sc_ref, sh_ref, w_ref, o_ref, st_ref,
                                *, H, W, slope):
    """Fused BN1 scale/shift + LeakyReLU on the raw conv1 block, then conv2 + stats.

    The normalized stage-1 activation never touches HBM.
    y_ref : (1, Cin, H*W) raw conv1 output, channel-major
    sc/sh : (Cin, 1)      fused BN scale / shift (column vectors)
    w_ref : (9*Cin, Cout) conv2 weights in matmul form
    """
    cin = y_ref.shape[1]
    a_cm = y_ref[0] * sc_ref[...] + sh_ref[...]                # one FMA per element
    a_cm = _leaky_relu(a_cm, slope)
    a_hwc = jnp.transpose(a_cm).reshape(H, W, cin)
    acc = _conv3x3_im2col(a_hwc, w_ref[...])                   # (H*W, Cout)
    o_ref[0] = jnp.transpose(acc)                              # (Cout, H*W)
    s = jnp.sum(acc, axis=0, keepdims=True)
    ss = jnp.sum(acc * acc, axis=0, keepdims=True)
    st_ref[0] = jnp.concatenate([s, ss], axis=0)


def _bn_lrelu_kernel(y_ref, sc_ref, sh_ref, o_ref, *, slope):
    """Fused BN2 scale/shift + LeakyReLU; output is already NCHW(-flattened)."""
    a = y_ref[0] * sc_ref[...] + sh_ref[...]
    o_ref[0] = _leaky_relu(a, slope)


# ----------------------------------------------------------------------------------
# Wrapper
# ----------------------------------------------------------------------------------
def _bn_scale_shift(partial_stats, gamma, beta, count, eps):
    """Reduce per-image (sum, sumsq) partials -> fused BN scale/shift columns."""
    s = jnp.sum(partial_stats, axis=0)                 # (2, C)
    mean = s[0] / count
    var = s[1] / count - mean * mean                   # biased variance (BN training)
    scale = gamma * jax.lax.rsqrt(var + eps)
    shift = beta - mean * scale
    return scale[:, None], shift[:, None]              # (C, 1) for channel-major kernels


def conv_block_forward(x_nchw, params, *, eps=1e-5, slope=0.01):
    """Full conv_block forward.  x_nchw: (N, C, H, W) like PyTorch."""
    N, in_c, H, W = x_nchw.shape
    out_c = params["g1"].shape[0]
    hw = H * W
    cnt = float(N * hw)

    # NCHW is already channel-major; flattening (H, W) -> H*W is a free reshape.
    x = x_nchw.reshape(N, in_c, hw)

    cp = pltpu.CompilerParams(
        dimension_semantics=("parallel",),             # images are independent per pass
        vmem_limit_bytes=32 * 1024 * 1024,
    )

    # ---- pass 1: conv1 (raw, no bias) + per-image partial BN1 stats --------------
    y1, st1 = pl.pallas_call(
        functools.partial(_conv_stats_kernel, H=H, W=W),
        grid=(N,),
        in_specs=[
            pl.BlockSpec((1, in_c, hw), lambda n: (n, 0, 0)),
            pl.BlockSpec((9 * in_c, out_c), lambda n: (0, 0)),
        ],
        out_specs=[
            pl.BlockSpec((1, out_c, hw), lambda n: (n, 0, 0)),
            pl.BlockSpec((1, 2, out_c), lambda n: (n, 0, 0)),
        ],
        out_shape=[
            jax.ShapeDtypeStruct((N, out_c, hw), jnp.float32),
            jax.ShapeDtypeStruct((N, 2, out_c), jnp.float32),
        ],
        compiler_params=cp,
    )(x, params["w1_2d"])
    sc1, sh1 = _bn_scale_shift(st1, params["g1"], params["be1"], cnt, eps)

    # ---- pass 2: BN1 + LeakyReLU fused with conv2 (raw) + partial BN2 stats ------
    y2, st2 = pl.pallas_call(
        functools.partial(_bn_lrelu_conv_stats_kernel, H=H, W=W, slope=slope),
        grid=(N,),
        in_specs=[
            pl.BlockSpec((1, out_c, hw), lambda n: (n, 0, 0)),
            pl.BlockSpec((out_c, 1), lambda n: (0, 0)),
            pl.BlockSpec((out_c, 1), lambda n: (0, 0)),
            pl.BlockSpec((9 * out_c, out_c), lambda n: (0, 0)),
        ],
        out_specs=[
            pl.BlockSpec((1, out_c, hw), lambda n: (n, 0, 0)),
            pl.BlockSpec((1, 2, out_c), lambda n: (n, 0, 0)),
        ],
        out_shape=[
            jax.ShapeDtypeStruct((N, out_c, hw), jnp.float32),
            jax.ShapeDtypeStruct((N, 2, out_c), jnp.float32),
        ],
        compiler_params=cp,
    )(y1, sc1, sh1, params["w2_2d"])
    sc2, sh2 = _bn_scale_shift(st2, params["g2"], params["be2"], cnt, eps)

    # ---- pass 3: BN2 + LeakyReLU, emitted directly in lane-dense NCHW ------------
    out = pl.pallas_call(
        functools.partial(_bn_lrelu_kernel, slope=slope),
        grid=(N,),
        in_specs=[
            pl.BlockSpec((1, out_c, hw), lambda n: (n, 0, 0)),
            pl.BlockSpec((out_c, 1), lambda n: (0, 0)),
            pl.BlockSpec((out_c, 1), lambda n: (0, 0)),
        ],
        out_specs=pl.BlockSpec((1, out_c, hw), lambda n: (n, 0, 0)),
        out_shape=jax.ShapeDtypeStruct((N, out_c, hw), jnp.float32),
        compiler_params=cp,
    )(y2, sc2, sh2)

    return out.reshape(N, out_c, H, W)


# ----------------------------------------------------------------------------------
# Parameters (mirroring the PyTorch module)
# ----------------------------------------------------------------------------------
def _to_matmul_weight(w_oihw):
    """OIHW -> HWIO -> (9*Cin, Cout); done once at init (layout hoisted from forward)."""
    cout, cin = w_oihw.shape[0], w_oihw.shape[1]
    return jnp.transpose(w_oihw, (2, 3, 1, 0)).reshape(9 * cin, cout)


def init_conv_block_params(key, in_c, out_c):
    k1, k2, k3, k4 = jax.random.split(key, 4)
    bound1 = 1.0 / jnp.sqrt(in_c * 9.0)
    bound2 = 1.0 / jnp.sqrt(out_c * 9.0)
    w1 = jax.random.uniform(k1, (out_c, in_c, 3, 3), jnp.float32, -bound1, bound1)
    b1 = jax.random.uniform(k2, (out_c,), jnp.float32, -bound1, bound1)
    w2 = jax.random.uniform(k3, (out_c, out_c, 3, 3), jnp.float32, -bound2, bound2)
    b2 = jax.random.uniform(k4, (out_c,), jnp.float32, -bound2, bound2)
    # NOTE: b1/b2 are kept for parity with the PyTorch module (and used by the
    # reference below) but are NOT used in the kernels: a per-channel constant is
    # exactly cancelled by training-mode BN mean subtraction.
    return dict(
        w1=w1, b1=b1, g1=jnp.ones((out_c,), jnp.float32), be1=jnp.zeros((out_c,), jnp.float32),
        w2=w2, b2=b2, g2=jnp.ones((out_c,), jnp.float32), be2=jnp.zeros((out_c,), jnp.float32),
        w1_2d=_to_matmul_weight(w1), w2_2d=_to_matmul_weight(w2),
    )


# ----------------------------------------------------------------------------------
# Pure-JAX reference of the PyTorch module (forward, training-mode BN)
# ----------------------------------------------------------------------------------
def _reference_forward(x, params, eps=1e-5, slope=0.01):
    def stage(x, w, b, g, be):
        y = jax.lax.conv_general_dilated(
            x, w, window_strides=(1, 1), padding=((1, 1), (1, 1)),
            dimension_numbers=("NCHW", "OIHW", "NCHW"))
        y = y + b[None, :, None, None]
        m = jnp.mean(y, axis=(0, 2, 3), keepdims=True)
        v = jnp.mean(jnp.square(y - m), axis=(0, 2, 3), keepdims=True)
        y = (y - m) * jax.lax.rsqrt(v + eps) * g[None, :, None, None] + be[None, :, None, None]
        return jnp.where(y > 0, y, slope * y)

    x = stage(x, params["w1"], params["b1"], params["g1"], params["be1"])
    return stage(x, params["w2"], params["b2"], params["g2"], params["be2"])


if __name__ == "__main__":
    key = jax.random.PRNGKey(0)
    kx, kp = jax.random.split(key)

    N, in_c, out_c, H, W = 2, 4, 8, 16, 16
    x = jax.random.normal(kx, (N, in_c, H, W), jnp.float32)   # NCHW, like PyTorch
    params = init_conv_block_params(kp, in_c, out_c)

    fwd = jax.jit(conv_block_forward)
    out = jax.block_until_ready(fwd(x, params))
    assert out.shape == (N, out_c, H, W)

    ref = _reference_forward(x, params)
    err = float(jnp.max(jnp.abs(out - ref)))
    assert err < 1e-3, f"max abs error vs reference: {err}"

    # TODO(synk): BatchNorm running_mean/running_var buffers are not updated
    # (forward output only, training-mode batch statistics).
    print("KERNEL_OK")
</pallas_src>

<mosaic_0001>
module attributes {stable_mosaic.version = 11 : i64} {
  func.func @_conv_stats_kernel(%arg0: i32, %arg1: memref<1x4x256xf32, #tpu.memory_space<vmem>>, %arg2: memref<36x8xf32, #tpu.memory_space<vmem>>, %arg3: memref<1x8x256xf32, #tpu.memory_space<vmem>>, %arg4: memref<1x2x8xf32, #tpu.memory_space<vmem>>) attributes {dimension_semantics = [#tpu.dimension_semantics<parallel>], iteration_bounds = array<i64: 2>, scalar_prefetch = 0 : i64, scratch_operands = 0 : i64, tpu.core_type = #tpu.core_type<tc>, window_params = [{transform_indices = @transform_0, window_bounds = array<i64: 1, 4, 256>}, {pipeline_mode = #tpu.pipeline_mode<synchronous>, transform_indices = @transform_1, window_bounds = array<i64: 36, 8>}, {transform_indices = @transform_2, window_bounds = array<i64: 1, 8, 256>}, {transform_indices = @transform_3, window_bounds = array<i64: 1, 2, 8>}]} {
    %c0 = arith.constant 0 : index
    %c0_0 = arith.constant 0 : index
    %c0_1 = arith.constant 0 : index
    %0 = vector.load %arg1[%c0, %c0_0, %c0_1] : memref<1x4x256xf32, #tpu.memory_space<vmem>>, vector<1x4x256xf32>
    %1 = vector.shape_cast %0 : vector<1x4x256xf32> to vector<4x256xf32>
    %2 = tpu.transpose %1, [1, 0] : vector<4x256xf32> -> vector<256x4xf32>
    %3 = vector.shape_cast %2 : vector<256x4xf32> to vector<16x16x4xf32>
    %c0_2 = arith.constant 0 : index
    %c0_3 = arith.constant 0 : index
    %4 = vector.load %arg2[%c0_2, %c0_3] : memref<36x8xf32, #tpu.memory_space<vmem>>, vector<36x8xf32>
    %cst = arith.constant 0.000000e+00 : f32
    %5 = vector.broadcast %cst : f32 to vector<1x16x4xf32>
    %6 = tpu.concatenate %5, %3, %5 in 0 : vector<1x16x4xf32>, vector<16x16x4xf32>, vector<1x16x4xf32> -> vector<18x16x4xf32>
    %cst_4 = arith.constant 0.000000e+00 : f32
    %7 = vector.broadcast %cst_4 : f32 to vector<18x1x4xf32>
    %8 = tpu.concatenate %7, %6, %7 in 1 : vector<18x1x4xf32>, vector<18x16x4xf32>, vector<18x1x4xf32> -> vector<18x18x4xf32>
    %9 = vector.extract_strided_slice %8 {offsets = [0, 0, 0], sizes = [16, 16, 4], strides = [1, 1, 1]} : vector<18x18x4xf32> to vector<16x16x4xf32>
    %10 = vector.extract_strided_slice %8 {offsets = [0, 1, 0], sizes = [16, 16, 4], strides = [1, 1, 1]} : vector<18x18x4xf32> to vector<16x16x4xf32>
    %11 = vector.extract_strided_slice %8 {offsets = [0, 2, 0], sizes = [16, 16, 4], strides = [1, 1, 1]} : vector<18x18x4xf32> to vector<16x16x4xf32>
    %12 = vector.extract_strided_slice %8 {offsets = [1, 0, 0], sizes = [16, 16, 4], strides = [1, 1, 1]} : vector<18x18x4xf32> to vector<16x16x4xf32>
    %13 = vector.extract_strided_slice %8 {offsets = [1, 1, 0], sizes = [16, 16, 4], strides = [1, 1, 1]} : vector<18x18x4xf32> to vector<16x16x4xf32>
    %14 = vector.extract_strided_slice %8 {offsets = [1, 2, 0], sizes = [16, 16, 4], strides = [1, 1, 1]} : vector<18x18x4xf32> to vector<16x16x4xf32>
    %15 = vector.extract_strided_slice %8 {offsets = [2, 0, 0], sizes = [16, 16, 4], strides = [1, 1, 1]} : vector<18x18x4xf32> to vector<16x16x4xf32>
    %16 = vector.extract_strided_slice %8 {offsets = [2, 1, 0], sizes = [16, 16, 4], strides = [1, 1, 1]} : vector<18x18x4xf32> to vector<16x16x4xf32>
    %17 = vector.extract_strided_slice %8 {offsets = [2, 2, 0], sizes = [16, 16, 4], strides = [1, 1, 1]} : vector<18x18x4xf32> to vector<16x16x4xf32>
    %18 = tpu.concatenate %9, %10, %11, %12, %13, %14, %15, %16, %17 in 2 : vector<16x16x4xf32>, vector<16x16x4xf32>, vector<16x16x4xf32>, vector<16x16x4xf32>, vector<16x16x4xf32>, vector<16x16x4xf32>, vector<16x16x4xf32>, vector<16x16x4xf32>, vector<16x16x4xf32> -> vector<16x16x36xf32>
    %19 = vector.shape_cast %18 : vector<16x16x36xf32> to vector<256x36xf32>
    %cst_5 = arith.constant dense<0.000000e+00> : vector<256x8xf32>
    %20 = tpu.matmul %19, %4, %cst_5 {dimension_numbers = #tpu.dot_dimension_numbers<[1], [0], [0], [1], [0, 0, 1, 1], [], []>} : vector<256x36xf32>, vector<36x8xf32>, vector<256x8xf32> -> vector<256x8xf32>
    %21 = tpu.transpose %20, [1, 0] : vector<256x8xf32> -> vector<8x256xf32>
    %c0_6 = arith.constant 0 : index
    %c0_7 = arith.constant 0 : index
    %c0_8 = arith.constant 0 : index
    %22 = vector.load %arg3[%c0_6, %c0_7, %c0_8] : memref<1x8x256xf32, #tpu.memory_space<vmem>>, vector<1x8x256xf32>
    %23 = vector.shape_cast %22 : vector<1x8x256xf32> to vector<8x256xf32>
    %24 = vector.shape_cast %21 : vector<8x256xf32> to vector<1x8x256xf32>
    tpu.vector_store %arg3[%c0_6, %c0_7, %c0_8], %24 {strides = array<i32>} : memref<1x8x256xf32, #tpu.memory_space<vmem>>, vector<1x8x256xf32>,
    %cst_9 = arith.constant dense<0.000000e+00> : vector<8xf32>
    %25 = vector.multi_reduction <add>, %20, %cst_9 [0] : vector<256x8xf32> to vector<8xf32>
    %26 = vector.shape_cast %25 : vector<8xf32> to vector<1x8xf32>
    %27 = arith.mulf %20, %20 : vector<256x8xf32>
    %cst_10 = arith.constant dense<0.000000e+00> : vector<8xf32>
    %28 = vector.multi_reduction <add>, %27, %cst_10 [0] : vector<256x8xf32> to vector<8xf32>
    %29 = vector.shape_cast %28 : vector<8xf32> to vector<1x8xf32>
    %30 = tpu.concatenate %26, %29 in 0 : vector<1x8xf32>, vector<1x8xf32> -> vector<2x8xf32>
    %c0_11 = arith.constant 0 : index
    %c0_12 = arith.constant 0 : index
    %c0_13 = arith.constant 0 : index
    %31 = vector.load %arg4[%c0_11, %c0_12, %c0_13] : memref<1x2x8xf32, #tpu.memory_space<vmem>>, vector<1x2x8xf32>
    %32 = vector.shape_cast %31 : vector<1x2x8xf32> to vector<2x8xf32>
    %33 = vector.shape_cast %30 : vector<2x8xf32> to vector<1x2x8xf32>
    tpu.vector_store %arg4[%c0_11, %c0_12, %c0_13], %33 {strides = array<i32>} : memref<1x2x8xf32, #tpu.memory_space<vmem>>, vector<1x2x8xf32>,
    return
  }
  func.func @transform_0(%arg0: i32) -> (i32, i32, i32) {
    %c0_i32 = arith.constant 0 : i32
    %c0_i32_0 = arith.constant 0 : i32
    %c0_i32_1 = arith.constant 0 : i32
    return %arg0, %c0_i32, %c0_i32_0 : i32, i32, i32
  }
  func.func @transform_1(%arg0: i32) -> (i32, i32) {
    %c0_i32 = arith.constant 0 : i32
    %c0_i32_0 = arith.constant 0 : i32
    %c0_i32_1 = arith.constant 0 : i32
    return %c0_i32, %c0_i32_0 : i32, i32
  }
  func.func @transform_2(%arg0: i32) -> (i32, i32, i32) {
    %c0_i32 = arith.constant 0 : i32
    %c0_i32_0 = arith.constant 0 : i32
    %c0_i32_1 = arith.constant 0 : i32
    return %arg0, %c0_i32, %c0_i32_0 : i32, i32, i32
  }
  func.func @transform_3(%arg0: i32) -> (i32, i32, i32) {
    %c0_i32 = arith.constant 0 : i32
    %c0_i32_0 = arith.constant 0 : i32
    %c0_i32_1 = arith.constant 0 : i32
    return %arg0, %c0_i32, %c0_i32_0 : i32, i32, i32
  }
}

module attributes {stable_mosaic.version = 11 : i64} {
  func.func @_bn_lrelu_kernel(%arg0: i32, %arg1: memref<1x8x256xf32, #tpu.memory_space<vmem>>, %arg2: memref<8x1xf32, #tpu.memory_space<vmem>>, %arg3: memref<8x1xf32, #tpu.memory_space<vmem>>, %arg4: memref<1x8x256xf32, #tpu.memory_space<vmem>>) attributes {dimension_semantics = [#tpu.dimension_semantics<parallel>], iteration_bounds = array<i64: 2>, scalar_prefetch = 0 : i64, scratch_operands = 0 : i64, tpu.core_type = #tpu.core_type<tc>, window_params = [{transform_indices = @transform_0, window_bounds = array<i64: 1, 8, 256>}, {pipeline_mode = #tpu.pipeline_mode<synchronous>, transform_indices = @transform_1, window_bounds = array<i64: 8, 1>}, {pipeline_mode = #tpu.pipeline_mode<synchronous>, transform_indices = @transform_2, window_bounds = array<i64: 8, 1>}, {transform_indices = @transform_3, window_bounds = array<i64: 1, 8, 256>}]} {
    %c0 = arith.constant 0 : index
    %c0_0 = arith.constant 0 : index
    %c0_1 = arith.constant 0 : index
    %0 = vector.load %arg1[%c0, %c0_0, %c0_1] : memref<1x8x256xf32, #tpu.memory_space<vmem>>, vector<1x8x256xf32>
    %1 = vector.shape_cast %0 : vector<1x8x256xf32> to vector<8x256xf32>
    %c0_2 = arith.constant 0 : index
    %c0_3 = arith.constant 0 : index
    %2 = vector.load %arg2[%c0_2, %c0_3] : memref<8x1xf32, #tpu.memory_space<vmem>>, vector<8x1xf32>
    %3 = vector.broadcast %2 : vector<8x1xf32> to vector<8x256xf32>
    %4 = arith.mulf %1, %3 : vector<8x256xf32>
    %c0_4 = arith.constant 0 : index
    %c0_5 = arith.constant 0 : index
    %5 = vector.load %arg3[%c0_4, %c0_5] : memref<8x1xf32, #tpu.memory_space<vmem>>, vector<8x1xf32>
    %6 = vector.broadcast %5 : vector<8x1xf32> to vector<8x256xf32>
    %7 = arith.addf %4, %6 : vector<8x256xf32>
    %cst = arith.constant 0.000000e+00 : f32
    %8 = vector.broadcast %cst : f32 to vector<8x256xf32>
    %9 = arith.cmpf ogt, %7, %8 : vector<8x256xf32>
    %cst_6 = arith.constant 0.00999999977 : f32
    %10 = vector.broadcast %cst_6 : f32 to vector<8x256xf32>
    %11 = arith.mulf %10, %7 : vector<8x256xf32>
    %12 = arith.select %9, %7, %11 : vector<8x256xi1>, vector<8x256xf32>
    %c0_7 = arith.constant 0 : index
    %c0_8 = arith.constant 0 : index
    %c0_9 = arith.constant 0 : index
    %13 = vector.load %arg4[%c0_7, %c0_8, %c0_9] : memref<1x8x256xf32, #tpu.memory_space<vmem>>, vector<1x8x256xf32>
    %14 = vector.shape_cast %13 : vector<1x8x256xf32> to vector<8x256xf32>
    %15 = vector.shape_cast %12 : vector<8x256xf32> to vector<1x8x256xf32>
    tpu.vector_store %arg4[%c0_7, %c0_8, %c0_9], %15 {strides = array<i32>} : memref<1x8x256xf32, #tpu.memory_space<vmem>>, vector<1x8x256xf32>,
    return
  }
  func.func @transform_0(%arg0: i32) -> (i32, i32, i32) {
    %c0_i32 = arith.constant 0 : i32
    %c0_i32_0 = arith.constant 0 : i32
    %c0_i32_1 = arith.constant 0 : i32
    return %arg0, %c0_i32, %c0_i32_0 : i32, i32, i32
  }
  func.func @transform_1(%arg0: i32) -> (i32, i32) {
    %c0_i32 = arith.constant 0 : i32
    %c0_i32_0 = arith.constant 0 : i32
    %c0_i32_1 = arith.constant 0 : i32
    return %c0_i32, %c0_i32_0 : i32, i32
  }
  func.func @transform_2(%arg0: i32) -> (i32, i32) {
    %c0_i32 = arith.constant 0 : i32
    %c0_i32_0 = arith.constant 0 : i32
    %c0_i32_1 = arith.constant 0 : i32
    return %c0_i32, %c0_i32_0 : i32, i32
  }
  func.func @transform_3(%arg0: i32) -> (i32, i32, i32) {
    %c0_i32 = arith.constant 0 : i32
    %c0_i32_0 = arith.constant 0 : i32
    %c0_i32_1 = arith.constant 0 : i32
    return %arg0, %c0_i32, %c0_i32_0 : i32, i32, i32
  }
}

module attributes {stable_mosaic.version = 11 : i64} {
  func.func @_bn_lrelu_conv_stats_kernel(%arg0: i32, %arg1: memref<1x8x256xf32, #tpu.memory_space<vmem>>, %arg2: memref<8x1xf32, #tpu.memory_space<vmem>>, %arg3: memref<8x1xf32, #tpu.memory_space<vmem>>, %arg4: memref<72x8xf32, #tpu.memory_space<vmem>>, %arg5: memref<1x8x256xf32, #tpu.memory_space<vmem>>, %arg6: memref<1x2x8xf32, #tpu.memory_space<vmem>>) attributes {dimension_semantics = [#tpu.dimension_semantics<parallel>], iteration_bounds = array<i64: 2>, scalar_prefetch = 0 : i64, scratch_operands = 0 : i64, tpu.core_type = #tpu.core_type<tc>, window_params = [{transform_indices = @transform_0, window_bounds = array<i64: 1, 8, 256>}, {pipeline_mode = #tpu.pipeline_mode<synchronous>, transform_indices = @transform_1, window_bounds = array<i64: 8, 1>}, {pipeline_mode = #tpu.pipeline_mode<synchronous>, transform_indices = @transform_2, window_bounds = array<i64: 8, 1>}, {pipeline_mode = #tpu.pipeline_mode<synchronous>, transform_indices = @transform_3, window_bounds = array<i64: 72, 8>}, {transform_indices = @transform_4, window_bounds = array<i64: 1, 8, 256>}, {transform_indices = @transform_5, window_bounds = array<i64: 1, 2, 8>}]} {
    %c0 = arith.constant 0 : index
    %c0_0 = arith.constant 0 : index
    %c0_1 = arith.constant 0 : index
    %0 = vector.load %arg1[%c0, %c0_0, %c0_1] : memref<1x8x256xf32, #tpu.memory_space<vmem>>, vector<1x8x256xf32>
    %1 = vector.shape_cast %0 : vector<1x8x256xf32> to vector<8x256xf32>
    %c0_2 = arith.constant 0 : index
    %c0_3 = arith.constant 0 : index
    %2 = vector.load %arg2[%c0_2, %c0_3] : memref<8x1xf32, #tpu.memory_space<vmem>>, vector<8x1xf32>
    %3 = vector.broadcast %2 : vector<8x1xf32> to vector<8x256xf32>
    %4 = arith.mulf %1, %3 : vector<8x256xf32>
    %c0_4 = arith.constant 0 : index
    %c0_5 = arith.constant 0 : index
    %5 = vector.load %arg3[%c0_4, %c0_5] : memref<8x1xf32, #tpu.memory_space<vmem>>, vector<8x1xf32>
    %6 = vector.broadcast %5 : vector<8x1xf32> to vector<8x256xf32>
    %7 = arith.addf %4, %6 : vector<8x256xf32>
    %cst = arith.constant 0.000000e+00 : f32
    %8 = vector.broadcast %cst : f32 to vector<8x256xf32>
    %9 = arith.cmpf ogt, %7, %8 : vector<8x256xf32>
    %cst_6 = arith.constant 0.00999999977 : f32
    %10 = vector.broadcast %cst_6 : f32 to vector<8x256xf32>
    %11 = arith.mulf %10, %7 : vector<8x256xf32>
    %12 = arith.select %9, %7, %11 : vector<8x256xi1>, vector<8x256xf32>
    %13 = tpu.transpose %12, [1, 0] : vector<8x256xf32> -> vector<256x8xf32>
    %14 = vector.shape_cast %13 : vector<256x8xf32> to vector<16x16x8xf32>
    %c0_7 = arith.constant 0 : index
    %c0_8 = arith.constant 0 : index
    %15 = vector.load %arg4[%c0_7, %c0_8] : memref<72x8xf32, #tpu.memory_space<vmem>>, vector<72x8xf32>
    %cst_9 = arith.constant 0.000000e+00 : f32
    %16 = vector.broadcast %cst_9 : f32 to vector<1x16x8xf32>
    %17 = tpu.concatenate %16, %14, %16 in 0 : vector<1x16x8xf32>, vector<16x16x8xf32>, vector<1x16x8xf32> -> vector<18x16x8xf32>
    %cst_10 = arith.constant 0.000000e+00 : f32
    %18 = vector.broadcast %cst_10 : f32 to vector<18x1x8xf32>
    %19 = tpu.concatenate %18, %17, %18 in 1 : vector<18x1x8xf32>, vector<18x16x8xf32>, vector<18x1x8xf32> -> vector<18x18x8xf32>
    %20 = vector.extract_strided_slice %19 {offsets = [0, 0, 0], sizes = [16, 16, 8], strides = [1, 1, 1]} : vector<18x18x8xf32> to vector<16x16x8xf32>
    %21 = vector.extract_strided_slice %19 {offsets = [0, 1, 0], sizes = [16, 16, 8], strides = [1, 1, 1]} : vector<18x18x8xf32> to vector<16x16x8xf32>
    %22 = vector.extract_strided_slice %19 {offsets = [0, 2, 0], sizes = [16, 16, 8], strides = [1, 1, 1]} : vector<18x18x8xf32> to vector<16x16x8xf32>
    %23 = vector.extract_strided_slice %19 {offsets = [1, 0, 0], sizes = [16, 16, 8], strides = [1, 1, 1]} : vector<18x18x8xf32> to vector<16x16x8xf32>
    %24 = vector.extract_strided_slice %19 {offsets = [1, 1, 0], sizes = [16, 16, 8], strides = [1, 1, 1]} : vector<18x18x8xf32> to vector<16x16x8xf32>
    %25 = vector.extract_strided_slice %19 {offsets = [1, 2, 0], sizes = [16, 16, 8], strides = [1, 1, 1]} : vector<18x18x8xf32> to vector<16x16x8xf32>
    %26 = vector.extract_strided_slice %19 {offsets = [2, 0, 0], sizes = [16, 16, 8], strides = [1, 1, 1]} : vector<18x18x8xf32> to vector<16x16x8xf32>
    %27 = vector.extract_strided_slice %19 {offsets = [2, 1, 0], sizes = [16, 16, 8], strides = [1, 1, 1]} : vector<18x18x8xf32> to vector<16x16x8xf32>
    %28 = vector.extract_strided_slice %19 {offsets = [2, 2, 0], sizes = [16, 16, 8], strides = [1, 1, 1]} : vector<18x18x8xf32> to vector<16x16x8xf32>
    %29 = tpu.concatenate %20, %21, %22, %23, %24, %25, %26, %27, %28 in 2 : vector<16x16x8xf32>, vector<16x16x8xf32>, vector<16x16x8xf32>, vector<16x16x8xf32>, vector<16x16x8xf32>, vector<16x16x8xf32>, vector<16x16x8xf32>, vector<16x16x8xf32>, vector<16x16x8xf32> -> vector<16x16x72xf32>
    %30 = vector.shape_cast %29 : vector<16x16x72xf32> to vector<256x72xf32>
    %cst_11 = arith.constant dense<0.000000e+00> : vector<256x8xf32>
    %31 = tpu.matmul %30, %15, %cst_11 {dimension_numbers = #tpu.dot_dimension_numbers<[1], [0], [0], [1], [0, 0, 1, 1], [], []>} : vector<256x72xf32>, vector<72x8xf32>, vector<256x8xf32> -> vector<256x8xf32>
    %32 = tpu.transpose %31, [1, 0] : vector<256x8xf32> -> vector<8x256xf32>
    %c0_12 = arith.constant 0 : index
    %c0_13 = arith.constant 0 : index
    %c0_14 = arith.constant 0 : index
    %33 = vector.load %arg5[%c0_12, %c0_13, %c0_14] : memref<1x8x256xf32, #tpu.memory_space<vmem>>, vector<1x8x256xf32>
    %34 = vector.shape_cast %33 : vector<1x8x256xf32> to vector<8x256xf32>
    %35 = vector.shape_cast %32 : vector<8x256xf32> to vector<1x8x256xf32>
    tpu.vector_store %arg5[%c0_12, %c0_13, %c0_14], %35 {strides = array<i32>} : memref<1x8x256xf32, #tpu.memory_space<vmem>>, vector<1x8x256xf32>,
    %cst_15 = arith.constant dense<0.000000e+00> : vector<8xf32>
    %36 = vector.multi_reduction <add>, %31, %cst_15 [0] : vector<256x8xf32> to vector<8xf32>
    %37 = vector.shape_cast %36 : vector<8xf32> to vector<1x8xf32>
    %38 = arith.mulf %31, %31 : vector<256x8xf32>
    %cst_16 = arith.constant dense<0.000000e+00> : vector<8xf32>
    %39 = vector.multi_reduction <add>, %38, %cst_16 [0] : vector<256x8xf32> to vector<8xf32>
    %40 = vector.shape_cast %39 : vector<8xf32> to vector<1x8xf32>
    %41 = tpu.concatenate %37, %40 in 0 : vector<1x8xf32>, vector<1x8xf32> -> vector<2x8xf32>
    %c0_17 = arith.constant 0 : index
    %c0_18 = arith.constant 0 : index
    %c0_19 = arith.constant 0 : index
    %42 = vector.load %arg6[%c0_17, %c0_18, %c0_19] : memref<1x2x8xf32, #tpu.memory_space<vmem>>, vector<1x2x8xf32>
    %43 = vector.shape_cast %42 : vector<1x2x8xf32> to vector<2x8xf32>
    %44 = vector.shape_cast %41 : vector<2x8xf32> to vector<1x2x8xf32>
    tpu.vector_store %arg6[%c0_17, %c0_18, %c0_19], %44 {strides = array<i32>} : memref<1x2x8xf32, #tpu.memory_space<vmem>>, vector<1x2x8xf32>,
    return
  }
  func.func @transform_0(%arg0: i32) -> (i32, i32, i32) {
    %c0_i32 = arith.constant 0 : i32
    %c0_i32_0 = arith.constant 0 : i32
    %c0_i32_1 = arith.constant 0 : i32
    return %arg0, %c0_i32, %c0_i32_0 : i32, i32, i32
  }
  func.func @transform_1(%arg0: i32) -> (i32, i32) {
    %c0_i32 = arith.constant 0 : i32
    %c0_i32_0 = arith.constant 0 : i32
    %c0_i32_1 = arith.constant 0 : i32
    return %c0_i32, %c0_i32_0 : i32, i32
  }
  func.func @transform_2(%arg0: i32) -> (i32, i32) {
    %c0_i32 = arith.constant 0 : i32
    %c0_i32_0 = arith.constant 0 : i32
    %c0_i32_1 = arith.constant 0 : i32
    return %c0_i32, %c0_i32_0 : i32, i32
  }
  func.func @transform_3(%arg0: i32) -> (i32, i32) {
    %c0_i32 = arith.constant 0 : i32
    %c0_i32_0 = arith.constant 0 : i32
    %c0_i32_1 = arith.constant 0 : i32
    return %c0_i32, %c0_i32_0 : i32, i32
  }
  func.func @transform_4(%arg0: i32) -> (i32, i32, i32) {
    %c0_i32 = arith.constant 0 : i32
    %c0_i32_0 = arith.constant 0 : i32
    %c0_i32_1 = arith.constant 0 : i32
    return %arg0, %c0_i32, %c0_i32_0 : i32, i32, i32
  }
  func.func @transform_5(%arg0: i32) -> (i32, i32, i32) {
    %c0_i32 = arith.constant 0 : i32
    %c0_i32_0 = arith.constant 0 : i32
    %c0_i32_1 = arith.constant 0 : i32
    return %arg0, %c0_i32, %c0_i32_0 : i32, i32, i32
  }
}

</mosaic_0001>

<llo_original>
// kernel: conv_block_forward.5
$region0: #{conv_block_forward.5}
  #allocation0 [shape = 'u32[]', space=smem, size = 0x4, offset = 0x4, fixed_abs, tag = 'smem constant byte address 0x4 - core index']
  #allocation1 [shape = 'u32[144,128]{1,0:T(1,128)}', space=vmem, size = 0x12000, scoped, tag = 'internal scratch']
  %s0 = inlined_call_operand.vmem [shape: f32[2,8,256], index: 0, kind: input, shape index: {}]
  %s1 = inlined_call_operand.vmem [shape: f32[8,1], index: 1, kind: input, shape index: {}]
  %s2 = inlined_call_operand.vmem [shape: f32[8,1], index: 2, kind: input, shape index: {}]
  %s3 = inlined_call_operand.vmem [shape: f32[2,8,256], index: 3, kind: output, shape index: {}]
  %s4 = sld [smem:[#allocation0]]
  $region45: #{conv_block_forward.5} parent=0
    _
  %s6 = ssub.s32 1, %s4
  %s7 = scalar_select 0, %s6, %s4
  loop: start=0, step=1, limit=4
  $region2: #{conv_block_forward.5} parent=0 // loop_pre_header
    _
  $region3: #{conv_block_forward.5} parent=0 // loop_header
    %s9 = sphi 0, %s13
    %p10 = scmp.ge.s32.totalorder %s9, 4
    %s19 = sphi 0, %s21
    %s22 = sphi 0, %s19
    %s23 = sphi 0, %s22
    %s39 = sphi 0, %s23
    %s43 = sphi 0, %s43
    %s45 = sphi 0, %s43
    %s46 = sphi 0, %s45
    %s60 = sphi 0, %s46
    %s64 = sphi 0, %s64
    %s66 = sphi 0, %s64
    %s67 = sphi 0, %s66
    %s81 = sphi 0, %s67
    %s87 = sphi 0, %s89
    %s90 = sphi 0, %s87
    %s91 = sphi 0, %s90
    %s107 = sphi 0, %s91
  $region4: #{conv_block_forward.5} parent=0 // loop_header_branch
    %12 = sbr.rel (%p10) target = $region8
  $region5: #{conv_block_forward.5} parent=0 // loop_body
    %s14 = ssub.s32 %s9, 1
    %s15 = ssub.s32 %s9, 2
    %s16 = sadd.s32 %s9, 1
    %s17 = ssub.s32 %s9, %s16
    %p18 = scmp.eq.s32.totalorder %s17, 0
    %s20 = sadd.s32 %s19, 1
    %s21 = scalar_select %p18, %s19, %s20
    %p24 = pneg %p18
    %p25 = scmp.eq.s32.totalorder %s9, 1
    %p26 = por %p24, %p25
    %p27 = scmp.ne.s32.totalorder %s19, %s22
    %p28 = scmp.eq.s32.totalorder %s9, 0
    %p29 = por %p27, %p28
    %p30 = scmp.ne.s32.totalorder %s19, %s22
    %p31 = scmp.eq.s32.totalorder %s14, 1
    %p32 = por %p30, %p31
    %p33 = scmp.ne.s32.totalorder %s22, %s23
    %p34 = scmp.eq.s32.totalorder %s14, 0
    %p35 = por %p33, %p34
    %p36 = scmp.ne.s32.totalorder %s22, %s23
    %p37 = scmp.eq.s32.totalorder %s15, 1
    %p38 = por %p36, %p37
    %p40 = scmp.ne.s32.totalorder %s23, %s39
    %p41 = scmp.eq.s32.totalorder %s15, 0
    %p42 = por %p40, %p41
    %s44 = sadd.s32 %s43, 1
    %p47 = scmp.eq.s32.totalorder %s9, 1
    %p48 = scmp.ne.s32.totalorder %s43, %s45
    %p49 = scmp.eq.s32.totalorder %s9, 0
    %p50 = por %p48, %p49
    %p51 = scmp.ne.s32.totalorder %s43, %s45
    %p52 = scmp.eq.s32.totalorder %s14, 1
    %p53 = por %p51, %p52
    %p54 = scmp.ne.s32.totalorder %s45, %s46
    %p55 = scmp.eq.s32.totalorder %s14, 0
    %p56 = por %p54, %p55
    %p57 = scmp.ne.s32.totalorder %s45, %s46
    %p58 = scmp.eq.s32.totalorder %s15, 1
    %p59 = por %p57, %p58
    %p61 = scmp.ne.s32.totalorder %s46, %s60
    %p62 = scmp.eq.s32.totalorder %s15, 0
    %p63 = por %p61, %p62
    %s65 = sadd.s32 %s64, 1
    %p68 = scmp.eq.s32.totalorder %s9, 1
    %p69 = scmp.ne.s32.totalorder %s64, %s66
    %p70 = scmp.eq.s32.totalorder %s9, 0
    %p71 = por %p69, %p70
    %p72 = scmp.ne.s32.totalorder %s64, %s66
    %p73 = scmp.eq.s32.totalorder %s14, 1
    %p74 = por %p72, %p73
    %p75 = scmp.ne.s32.totalorder %s66, %s67
    %p76 = scmp.eq.s32.totalorder %s14, 0
    %p77 = por %p75, %p76
    %p78 = scmp.ne.s32.totalorder %s66, %s67
    %p79 = scmp.eq.s32.totalorder %s15, 1
    %p80 = por %p78, %p79
    %p82 = scmp.ne.s32.totalorder %s67, %s81
    %p83 = scmp.eq.s32.totalorder %s15, 0
    %p84 = por %p82, %p83
    %s85 = ssub.s32 %s9, %s16
    %p86 = scmp.eq.s32.totalorder %s85, 0
    %s88 = sadd.s32 %s87, 1
    %s89 = scalar_select %p86, %s87, %s88
    %p92 = pneg %p86
    %p93 = scmp.eq.s32.totalorder %s9, 1
    %p94 = por %p92, %p93
    %p95 = scmp.ne.s32.totalorder %s87, %s90
    %p96 = scmp.eq.s32.totalorder %s9, 0
    %p97 = por %p95, %p96
    %p98 = scmp.ne.s32.totalorder %s87, %s90
    %p99 = scmp.eq.s32.totalorder %s14, 1
    %p100 = por %p98, %p99
    %p101 = scmp.ne.s32.totalorder %s90, %s91
    %p102 = scmp.eq.s32.totalorder %s14, 0
    %p103 = por %p101, %p102
    %p104 = scmp.ne.s32.totalorder %s90, %s91
    %p105 = scmp.eq.s32.totalorder %s15, 1
    %p106 = por %p104, %p105
    %p108 = scmp.ne.s32.totalorder %s91, %s107
    %p109 = scmp.eq.s32.totalorder %s15, 0
    %p110 = por %p108, %p109
    %p111 = scmp.le.s32.totalorder 1, %s9
    %p112 = scmp.lt.s32.totalorder %s9, 3
    %p113 = pnand %p111, %p112
    %p114 = pneg %p113
    // Predicated region
    $region9: #{conv_block_forward.5} parent=5 // pred_check
      _
    $region10: #{conv_block_forward.5} parent=5 // pred_check_branch
      %116 = sbr.rel (%p113) target = $region12
    $region11: #{conv_block_forward.5} parent=5 // pred_region
      %s117 = ssub.s32 %s9, 1
      // Predicated region
      $region13: #{conv_block_forward.5} parent=11 // pred_check
        %p118 = pneg %p56
      $region14: #{conv_block_forward.5} parent=11 // pred_check_branch
        %120 = sbr.rel (%p118) target = $region16
      $region15: #{conv_block_forward.5} parent=11 // pred_region
        _
      $region16: #{conv_block_forward.5} parent=11 // pred_fallthru
        _
      // Predicated region
      $region17: #{conv_block_forward.5} parent=11 // pred_check
        %p121 = pneg %p77
      $region18: #{conv_block_forward.5} parent=11 // pred_check_branch
        %123 = sbr.rel (%p121) target = $region20
      $region19: #{conv_block_forward.5} parent=11 // pred_region
        _
      $region20: #{conv_block_forward.5} parent=11 // pred_fallthru
        _
    $region12: #{conv_block_forward.5} parent=5 // pred_fallthru
      _
    %p124 = scmp.lt.s32.totalorder %s9, 2
    // Predicated region
    $region21: #{conv_block_forward.5} parent=5 // pred_check
      %p125 = pneg %p124
    $region22: #{conv_block_forward.5} parent=5 // pred_check_branch
      %127 = sbr.rel (%p125) target = $region24
    $region23: #{conv_block_forward.5} parent=5 // pred_region
      // Predicated region
      $region25: #{conv_block_forward.5} parent=23 // pred_check
        %p128 = pneg %p29
      $region26: #{conv_block_forward.5} parent=23 // pred_check_branch
        %130 = sbr.rel (%p128) target = $region28
      $region27: #{conv_block_forward.5} parent=23 // pred_region
        %p131 = scmp.lt.s32.totalorder %s9, 1
        %s132 = scalar_select %p131, %s9, 1
        %s133 = smul.addr %s132, 2
        %s134 = smul.addr %s133, 8
        %s135 = scalar_lea.vmem %s0, %s134
      $region28: #{conv_block_forward.5} parent=23 // pred_fallthru
        _
    $region24: #{conv_block_forward.5} parent=5 // pred_fallthru
      _
    %p136 = scmp.le.s32.totalorder 1, %s9
    %p137 = scmp.lt.s32.totalorder %s9, 3
    %p138 = pnand %p136, %p137
    %p139 = pneg %p138
    // Predicated region
    $region29: #{conv_block_forward.5} parent=5 // pred_check
      _
    $region30: #{conv_block_forward.5} parent=5 // pred_check_branch
      %141 = sbr.rel (%p138) target = $region32
    $region31: #{conv_block_forward.5} parent=5 // pred_region
      %s142 = ssub.s32 %s9, 1
      %p143 = scmp.lt.s32.totalorder %s14, 1
      %s144 = scalar_select %p143, %s14, 1
      %s145 = smul.addr %s144, 2
      %s146 = smul.addr %s145, 8
      %s147 = scalar_lea.vmem %s0, %s146
      %p148 = pneg %p35
      %p149 = pneg %p32
      %p150 = pneg %p56
      %p151 = pneg %p53
      %p152 = pneg %p77
      %p153 = pneg %p74
      %p154 = pneg %p103
      %p155 = pneg %p100
      %p156 = scmp.lt.s32.totalorder %s14, 1
      %s157 = scalar_select %p156, %s14, 1
      %s158 = smul.addr %s157, 2
      %s159 = smul.addr %s158, 8
      %s160 = scalar_lea.vmem %s3, %s159
      %p161 = scmp.lt.s32.totalorder %s14, 1
      %s162 = scalar_select %p161, %s14, 1
      %s163 = smul.addr %s162, 2
      %s164 = smul.addr %s163, 8
      %s165 = scalar_lea.vmem %s0, %s164
      %p166 = scmp.lt.s32.totalorder %s14, 1
      %s167 = scalar_select %p166, %s14, 1
      %s168 = smul.addr %s167, 2
      %s169 = smul.addr %s168, 8
      %s170 = scalar_lea.vmem %s3, %s169
      %v171 = vld [vmem:[%s165] sm:$0xff]
      %v172 = vld [vmem:[%s165 + $0x8] sm:$0xff]
      %v173 = vld [vmem:[%s1] sm:$0xff]
      %175 = vset.pattern.permute.xlu0 0
      %176 = vperm.xlu0 %175, %v173
      %v177 = vpop.permute.xlu0 %176
      %v179 = vmul.f32 %v171, %v177
      %v180 = vmul.f32 %v172, %v177
      %v181 = vld [vmem:[%s2] sm:$0xff]
      %183 = vset.pattern.permute.xlu0 0
      %184 = vperm.xlu0 %183, %v181
      %v185 = vpop.permute.xlu0 %184
      %v187 = vadd.f32 %v179, %v185
      %v188 = vadd.f32 %v180, %v185
      %vm189 = vcmp.gt.f32.partialorder %v187, 0.0
      %vm190 = vcmp.gt.f32.partialorder %v188, 0.0
      %v191 = vmul.f32 %v187, 0.01
      %v192 = vmul.f32 %v188, 0.01
      %v193 = vsel %vm189, %v187, %v191
      %v194 = vsel %vm190, %v188, %v192
      %195 = vst [vmem:[%s170] sm:$0xff] %v193
      %196 = vst [vmem:[%s170 + $0x8] sm:$0xff] %v194
      %p197 = scmp.lt.s32.totalorder %s14, 1
      %s198 = scalar_select %p197, %s14, 1
      %s199 = smul.addr %s198, 2
      %s200 = smul.addr %s199, 8
      %s201 = scalar_lea.vmem %s3, %s200
      // Predicated region
      $region33: #{conv_block_forward.5} parent=31 // pred_check
        %p202 = pneg %p100
      $region34: #{conv_block_forward.5} parent=31 // pred_check_branch
        %204 = sbr.rel (%p202) target = $region36
      $region35: #{conv_block_forward.5} parent=31 // pred_region
        _
      $region36: #{conv_block_forward.5} parent=31 // pred_fallthru
        _
    $region32: #{conv_block_forward.5} parent=5 // pred_fallthru
      _
    %p205 = scmp.le.s32.totalorder 2, %s9
    // Predicated region
    $region37: #{conv_block_forward.5} parent=5 // pred_check
      %p206 = pneg %p205
    $region38: #{conv_block_forward.5} parent=5 // pred_check_branch
      %208 = sbr.rel (%p206) target = $region40
    $region39: #{conv_block_forward.5} parent=5 // pred_region
      %s209 = ssub.s32 %s9, 2
      // Predicated region
      $region41: #{conv_block_forward.5} parent=39 // pred_check
        %p210 = pneg %p106
      $region42: #{conv_block_forward.5} parent=39 // pred_check_branch
        %212 = sbr.rel (%p210) target = $region44
      $region43: #{conv_block_forward.5} parent=39 // pred_region
        %p213 = scmp.lt.s32.totalorder %s15, 1
        %s214 = scalar_select %p213, %s15, 1
        %s215 = smul.addr %s214, 2
        %s216 = smul.addr %s215, 8
        %s217 = scalar_lea.vmem %s3, %s216
      $region44: #{conv_block_forward.5} parent=39 // pred_fallthru
        _
    $region40: #{conv_block_forward.5} parent=5 // pred_fallthru
      _
  $region6: #{conv_block_forward.5} parent=0 // loop_footer
    %s13 = sadd.s32 1, %s9
  $region7: #{conv_block_forward.5} parent=0 // loop_footer_branch
    %8 = sbr.rel target = $region3
  $region8: #{conv_block_forward.5} parent=0 // loop_exit
    _

// kernel: conv_block_forward.3
$region0: #{conv_block_forward.3}
  #allocation0 [shape = 'u32[]', space=smem, size = 0x4, offset = 0x4, fixed_abs, tag = 'smem constant byte address 0x4 - core index']
  #allocation1 [shape = 'u32[144,128]{1,0:T(1,128)}', space=vmem, size = 0x12000, scoped, tag = 'internal scratch']
  %s0 = inlined_call_operand.vmem [shape: f32[2,4,256], index: 0, kind: input, shape index: {}]
  %s1 = inlined_call_operand.vmem [shape: f32[36,8], index: 1, kind: input, shape index: {}]
  %s2 = inlined_call_operand.vmem [shape: f32[2,8,256], index: 2, kind: output, shape index: {0}]
  %s3 = inlined_call_operand.vmem [shape: f32[2,2,8], index: 3, kind: output, shape index: {1}]
  %4 = xla_tuple %s2, %s3
  %s5 = sld [smem:[#allocation0]]
  $region49: #{conv_block_forward.3} parent=0
    _
  %s7 = ssub.s32 1, %s5
  %s8 = scalar_select 0, %s7, %s5
  loop: start=0, step=1, limit=4
  $region2: #{conv_block_forward.3} parent=0 // loop_pre_header
    _
  $region3: #{conv_block_forward.3} parent=0 // loop_header
    %s10 = sphi 0, %s14
    %p11 = scmp.ge.s32.totalorder %s10, 4
    %s20 = sphi 0, %s22
    %s23 = sphi 0, %s20
    %s24 = sphi 0, %s23
    %s40 = sphi 0, %s24
    %s44 = sphi 0, %s44
    %s46 = sphi 0, %s44
    %s47 = sphi 0, %s46
    %s61 = sphi 0, %s47
    %s67 = sphi 0, %s69
    %s70 = sphi 0, %s67
    %s71 = sphi 0, %s70
    %s87 = sphi 0, %s71
    %s93 = sphi 0, %s95
    %s96 = sphi 0, %s93
    %s97 = sphi 0, %s96
    %s113 = sphi 0, %s97
  $region4: #{conv_block_forward.3} parent=0 // loop_header_branch
    %13 = sbr.rel (%p11) target = $region8
  $region5: #{conv_block_forward.3} parent=0 // loop_body
    %s15 = ssub.s32 %s10, 1
    %s16 = ssub.s32 %s10, 2
    %s17 = sadd.s32 %s10, 1
    %s18 = ssub.s32 %s10, %s17
    %p19 = scmp.eq.s32.totalorder %s18, 0
    %s21 = sadd.s32 %s20, 1
    %s22 = scalar_select %p19, %s20, %s21
    %p25 = pneg %p19
    %p26 = scmp.eq.s32.totalorder %s10, 1
    %p27 = por %p25, %p26
    %p28 = scmp.ne.s32.totalorder %s20, %s23
    %p29 = scmp.eq.s32.totalorder %s10, 0
    %p30 = por %p28, %p29
    %p31 = scmp.ne.s32.totalorder %s20, %s23
    %p32 = scmp.eq.s32.totalorder %s15, 1
    %p33 = por %p31, %p32
    %p34 = scmp.ne.s32.totalorder %s23, %s24
    %p35 = scmp.eq.s32.totalorder %s15, 0
    %p36 = por %p34, %p35
    %p37 = scmp.ne.s32.totalorder %s23, %s24
    %p38 = scmp.eq.s32.totalorder %s16, 1
    %p39 = por %p37, %p38
    %p41 = scmp.ne.s32.totalorder %s24, %s40
    %p42 = scmp.eq.s32.totalorder %s16, 0
    %p43 = por %p41, %p42
    %s45 = sadd.s32 %s44, 1
    %p48 = scmp.eq.s32.totalorder %s10, 1
    %p49 = scmp.ne.s32.totalorder %s44, %s46
    %p50 = scmp.eq.s32.totalorder %s10, 0
    %p51 = por %p49, %p50
    %p52 = scmp.ne.s32.totalorder %s44, %s46
    %p53 = scmp.eq.s32.totalorder %s15, 1
    %p54 = por %p52, %p53
    %p55 = scmp.ne.s32.totalorder %s46, %s47
    %p56 = scmp.eq.s32.totalorder %s15, 0
    %p57 = por %p55, %p56
    %p58 = scmp.ne.s32.totalorder %s46, %s47
    %p59 = scmp.eq.s32.totalorder %s16, 1
    %p60 = por %p58, %p59
    %p62 = scmp.ne.s32.totalorder %s47, %s61
    %p63 = scmp.eq.s32.totalorder %s16, 0
    %p64 = por %p62, %p63
    %s65 = ssub.s32 %s10, %s17
    %p66 = scmp.eq.s32.totalorder %s65, 0
    %s68 = sadd.s32 %s67, 1
    %s69 = scalar_select %p66, %s67, %s68
    %p72 = pneg %p66
    %p73 = scmp.eq.s32.totalorder %s10, 1
    %p74 = por %p72, %p73
    %p75 = scmp.ne.s32.totalorder %s67, %s70
    %p76 = scmp.eq.s32.totalorder %s10, 0
    %p77 = por %p75, %p76
    %p78 = scmp.ne.s32.totalorder %s67, %s70
    %p79 = scmp.eq.s32.totalorder %s15, 1
    %p80 = por %p78, %p79
    %p81 = scmp.ne.s32.totalorder %s70, %s71
    %p82 = scmp.eq.s32.totalorder %s15, 0
    %p83 = por %p81, %p82
    %p84 = scmp.ne.s32.totalorder %s70, %s71
    %p85 = scmp.eq.s32.totalorder %s16, 1
    %p86 = por %p84, %p85
    %p88 = scmp.ne.s32.totalorder %s71, %s87
    %p89 = scmp.eq.s32.totalorder %s16, 0
    %p90 = por %p88, %p89
    %s91 = ssub.s32 %s10, %s17
    %p92 = scmp.eq.s32.totalorder %s91, 0
    %s94 = sadd.s32 %s93, 1
    %s95 = scalar_select %p92, %s93, %s94
    %p98 = pneg %p92
    %p99 = scmp.eq.s32.totalorder %s10, 1
    %p100 = por %p98, %p99
    %p101 = scmp.ne.s32.totalorder %s93, %s96
    %p102 = scmp.eq.s32.totalorder %s10, 0
    %p103 = por %p101, %p102
    %p104 = scmp.ne.s32.totalorder %s93, %s96
    %p105 = scmp.eq.s32.totalorder %s15, 1
    %p106 = por %p104, %p105
    %p107 = scmp.ne.s32.totalorder %s96, %s97
    %p108 = scmp.eq.s32.totalorder %s15, 0
    %p109 = por %p107, %p108
    %p110 = scmp.ne.s32.totalorder %s96, %s97
    %p111 = scmp.eq.s32.totalorder %s16, 1
    %p112 = por %p110, %p111
    %p114 = scmp.ne.s32.totalorder %s97, %s113
    %p115 = scmp.eq.s32.totalorder %s16, 0
    %p116 = por %p114, %p115
    %p117 = scmp.le.s32.totalorder 1, %s10
    %p118 = scmp.lt.s32.totalorder %s10, 3
    %p119 = pnand %p117, %p118
    %p120 = pneg %p119
    // Predicated region
    $region9: #{conv_block_forward.3} parent=5 // pred_check
      _
    $region10: #{conv_block_forward.3} parent=5 // pred_check_branch
      %122 = sbr.rel (%p119) target = $region12
    $region11: #{conv_block_forward.3} parent=5 // pred_region
      %s123 = ssub.s32 %s10, 1
      // Predicated region
      $region13: #{conv_block_forward.3} parent=11 // pred_check
        %p124 = pneg %p57
      $region14: #{conv_block_forward.3} parent=11 // pred_check_branch
        %126 = sbr.rel (%p124) target = $region16
      $region15: #{conv_block_forward.3} parent=11 // pred_region
        _
      $region16: #{conv_block_forward.3} parent=11 // pred_fallthru
        _
    $region12: #{conv_block_forward.3} parent=5 // pred_fallthru
      _
    %p127 = scmp.lt.s32.totalorder %s10, 2
    // Predicated region
    $region17: #{conv_block_forward.3} parent=5 // pred_check
      %p128 = pneg %p127
    $region18: #{conv_block_forward.3} parent=5 // pred_check_branch
      %130 = sbr.rel (%p128) target = $region20
    $region19: #{conv_block_forward.3} parent=5 // pred_region
      // Predicated region
      $region21: #{conv_block_forward.3} parent=19 // pred_check
        %p131 = pneg %p30
      $region22: #{conv_block_forward.3} parent=19 // pred_check_branch
        %133 = sbr.rel (%p131) target = $region24
      $region23: #{conv_block_forward.3} parent=19 // pred_region
        %p134 = scmp.lt.s32.totalorder %s10, 1
        %s135 = scalar_select %p134, %s10, 1
        %s136 = smul.addr %s135, 2
        %s137 = smul.addr %s136, 4
        %s138 = scalar_lea.vmem %s0, %s137
      $region24: #{conv_block_forward.3} parent=19 // pred_fallthru
        _
    $region20: #{conv_block_forward.3} parent=5 // pred_fallthru
      _
    %p139 = scmp.le.s32.totalorder 1, %s10
    %p140 = scmp.lt.s32.totalorder %s10, 3
    %p141 = pnand %p139, %p140
    %p142 = pneg %p141
    // Predicated region
    $region25: #{conv_block_forward.3} parent=5 // pred_check
      _
    $region26: #{conv_block_forward.3} parent=5 // pred_check_branch
      %144 = sbr.rel (%p141) target = $region28
    $region27: #{conv_block_forward.3} parent=5 // pred_region
      %s145 = ssub.s32 %s10, 1
      %p146 = scmp.lt.s32.totalorder %s15, 1
      %s147 = scalar_select %p146, %s15, 1
      %s148 = smul.addr %s147, 2
      %s149 = smul.addr %s148, 4
      %s150 = scalar_lea.vmem %s0, %s149
      %p151 = pneg %p36
      %p152 = pneg %p33
      %p153 = pneg %p57
      %p154 = pneg %p54
      %p155 = pneg %p83
      %p156 = pneg %p80
      %p157 = scmp.lt.s32.totalorder %s15, 1
      %s158 = scalar_select %p157, %s15, 1
      %s159 = smul.addr %s158, 2
      %s160 = smul.addr %s159, 8
      %s161 = scalar_lea.vmem %s2, %s160
      %p162 = pneg %p109
      %p163 = pneg %p106
      %p164 = scmp.lt.s32.totalorder %s15, 1
      %s165 = scalar_select %p164, %s15, 1
      %s166 = smul.addr %s165, 2
      %s167 = scalar_lea.vmem %s3, %s166
      %p168 = scmp.lt.s32.totalorder %s15, 1
      %s169 = scalar_select %p168, %s15, 1
      %s170 = smul.addr %s169, 2
      %s171 = smul.addr %s170, 4
      %s172 = scalar_lea.vmem %s0, %s171
      %p173 = scmp.lt.s32.totalorder %s15, 1
      %s174 = scalar_select %p173, %s15, 1
      %s175 = smul.addr %s174, 2
      %s176 = smul.addr %s175, 8
      %s177 = scalar_lea.vmem %s2, %s176
      %p178 = scmp.lt.s32.totalorder %s15, 1
      %s179 = scalar_select %p178, %s15, 1
      %s180 = smul.addr %s179, 2
      %s181 = scalar_lea.vmem %s3, %s180
      %v182 = vld [vmem:[%s172] sm:$0xff]
      %v184 = vcombine.high %v182, %v182
      %186 = vxpose.xlu0.b32.start [1/16] %v182, 128
      %187 = vxpose.xlu0.b32.cont [2/16] 0.0, 128
      %188 = vxpose.xlu0.b32.cont [3/16] 0.0, 128
      %189 = vxpose.xlu0.b32.cont [4/16] 0.0, 128
      %190 = vxpose.xlu0.b32.cont [5/16] 0.0, 128
      %191 = vxpose.xlu0.b32.cont [6/16] 0.0, 128
      %192 = vxpose.xlu0.b32.cont [7/16] 0.0, 128
      %193 = vxpose.xlu0.b32.cont [8/16] 0.0, 128
      %194 = vxpose.xlu0.b32.cont [9/16] 0.0, 128
      %195 = vxpose.xlu0.b32.cont [10/16] 0.0, 128
      %196 = vxpose.xlu0.b32.cont [11/16] 0.0, 128
      %197 = vxpose.xlu0.b32.cont [12/16] 0.0, 128
      %198 = vxpose.xlu0.b32.cont [13/16] 0.0, 128
      %199 = vxpose.xlu0.b32.cont [14/16] 0.0, 128
      %200 = vxpose.xlu0.b32.cont [15/16] 0.0, 128
      %201 = vxpose.xlu0.b32.end [16/16] 0.0, 128
      %v202 = vpop.trf.xlu0
      %v203 = vpop.trf.xlu0
      %v204 = vpop.trf.xlu0
      %v205 = vpop.trf.xlu0
      %v206 = vpop.trf.xlu0
      %v207 = vpop.trf.xlu0
      %v208 = vpop.trf.xlu0
      %v209 = vpop.trf.xlu0
      %v210 = vpop.trf.xlu0
      %v211 = vpop.trf.xlu0
      %v212 = vpop.trf.xlu0
      %v213 = vpop.trf.xlu0
      %v214 = vpop.trf.xlu0
      %v215 = vpop.trf.xlu0
      %v216 = vpop.trf.xlu0
      %v217 = vpop.trf.xlu0
      %218 = vxpose.xlu0.b32.start [1/16] %v184, 128
      %219 = vxpose.xlu0.b32.cont [2/16] 0.0, 128
      %220 = vxpose.xlu0.b32.cont [3/16] 0.0, 128
      %221 = vxpose.xlu0.b32.cont [4/16] 0.0, 128
      %222 = vxpose.xlu0.b32.cont [5/16] 0.0, 128
      %223 = vxpose.xlu0.b32.cont [6/16] 0.0, 128
      %224 = vxpose.xlu0.b32.cont [7/16] 0.0, 128
      %225 = vxpose.xlu0.b32.cont [8/16] 0.0, 128
      %226 = vxpose.xlu0.b32.cont [9/16] 0.0, 128
      %227 = vxpose.xlu0.b32.cont [10/16] 0.0, 128
      %228 = vxpose.xlu0.b32.cont [11/16] 0.0, 128
      %229 = vxpose.xlu0.b32.cont [12/16] 0.0, 128
      %230 = vxpose.xlu0.b32.cont [13/16] 0.0, 128
      %231 = vxpose.xlu0.b32.cont [14/16] 0.0, 128
      %232 = vxpose.xlu0.b32.cont [15/16] 0.0, 128
      %233 = vxpose.xlu0.b32.end [16/16] 0.0, 128
      %v234 = vpop.trf.xlu0
      %v235 = vpop.trf.xlu0
      %v236 = vpop.trf.xlu0
      %v237 = vpop.trf.xlu0
      %v238 = vpop.trf.xlu0
      %v239 = vpop.trf.xlu0
      %v240 = vpop.trf.xlu0
      %v241 = vpop.trf.xlu0
      %v242 = vpop.trf.xlu0
      %v243 = vpop.trf.xlu0
      %v244 = vpop.trf.xlu0
      %v245 = vpop.trf.xlu0
      %v246 = vpop.trf.xlu0
      %v247 = vpop.trf.xlu0
      %v248 = vpop.trf.xlu0
      %v249 = vpop.trf.xlu0
      %v250 = vld [vmem:[%s1] sm:$0xff]
      %v251 = vld [vmem:[%s1 + $0x8] sm:$0xff]
      %v252 = vld [vmem:[%s1 + $0x10] sm:$0xff]
      %v253 = vld [vmem:[%s1 + $0x18] sm:$0xff]
      %v254 = vld [vmem:[%s1 + $0x20] sm:$0xf]
      %vm288 = vcmask 1040384
      %v289 = vrot.slane 0.0, 7
      %v290 = vsel %vm288, %v289, %v289
      %v291 = vrot.slane %v202, 7
      %v292 = vrot.slane %v203, 7
      %v293 = vsel %vm288, %v291, %v292
      %v294 = vrot.slane %v204, 7
      %v295 = vrot.slane %v205, 7
      %v296 = vsel %vm288, %v294, %v295
      %v297 = vrot.slane %v206, 7
      %v298 = vrot.slane %v207, 7
      %v299 = vsel %vm288, %v297, %v298
      %v300 = vrot.slane %v208, 7
      %v301 = vrot.slane %v209, 7
      %v302 = vsel %vm288, %v300, %v301
      %v303 = vrot.slane %v210, 7
      %v304 = vrot.slane %v211, 7
      %v305 = vsel %vm288, %v303, %v304
      %v306 = vrot.slane %v212, 7
      %v307 = vrot.slane %v213, 7
      %v308 = vsel %vm288, %v306, %v307
      %v309 = vrot.slane %v214, 7
      %v310 = vrot.slane %v215, 7
      %v311 = vsel %vm288, %v309, %v310
      %v312 = vrot.slane %v216, 7
      %v313 = vrot.slane %v217, 7
      %v314 = vsel %vm288, %v312, %v313
      %v315 = vrot.slane %v234, 7
      %v316 = vrot.slane %v235, 7
      %v317 = vsel %vm288, %v315, %v316
      %v318 = vrot.slane %v236, 7
      %v319 = vrot.slane %v237, 7
      %v320 = vsel %vm288, %v318, %v319
      %v321 = vrot.slane %v238, 7
      %v322 = vrot.slane %v239, 7
      %v323 = vsel %vm288, %v321, %v322
      %v324 = vrot.slane %v240, 7
      %v325 = vrot.slane %v241, 7
      %v326 = vsel %vm288, %v324, %v325
      %v327 = vrot.slane %v242, 7
      %v328 = vrot.slane %v243, 7
      %v329 = vsel %vm288, %v327, %v328
      %v330 = vrot.slane %v244, 7
      %v331 = vrot.slane %v245, 7
      %v332 = vsel %vm288, %v330, %v331
      %v333 = vrot.slane %v246, 7
      %v334 = vrot.slane %v247, 7
      %v335 = vsel %vm288, %v333, %v334
      %v336 = vrot.slane %v248, 7
      %v337 = vrot.slane %v249, 7
      %v338 = vsel %vm288, %v336, %v337
      %v388 = vsel %vm288, 0.0, %v289
      %v389 = vsel %vm288, 0.0, %v291
      %v390 = vsel %vm288, 0.0, %v294
      %v391 = vsel %vm288, 0.0, %v297
      %v392 = vsel %vm288, 0.0, %v300
      %v393 = vsel %vm288, 0.0, %v303
      %v394 = vsel %vm288, 0.0, %v306
      %v395 = vsel %vm288, 0.0, %v309
      %v396 = vsel %vm288, 0.0, %v312
      %v397 = vsel %vm288, 0.0, %v315
      %v398 = vsel %vm288, 0.0, %v318
      %v399 = vsel %vm288, 0.0, %v321
      %v400 = vsel %vm288, 0.0, %v324
      %v401 = vsel %vm288, 0.0, %v327
      %v402 = vsel %vm288, 0.0, %v330
      %v403 = vsel %vm288, 0.0, %v333
      %v404 = vsel %vm288, 0.0, %v336
      %v405 = vsel %vm288, %v289, 0.0
      %v406 = vsel %vm288, %v292, 0.0
      %v407 = vsel %vm288, %v295, 0.0
      %v408 = vsel %vm288, %v298, 0.0
      %v409 = vsel %vm288, %v301, 0.0
      %v410 = vsel %vm288, %v304, 0.0
      %v411 = vsel %vm288, %v307, 0.0
      %v412 = vsel %vm288, %v310, 0.0
      %v413 = vsel %vm288, %v313, 0.0
      %v414 = vsel %vm288, %v316, 0.0
      %v415 = vsel %vm288, %v319, 0.0
      %v416 = vsel %vm288, %v322, 0.0
      %v417 = vsel %vm288, %v325, 0.0
      %v418 = vsel %vm288, %v328, 0.0
      %v419 = vsel %vm288, %v331, 0.0
      %v420 = vsel %vm288, %v334, 0.0
      %v421 = vsel %vm288, %v337, 0.0
      %vm454 = vcmask 1046528
      %v455 = vrot.slane %v388, 1
      %v456 = vrot.slane %v290, 1
      %v457 = vsel %vm454, %v455, %v456
      %v458 = vrot.slane %v405, 1
      %v459 = vsel %vm454, %v456, %v458
      %v460 = vrot.slane %v389, 1
      %v461 = vrot.slane %v293, 1
      %v462 = vsel %vm454, %v460, %v461
      %v463 = vrot.slane %v406, 1
      %v464 = vsel %vm454, %v461, %v463
      %v465 = vrot.slane %v390, 1
      %v466 = vrot.slane %v296, 1
      %v467 = vsel %vm454, %v465, %v466
      %v468 = vrot.slane %v407, 1
      %v469 = vsel %vm454, %v466, %v468
      %v470 = vrot.slane %v391, 1
      %v471 = vrot.slane %v299, 1
      %v472 = vsel %vm454, %v470, %v471
      %v473 = vrot.slane %v408, 1
      %v474 = vsel %vm454, %v471, %v473
      %v475 = vrot.slane %v392, 1
      %v476 = vrot.slane %v302, 1
      %v477 = vsel %vm454, %v475, %v476
      %v478 = vrot.slane %v409, 1
      %v479 = vsel %vm454, %v476, %v478
      %v480 = vrot.slane %v393, 1
      %v481 = vrot.slane %v305, 1
      %v482 = vsel %vm454, %v480, %v481
      %v483 = vrot.slane %v410, 1
      %v484 = vsel %vm454, %v481, %v483
      %v485 = vrot.slane %v394, 1
      %v486 = vrot.slane %v308, 1
      %v487 = vsel %vm454, %v485, %v486
      %v488 = vrot.slane %v411, 1
      %v489 = vsel %vm454, %v486, %v488
      %v490 = vrot.slane %v395, 1
      %v491 = vrot.slane %v311, 1
      %v492 = vsel %vm454, %v490, %v491
      %v493 = vrot.slane %v412, 1
      %v494 = vsel %vm454, %v491, %v493
      %v495 = vrot.slane %v396, 1
      %v496 = vrot.slane %v314, 1
      %v497 = vsel %vm454, %v495, %v496
      %v498 = vrot.slane %v413, 1
      %v499 = vsel %vm454, %v496, %v498
      %v500 = vrot.slane %v397, 1
      %v501 = vrot.slane %v317, 1
      %v502 = vsel %vm454, %v500, %v501
      %v503 = vrot.slane %v414, 1
      %v504 = vsel %vm454, %v501, %v503
      %v505 = vrot.slane %v398, 1
      %v506 = vrot.slane %v320, 1
      %v507 = vsel %vm454, %v505, %v506
      %v508 = vrot.slane %v415, 1
      %v509 = vsel %vm454, %v506, %v508
      %v510 = vrot.slane %v399, 1
      %v511 = vrot.slane %v323, 1
      %v512 = vsel %vm454, %v510, %v511
      %v513 = vrot.slane %v416, 1
      %v514 = vsel %vm454, %v511, %v513
      %v515 = vrot.slane %v400, 1
      %v516 = vrot.slane %v326, 1
      %v517 = vsel %vm454, %v515, %v516
      %v518 = vrot.slane %v417, 1
      %v519 = vsel %vm454, %v516, %v518
      %v520 = vrot.slane %v401, 1
      %v521 = vrot.slane %v329, 1
      %v522 = vsel %vm454, %v520, %v521
      %v523 = vrot.slane %v418, 1
      %v524 = vsel %vm454, %v521, %v523
      %v525 = vrot.slane %v402, 1
      %v526 = vrot.slane %v332, 1
      %v527 = vsel %vm454, %v525, %v526
      %v528 = vrot.slane %v419, 1
      %v529 = vsel %vm454, %v526, %v528
      %v530 = vrot.slane %v403, 1
      %v531 = vrot.slane %v335, 1
      %v532 = vsel %vm454, %v530, %v531
      %v533 = vrot.slane %v420, 1
      %v534 = vsel %vm454, %v531, %v533
      %535 = vrot.lane.b32.xlu0 %v457, 4
      %v536 = vpop.permute.xlu0 %535
      %537 = vrot.lane.b32.xlu0 %v459, 4
      %v538 = vpop.permute.xlu0 %537
      %539 = vrot.lane.b32.xlu0 %v462, 4
      %v540 = vpop.permute.xlu0 %539
      %541 = vrot.lane.b32.xlu0 %v464, 4
      %v542 = vpop.permute.xlu0 %541
      %543 = vrot.lane.b32.xlu0 %v467, 4
      %v544 = vpop.permute.xlu0 %543
      %545 = vrot.lane.b32.xlu0 %v469, 4
      %v546 = vpop.permute.xlu0 %545
      %547 = vrot.lane.b32.xlu0 %v472, 4
      %v548 = vpop.permute.xlu0 %547
      %549 = vrot.lane.b32.xlu0 %v474, 4
      %v550 = vpop.permute.xlu0 %549
      %551 = vrot.lane.b32.xlu0 %v477, 4
      %v552 = vpop.permute.xlu0 %551
      %553 = vrot.lane.b32.xlu0 %v479, 4
      %v554 = vpop.permute.xlu0 %553
      %555 = vrot.lane.b32.xlu0 %v482, 4
      %v556 = vpop.permute.xlu0 %555
      %557 = vrot.lane.b32.xlu0 %v484, 4
      %v558 = vpop.permute.xlu0 %557
      %559 = vrot.lane.b32.xlu0 %v487, 4
      %v560 = vpop.permute.xlu0 %559
      %561 = vrot.lane.b32.xlu0 %v489, 4
      %v562 = vpop.permute.xlu0 %561
      %563 = vrot.lane.b32.xlu0 %v492, 4
      %v564 = vpop.permute.xlu0 %563
      %565 = vrot.lane.b32.xlu0 %v494, 4
      %v566 = vpop.permute.xlu0 %565
      %567 = vrot.lane.b32.xlu0 %v497, 4
      %v568 = vpop.permute.xlu0 %567
      %569 = vrot.lane.b32.xlu0 %v499, 4
      %v570 = vpop.permute.xlu0 %569
      %571 = vrot.lane.b32.xlu0 %v502, 4
      %v572 = vpop.permute.xlu0 %571
      %573 = vrot.lane.b32.xlu0 %v504, 4
      %v574 = vpop.permute.xlu0 %573
      %575 = vrot.lane.b32.xlu0 %v507, 4
      %v576 = vpop.permute.xlu0 %575
      %577 = vrot.lane.b32.xlu0 %v509, 4
      %v578 = vpop.permute.xlu0 %577
      %579 = vrot.lane.b32.xlu0 %v512, 4
      %v580 = vpop.permute.xlu0 %579
      %581 = vrot.lane.b32.xlu0 %v514, 4
      %v582 = vpop.permute.xlu0 %581
      %583 = vrot.lane.b32.xlu0 %v517, 4
      %v584 = vpop.permute.xlu0 %583
      %585 = vrot.lane.b32.xlu0 %v519, 4
      %v586 = vpop.permute.xlu0 %585
      %587 = vrot.lane.b32.xlu0 %v522, 4
      %v588 = vpop.permute.xlu0 %587
      %589 = vrot.lane.b32.xlu0 %v524, 4
      %v590 = vpop.permute.xlu0 %589
      %591 = vrot.lane.b32.xlu0 %v527, 4
      %v592 = vpop.permute.xlu0 %591
      %593 = vrot.lane.b32.xlu0 %v529, 4
      %v594 = vpop.permute.xlu0 %593
      %595 = vrot.lane.b32.xlu0 %v532, 4
      %v596 = vpop.permute.xlu0 %595
      %597 = vrot.lane.b32.xlu0 %v534, 4
      %v598 = vpop.permute.xlu0 %597
      %vm631 = vcmask 1045504
      %v632 = vrot.slane %v388, 2
      %v633 = vrot.slane %v290, 2
      %v634 = vsel %vm631, %v632, %v633
      %v635 = vrot.slane %v405, 2
      %v636 = vsel %vm631, %v633, %v635
      %v637 = vrot.slane %v389, 2
      %v638 = vrot.slane %v293, 2
      %v639 = vsel %vm631, %v637, %v638
      %v640 = vrot.slane %v406, 2
      %v641 = vsel %vm631, %v638, %v640
      %v642 = vrot.slane %v390, 2
      %v643 = vrot.slane %v296, 2
      %v644 = vsel %vm631, %v642, %v643
      %v645 = vrot.slane %v407, 2
      %v646 = vsel %vm631, %v643, %v645
      %v647 = vrot.slane %v391, 2
      %v648 = vrot.slane %v299, 2
      %v649 = vsel %vm631, %v647, %v648
      %v650 = vrot.slane %v408, 2
      %v651 = vsel %vm631, %v648, %v650
      %v652 = vrot.slane %v392, 2
      %v653 = vrot.slane %v302, 2
      %v654 = vsel %vm631, %v652, %v653
      %v655 = vrot.slane %v409, 2
      %v656 = vsel %vm631, %v653, %v655
      %v657 = vrot.slane %v393, 2
      %v658 = vrot.slane %v305, 2
      %v659 = vsel %vm631, %v657, %v658
      %v660 = vrot.slane %v410, 2
      %v661 = vsel %vm631, %v658, %v660
      %v662 = vrot.slane %v394, 2
      %v663 = vrot.slane %v308, 2
      %v664 = vsel %vm631, %v662, %v663
      %v665 = vrot.slane %v411, 2
      %v666 = vsel %vm631, %v663, %v665
      %v667 = vrot.slane %v395, 2
      %v668 = vrot.slane %v311, 2
      %v669 = vsel %vm631, %v667, %v668
      %v670 = vrot.slane %v412, 2
      %v671 = vsel %vm631, %v668, %v670
      %v672 = vrot.slane %v396, 2
      %v673 = vrot.slane %v314, 2
      %v674 = vsel %vm631, %v672, %v673
      %v675 = vrot.slane %v413, 2
      %v676 = vsel %vm631, %v673, %v675
      %v677 = vrot.slane %v397, 2
      %v678 = vrot.slane %v317, 2
      %v679 = vsel %vm631, %v677, %v678
      %v680 = vrot.slane %v414, 2
      %v681 = vsel %vm631, %v678, %v680
      %v682 = vrot.slane %v398, 2
      %v683 = vrot.slane %v320, 2
      %v684 = vsel %vm631, %v682, %v683
      %v685 = vrot.slane %v415, 2
      %v686 = vsel %vm631, %v683, %v685
      %v687 = vrot.slane %v399, 2
      %v688 = vrot.slane %v323, 2
      %v689 = vsel %vm631, %v687, %v688
      %v690 = vrot.slane %v416, 2
      %v691 = vsel %vm631, %v688, %v690
      %v692 = vrot.slane %v400, 2
      %v693 = vrot.slane %v326, 2
      %v694 = vsel %vm631, %v692, %v693
      %v695 = vrot.slane %v417, 2
      %v696 = vsel %vm631, %v693, %v695
      %v697 = vrot.slane %v401, 2
      %v698 = vrot.slane %v329, 2
      %v699 = vsel %vm631, %v697, %v698
      %v700 = vrot.slane %v418, 2
      %v701 = vsel %vm631, %v698, %v700
      %v702 = vrot.slane %v402, 2
      %v703 = vrot.slane %v332, 2
      %v704 = vsel %vm631, %v702, %v703
      %v705 = vrot.slane %v419, 2
      %v706 = vsel %vm631, %v703, %v705
      %v707 = vrot.slane %v403, 2
      %v708 = vrot.slane %v335, 2
      %v709 = vsel %vm631, %v707, %v708
      %v710 = vrot.slane %v420, 2
      %v711 = vsel %vm631, %v708, %v710
      %712 = vrot.lane.b32.xlu0 %v634, 8
      %v713 = vpop.permute.xlu0 %712
      %714 = vrot.lane.b32.xlu0 %v636, 8
      %v715 = vpop.permute.xlu0 %714
      %716 = vrot.lane.b32.xlu0 %v639, 8
      %v717 = vpop.permute.xlu0 %716
      %718 = vrot.lane.b32.xlu0 %v641, 8
      %v719 = vpop.permute.xlu0 %718
      %720 = vrot.lane.b32.xlu0 %v644, 8
      %v721 = vpop.permute.xlu0 %720
      %722 = vrot.lane.b32.xlu0 %v646, 8
      %v723 = vpop.permute.xlu0 %722
      %724 = vrot.lane.b32.xlu0 %v649, 8
      %v725 = vpop.permute.xlu0 %724
      %726 = vrot.lane.b32.xlu0 %v651, 8
      %v727 = vpop.permute.xlu0 %726
      %728 = vrot.lane.b32.xlu0 %v654, 8
      %v729 = vpop.permute.xlu0 %728
      %730 = vrot.lane.b32.xlu0 %v656, 8
      %v731 = vpop.permute.xlu0 %730
      %732 = vrot.lane.b32.xlu0 %v659, 8
      %v733 = vpop.permute.xlu0 %732
      %734 = vrot.lane.b32.xlu0 %v661, 8
      %v735 = vpop.permute.xlu0 %734
      %736 = vrot.lane.b32.xlu0 %v664, 8
      %v737 = vpop.permute.xlu0 %736
      %738 = vrot.lane.b32.xlu0 %v666, 8
      %v739 = vpop.permute.xlu0 %738
      %740 = vrot.lane.b32.xlu0 %v669, 8
      %v741 = vpop.permute.xlu0 %740
      %742 = vrot.lane.b32.xlu0 %v671, 8
      %v743 = vpop.permute.xlu0 %742
      %744 = vrot.lane.b32.xlu0 %v674, 8
      %v745 = vpop.permute.xlu0 %744
      %746 = vrot.lane.b32.xlu0 %v676, 8
      %v747 = vpop.permute.xlu0 %746
      %748 = vrot.lane.b32.xlu0 %v679, 8
      %v749 = vpop.permute.xlu0 %748
      %750 = vrot.lane.b32.xlu0 %v681, 8
      %v751 = vpop.permute.xlu0 %750
      %752 = vrot.lane.b32.xlu0 %v684, 8
      %v753 = vpop.permute.xlu0 %752
      %754 = vrot.lane.b32.xlu0 %v686, 8
      %v755 = vpop.permute.xlu0 %754
      %756 = vrot.lane.b32.xlu0 %v689, 8
      %v757 = vpop.permute.xlu0 %756
      %758 = vrot.lane.b32.xlu0 %v691, 8
      %v759 = vpop.permute.xlu0 %758
      %760 = vrot.lane.b32.xlu0 %v694, 8
      %v761 = vpop.permute.xlu0 %760
      %762 = vrot.lane.b32.xlu0 %v696, 8
      %v763 = vpop.permute.xlu0 %762
      %764 = vrot.lane.b32.xlu0 %v699, 8
      %v765 = vpop.permute.xlu0 %764
      %766 = vrot.lane.b32.xlu0 %v701, 8
      %v767 = vpop.permute.xlu0 %766
      %768 = vrot.lane.b32.xlu0 %v704, 8
      %v769 = vpop.permute.xlu0 %768
      %770 = vrot.lane.b32.xlu0 %v706, 8
      %v771 = vpop.permute.xlu0 %770
      %772 = vrot.lane.b32.xlu0 %v709, 8
      %v773 = vpop.permute.xlu0 %772
      %774 = vrot.lane.b32.xlu0 %v711, 8
      %v775 = vpop.permute.xlu0 %774
      %809 = vrot.lane.b32.xlu0 %v389, 12
      %v810 = vpop.permute.xlu0 %809
      %811 = vrot.lane.b32.xlu0 %v293, 12
      %v812 = vpop.permute.xlu0 %811
      %813 = vrot.lane.b32.xlu0 %v390, 12
      %v814 = vpop.permute.xlu0 %813
      %815 = vrot.lane.b32.xlu0 %v296, 12
      %v816 = vpop.permute.xlu0 %815
      %817 = vrot.lane.b32.xlu0 %v391, 12
      %v818 = vpop.permute.xlu0 %817
      %819 = vrot.lane.b32.xlu0 %v299, 12
      %v820 = vpop.permute.xlu0 %819
      %821 = vrot.lane.b32.xlu0 %v392, 12
      %v822 = vpop.permute.xlu0 %821
      %823 = vrot.lane.b32.xlu0 %v302, 12
      %v824 = vpop.permute.xlu0 %823
      %825 = vrot.lane.b32.xlu0 %v393, 12
      %v826 = vpop.permute.xlu0 %825
      %827 = vrot.lane.b32.xlu0 %v305, 12
      %v828 = vpop.permute.xlu0 %827
      %829 = vrot.lane.b32.xlu0 %v394, 12
      %v830 = vpop.permute.xlu0 %829
      %831 = vrot.lane.b32.xlu0 %v308, 12
      %v832 = vpop.permute.xlu0 %831
      %833 = vrot.lane.b32.xlu0 %v395, 12
      %v834 = vpop.permute.xlu0 %833
      %835 = vrot.lane.b32.xlu0 %v311, 12
      %v836 = vpop.permute.xlu0 %835
      %837 = vrot.lane.b32.xlu0 %v396, 12
      %v838 = vpop.permute.xlu0 %837
      %839 = vrot.lane.b32.xlu0 %v314, 12
      %v840 = vpop.permute.xlu0 %839
      %841 = vrot.lane.b32.xlu0 %v397, 12
      %v842 = vpop.permute.xlu0 %841
      %843 = vrot.lane.b32.xlu0 %v317, 12
      %v844 = vpop.permute.xlu0 %843
      %845 = vrot.lane.b32.xlu0 %v398, 12
      %v846 = vpop.permute.xlu0 %845
      %847 = vrot.lane.b32.xlu0 %v320, 12
      %v848 = vpop.permute.xlu0 %847
      %849 = vrot.lane.b32.xlu0 %v399, 12
      %v850 = vpop.permute.xlu0 %849
      %851 = vrot.lane.b32.xlu0 %v323, 12
      %v852 = vpop.permute.xlu0 %851
      %853 = vrot.lane.b32.xlu0 %v400, 12
      %v854 = vpop.permute.xlu0 %853
      %855 = vrot.lane.b32.xlu0 %v326, 12
      %v856 = vpop.permute.xlu0 %855
      %857 = vrot.lane.b32.xlu0 %v401, 12
      %v858 = vpop.permute.xlu0 %857
      %859 = vrot.lane.b32.xlu0 %v329, 12
      %v860 = vpop.permute.xlu0 %859
      %861 = vrot.lane.b32.xlu0 %v402, 12
      %v862 = vpop.permute.xlu0 %861
      %863 = vrot.lane.b32.xlu0 %v332, 12
      %v864 = vpop.permute.xlu0 %863
      %865 = vrot.lane.b32.xlu0 %v403, 12
      %v866 = vpop.permute.xlu0 %865
      %867 = vrot.lane.b32.xlu0 %v335, 12
      %v868 = vpop.permute.xlu0 %867
      %869 = vrot.lane.b32.xlu0 %v404, 12
      %v870 = vpop.permute.xlu0 %869
      %871 = vrot.lane.b32.xlu0 %v338, 12
      %v872 = vpop.permute.xlu0 %871
      %v906 = vrot.slane %v404, 1
      %v907 = vrot.slane %v338, 1
      %v908 = vsel %vm454, %v906, %v907
      %v909 = vrot.slane %v421, 1
      %v910 = vsel %vm454, %v907, %v909
      %911 = vrot.lane.b32.xlu0 %v462, 16
      %v912 = vpop.permute.xlu0 %911
      %913 = vrot.lane.b32.xlu0 %v464, 16
      %v914 = vpop.permute.xlu0 %913
      %915 = vrot.lane.b32.xlu0 %v467, 16
      %v916 = vpop.permute.xlu0 %915
      %917 = vrot.lane.b32.xlu0 %v469, 16
      %v918 = vpop.permute.xlu0 %917
      %919 = vrot.lane.b32.xlu0 %v472, 16
      %v920 = vpop.permute.xlu0 %919
      %921 = vrot.lane.b32.xlu0 %v474, 16
      %v922 = vpop.permute.xlu0 %921
      %923 = vrot.lane.b32.xlu0 %v477, 16
      %v924 = vpop.permute.xlu0 %923
      %925 = vrot.lane.b32.xlu0 %v479, 16
      %v926 = vpop.permute.xlu0 %925
      %927 = vrot.lane.b32.xlu0 %v482, 16
      %v928 = vpop.permute.xlu0 %927
      %929 = vrot.lane.b32.xlu0 %v484, 16
      %v930 = vpop.permute.xlu0 %929
      %931 = vrot.lane.b32.xlu0 %v487, 16
      %v932 = vpop.permute.xlu0 %931
      %933 = vrot.lane.b32.xlu0 %v489, 16
      %v934 = vpop.permute.xlu0 %933
      %935 = vrot.lane.b32.xlu0 %v492, 16
      %v936 = vpop.permute.xlu0 %935
      %937 = vrot.lane.b32.xlu0 %v494, 16
      %v938 = vpop.permute.xlu0 %937
      %939 = vrot.lane.b32.xlu0 %v497, 16
      %v940 = vpop.permute.xlu0 %939
      %941 = vrot.lane.b32.xlu0 %v499, 16
      %v942 = vpop.permute.xlu0 %941
      %943 = vrot.lane.b32.xlu0 %v502, 16
      %v944 = vpop.permute.xlu0 %943
      %945 = vrot.lane.b32.xlu0 %v504, 16
      %v946 = vpop.permute.xlu0 %945
      %947 = vrot.lane.b32.xlu0 %v507, 16
      %v948 = vpop.permute.xlu0 %947
      %949 = vrot.lane.b32.xlu0 %v509, 16
      %v950 = vpop.permute.xlu0 %949
      %951 = vrot.lane.b32.xlu0 %v512, 16
      %v952 = vpop.permute.xlu0 %951
      %953 = vrot.lane.b32.xlu0 %v514, 16
      %v954 = vpop.permute.xlu0 %953
      %955 = vrot.lane.b32.xlu0 %v517, 16
      %v956 = vpop.permute.xlu0 %955
      %957 = vrot.lane.b32.xlu0 %v519, 16
      %v958 = vpop.permute.xlu0 %957
      %959 = vrot.lane.b32.xlu0 %v522, 16
      %v960 = vpop.permute.xlu0 %959
      %961 = vrot.lane.b32.xlu0 %v524, 16
      %v962 = vpop.permute.xlu0 %961
      %963 = vrot.lane.b32.xlu0 %v527, 16
      %v964 = vpop.permute.xlu0 %963
      %965 = vrot.lane.b32.xlu0 %v529, 16
      %v966 = vpop.permute.xlu0 %965
      %967 = vrot.lane.b32.xlu0 %v532, 16
      %v968 = vpop.permute.xlu0 %967
      %969 = vrot.lane.b32.xlu0 %v534, 16
      %v970 = vpop.permute.xlu0 %969
      %971 = vrot.lane.b32.xlu0 %v908, 16
      %v972 = vpop.permute.xlu0 %971
      %973 = vrot.lane.b32.xlu0 %v910, 16
      %v974 = vpop.permute.xlu0 %973
      %v1007 = vrot.slane %v404, 2
      %v1008 = vrot.slane %v338, 2
      %v1009 = vsel %vm631, %v1007, %v1008
      %v1010 = vrot.slane %v421, 2
      %v1011 = vsel %vm631, %v1008, %v1010
      %1012 = vrot.lane.b32.xlu0 %v639, 20
      %v1013 = vpop.permute.xlu0 %1012
      %1014 = vrot.lane.b32.xlu0 %v641, 20
      %v1015 = vpop.permute.xlu0 %1014
      %1016 = vrot.lane.b32.xlu0 %v644, 20
      %v1017 = vpop.permute.xlu0 %1016
      %1018 = vrot.lane.b32.xlu0 %v646, 20
      %v1019 = vpop.permute.xlu0 %1018
      %1020 = vrot.lane.b32.xlu0 %v649, 20
      %v1021 = vpop.permute.xlu0 %1020
      %1022 = vrot.lane.b32.xlu0 %v651, 20
      %v1023 = vpop.permute.xlu0 %1022
      %1024 = vrot.lane.b32.xlu0 %v654, 20
      %v1025 = vpop.permute.xlu0 %1024
      %1026 = vrot.lane.b32.xlu0 %v656, 20
      %v1027 = vpop.permute.xlu0 %1026
      %1028 = vrot.lane.b32.xlu0 %v659, 20
      %v1029 = vpop.permute.xlu0 %1028
      %1030 = vrot.lane.b32.xlu0 %v661, 20
      %v1031 = vpop.permute.xlu0 %1030
      %1032 = vrot.lane.b32.xlu0 %v664, 20
      %v1033 = vpop.permute.xlu0 %1032
      %1034 = vrot.lane.b32.xlu0 %v666, 20
      %v1035 = vpop.permute.xlu0 %1034
      %1036 = vrot.lane.b32.xlu0 %v669, 20
      %v1037 = vpop.permute.xlu0 %1036
      %1038 = vrot.lane.b32.xlu0 %v671, 20
      %v1039 = vpop.permute.xlu0 %1038
      %1040 = vrot.lane.b32.xlu0 %v674, 20
      %v1041 = vpop.permute.xlu0 %1040
      %1042 = vrot.lane.b32.xlu0 %v676, 20
      %v1043 = vpop.permute.xlu0 %1042
      %1044 = vrot.lane.b32.xlu0 %v679, 20
      %v1045 = vpop.permute.xlu0 %1044
      %1046 = vrot.lane.b32.xlu0 %v681, 20
      %v1047 = vpop.permute.xlu0 %1046
      %1048 = vrot.lane.b32.xlu0 %v684, 20
      %v1049 = vpop.permute.xlu0 %1048
      %1050 = vrot.lane.b32.xlu0 %v686, 20
      %v1051 = vpop.permute.xlu0 %1050
      %1052 = vrot.lane.b32.xlu0 %v689, 20
      %v1053 = vpop.permute.xlu0 %1052
      %1054 = vrot.lane.b32.xlu0 %v691, 20
      %v1055 = vpop.permute.xlu0 %1054
      %1056 = vrot.lane.b32.xlu0 %v694, 20
      %v1057 = vpop.permute.xlu0 %1056
      %1058 = vrot.lane.b32.xlu0 %v696, 20
      %v1059 = vpop.permute.xlu0 %1058
      %1060 = vrot.lane.b32.xlu0 %v699, 20
      %v1061 = vpop.permute.xlu0 %1060
      %1062 = vrot.lane.b32.xlu0 %v701, 20
      %v1063 = vpop.permute.xlu0 %1062
      %1064 = vrot.lane.b32.xlu0 %v704, 20
      %v1065 = vpop.permute.xlu0 %1064
      %1066 = vrot.lane.b32.xlu0 %v706, 20
      %v1067 = vpop.permute.xlu0 %1066
      %1068 = vrot.lane.b32.xlu0 %v709, 20
      %v1069 = vpop.permute.xlu0 %1068
      %1070 = vrot.lane.b32.xlu0 %v711, 20
      %v1071 = vpop.permute.xlu0 %1070
      %1072 = vrot.lane.b32.xlu0 %v1009, 20
      %v1073 = vpop.permute.xlu0 %1072
      %1074 = vrot.lane.b32.xlu0 %v1011, 20
      %v1075 = vpop.permute.xlu0 %1074
      %1108 = vrot.lane.b32.xlu0 %v390, 24
      %v1109 = vpop.permute.xlu0 %1108
      %1110 = vrot.lane.b32.xlu0 %v296, 24
      %v1111 = vpop.permute.xlu0 %1110
      %1112 = vrot.lane.b32.xlu0 %v391, 24
      %v1113 = vpop.permute.xlu0 %1112
      %1114 = vrot.lane.b32.xlu0 %v299, 24
      %v1115 = vpop.permute.xlu0 %1114
      %1116 = vrot.lane.b32.xlu0 %v392, 24
      %v1117 = vpop.permute.xlu0 %1116
      %1118 = vrot.lane.b32.xlu0 %v302, 24
      %v1119 = vpop.permute.xlu0 %1118
      %1120 = vrot.lane.b32.xlu0 %v393, 24
      %v1121 = vpop.permute.xlu0 %1120
      %1122 = vrot.lane.b32.xlu0 %v305, 24
      %v1123 = vpop.permute.xlu0 %1122
      %1124 = vrot.lane.b32.xlu0 %v394, 24
      %v1125 = vpop.permute.xlu0 %1124
      %1126 = vrot.lane.b32.xlu0 %v308, 24
      %v1127 = vpop.permute.xlu0 %1126
      %1128 = vrot.lane.b32.xlu0 %v395, 24
      %v1129 = vpop.permute.xlu0 %1128
      %1130 = vrot.lane.b32.xlu0 %v311, 24
      %v1131 = vpop.permute.xlu0 %1130
      %1132 = vrot.lane.b32.xlu0 %v396, 24
      %v1133 = vpop.permute.xlu0 %1132
      %1134 = vrot.lane.b32.xlu0 %v314, 24
      %v1135 = vpop.permute.xlu0 %1134
      %1136 = vrot.lane.b32.xlu0 %v397, 24
      %v1137 = vpop.permute.xlu0 %1136
      %1138 = vrot.lane.b32.xlu0 %v317, 24
      %v1139 = vpop.permute.xlu0 %1138
      %1140 = vrot.lane.b32.xlu0 %v398, 24
      %v1141 = vpop.permute.xlu0 %1140
      %1142 = vrot.lane.b32.xlu0 %v320, 24
      %v1143 = vpop.permute.xlu0 %1142
      %1144 = vrot.lane.b32.xlu0 %v399, 24
      %v1145 = vpop.permute.xlu0 %1144
      %1146 = vrot.lane.b32.xlu0 %v323, 24
      %v1147 = vpop.permute.xlu0 %1146
      %1148 = vrot.lane.b32.xlu0 %v400, 24
      %v1149 = vpop.permute.xlu0 %1148
      %1150 = vrot.lane.b32.xlu0 %v326, 24
      %v1151 = vpop.permute.xlu0 %1150
      %1152 = vrot.lane.b32.xlu0 %v401, 24
      %v1153 = vpop.permute.xlu0 %1152
      %1154 = vrot.lane.b32.xlu0 %v329, 24
      %v1155 = vpop.permute.xlu0 %1154
      %1156 = vrot.lane.b32.xlu0 %v402, 24
      %v1157 = vpop.permute.xlu0 %1156
      %1158 = vrot.lane.b32.xlu0 %v332, 24
      %v1159 = vpop.permute.xlu0 %1158
      %1160 = vrot.lane.b32.xlu0 %v403, 24
      %v1161 = vpop.permute.xlu0 %1160
      %1162 = vrot.lane.b32.xlu0 %v335, 24
      %v1163 = vpop.permute.xlu0 %1162
      %1164 = vrot.lane.b32.xlu0 %v404, 24
      %v1165 = vpop.permute.xlu0 %1164
      %1166 = vrot.lane.b32.xlu0 %v338, 24
      %v1167 = vpop.permute.xlu0 %1166
      %1168 = vrot.lane.b32.xlu0 %v388, 24
      %v1169 = vpop.permute.xlu0 %1168
      %1170 = vrot.lane.b32.xlu0 %v290, 24
      %v1171 = vpop.permute.xlu0 %1170
      %1204 = vrot.lane.b32.xlu0 %v467, 28
      %v1205 = vpop.permute.xlu0 %1204
      %1206 = vrot.lane.b32.xlu0 %v469, 28
      %v1207 = vpop.permute.xlu0 %1206
      %1208 = vrot.lane.b32.xlu0 %v472, 28
      %v1209 = vpop.permute.xlu0 %1208
      %1210 = vrot.lane.b32.xlu0 %v474, 28
      %v1211 = vpop.permute.xlu0 %1210
      %1212 = vrot.lane.b32.xlu0 %v477, 28
      %v1213 = vpop.permute.xlu0 %1212
      %1214 = vrot.lane.b32.xlu0 %v479, 28
      %v1215 = vpop.permute.xlu0 %1214
      %1216 = vrot.lane.b32.xlu0 %v482, 28
      %v1217 = vpop.permute.xlu0 %1216
      %1218 = vrot.lane.b32.xlu0 %v484, 28
      %v1219 = vpop.permute.xlu0 %1218
      %1220 = vrot.lane.b32.xlu0 %v487, 28
      %v1221 = vpop.permute.xlu0 %1220
      %1222 = vrot.lane.b32.xlu0 %v489, 28
      %v1223 = vpop.permute.xlu0 %1222
      %1224 = vrot.lane.b32.xlu0 %v492, 28
      %v1225 = vpop.permute.xlu0 %1224
      %1226 = vrot.lane.b32.xlu0 %v494, 28
      %v1227 = vpop.permute.xlu0 %1226
      %1228 = vrot.lane.b32.xlu0 %v497, 28
      %v1229 = vpop.permute.xlu0 %1228
      %1230 = vrot.lane.b32.xlu0 %v499, 28
      %v1231 = vpop.permute.xlu0 %1230
      %1232 = vrot.lane.b32.xlu0 %v502, 28
      %v1233 = vpop.permute.xlu0 %1232
      %1234 = vrot.lane.b32.xlu0 %v504, 28
      %v1235 = vpop.permute.xlu0 %1234
      %1236 = vrot.lane.b32.xlu0 %v507, 28
      %v1237 = vpop.permute.xlu0 %1236
      %1238 = vrot.lane.b32.xlu0 %v509, 28
      %v1239 = vpop.permute.xlu0 %1238
      %1240 = vrot.lane.b32.xlu0 %v512, 28
      %v1241 = vpop.permute.xlu0 %1240
      %1242 = vrot.lane.b32.xlu0 %v514, 28
      %v1243 = vpop.permute.xlu0 %1242
      %1244 = vrot.lane.b32.xlu0 %v517, 28
      %v1245 = vpop.permute.xlu0 %1244
      %1246 = vrot.lane.b32.xlu0 %v519, 28
      %v1247 = vpop.permute.xlu0 %1246
      %1248 = vrot.lane.b32.xlu0 %v522, 28
      %v1249 = vpop.permute.xlu0 %1248
      %1250 = vrot.lane.b32.xlu0 %v524, 28
      %v1251 = vpop.permute.xlu0 %1250
      %1252 = vrot.lane.b32.xlu0 %v527, 28
      %v1253 = vpop.permute.xlu0 %1252
      %1254 = vrot.lane.b32.xlu0 %v529, 28
      %v1255 = vpop.permute.xlu0 %1254
      %1256 = vrot.lane.b32.xlu0 %v532, 28
      %v1257 = vpop.permute.xlu0 %1256
      %1258 = vrot.lane.b32.xlu0 %v534, 28
      %v1259 = vpop.permute.xlu0 %1258
      %1260 = vrot.lane.b32.xlu0 %v908, 28
      %v1261 = vpop.permute.xlu0 %1260
      %1262 = vrot.lane.b32.xlu0 %v910, 28
      %v1263 = vpop.permute.xlu0 %1262
      %1264 = vrot.lane.b32.xlu0 %v457, 28
      %v1265 = vpop.permute.xlu0 %1264
      %1266 = vrot.lane.b32.xlu0 %v459, 28
      %v1267 = vpop.permute.xlu0 %1266
      %1300 = vrot.lane.b32.xlu0 %v644, 32
      %v1301 = vpop.permute.xlu0 %1300
      %1302 = vrot.lane.b32.xlu0 %v646, 32
      %v1303 = vpop.permute.xlu0 %1302
      %1304 = vrot.lane.b32.xlu0 %v649, 32
      %v1305 = vpop.permute.xlu0 %1304
      %1306 = vrot.lane.b32.xlu0 %v651, 32
      %v1307 = vpop.permute.xlu0 %1306
      %1308 = vrot.lane.b32.xlu0 %v654, 32
      %v1309 = vpop.permute.xlu0 %1308
      %1310 = vrot.lane.b32.xlu0 %v656, 32
      %v1311 = vpop.permute.xlu0 %1310
      %1312 = vrot.lane.b32.xlu0 %v659, 32
      %v1313 = vpop.permute.xlu0 %1312
      %1314 = vrot.lane.b32.xlu0 %v661, 32
      %v1315 = vpop.permute.xlu0 %1314
      %1316 = vrot.lane.b32.xlu0 %v664, 32
      %v1317 = vpop.permute.xlu0 %1316
      %1318 = vrot.lane.b32.xlu0 %v666, 32
      %v1319 = vpop.permute.xlu0 %1318
      %1320 = vrot.lane.b32.xlu0 %v669, 32
      %v1321 = vpop.permute.xlu0 %1320
      %1322 = vrot.lane.b32.xlu0 %v671, 32
      %v1323 = vpop.permute.xlu0 %1322
      %1324 = vrot.lane.b32.xlu0 %v674, 32
      %v1325 = vpop.permute.xlu0 %1324
      %1326 = vrot.lane.b32.xlu0 %v676, 32
      %v1327 = vpop.permute.xlu0 %1326
      %1328 = vrot.lane.b32.xlu0 %v679, 32
      %v1329 = vpop.permute.xlu0 %1328
      %1330 = vrot.lane.b32.xlu0 %v681, 32
      %v1331 = vpop.permute.xlu0 %1330
      %1332 = vrot.lane.b32.xlu0 %v684, 32
      %v1333 = vpop.permute.xlu0 %1332
      %1334 = vrot.lane.b32.xlu0 %v686, 32
      %v1335 = vpop.permute.xlu0 %1334
      %1336 = vrot.lane.b32.xlu0 %v689, 32
      %v1337 = vpop.permute.xlu0 %1336
      %1338 = vrot.lane.b32.xlu0 %v691, 32
      %v1339 = vpop.permute.xlu0 %1338
      %1340 = vrot.lane.b32.xlu0 %v694, 32
      %v1341 = vpop.permute.xlu0 %1340
      %1342 = vrot.lane.b32.xlu0 %v696, 32
      %v1343 = vpop.permute.xlu0 %1342
      %1344 = vrot.lane.b32.xlu0 %v699, 32
      %v1345 = vpop.permute.xlu0 %1344
      %1346 = vrot.lane.b32.xlu0 %v701, 32
      %v1347 = vpop.permute.xlu0 %1346
      %1348 = vrot.lane.b32.xlu0 %v704, 32
      %v1349 = vpop.permute.xlu0 %1348
      %1350 = vrot.lane.b32.xlu0 %v706, 32
      %v1351 = vpop.permute.xlu0 %1350
      %1352 = vrot.lane.b32.xlu0 %v709, 32
      %v1353 = vpop.permute.xlu0 %1352
      %1354 = vrot.lane.b32.xlu0 %v711, 32
      %v1355 = vpop.permute.xlu0 %1354
      %1356 = vrot.lane.b32.xlu0 %v1009, 32
      %v1357 = vpop.permute.xlu0 %1356
      %1358 = vrot.lane.b32.xlu0 %v1011, 32
      %v1359 = vpop.permute.xlu0 %1358
      %1360 = vrot.lane.b32.xlu0 %v634, 32
      %v1361 = vpop.permute.xlu0 %1360
      %1362 = vrot.lane.b32.xlu0 %v636, 32
      %v1363 = vpop.permute.xlu0 %1362
      %vm1396 = vcmask 31744
      %v1397 = vsel %vm1396, %v388, %v536
      %v1398 = vsel %vm1396, %v290, %v538
      %v1399 = vsel %vm1396, %v389, %v540
      %v1400 = vsel %vm1396, %v293, %v542
      %v1401 = vsel %vm1396, %v390, %v544
      %v1402 = vsel %vm1396, %v296, %v546
      %v1403 = vsel %vm1396, %v391, %v548
      %v1404 = vsel %vm1396, %v299, %v550
      %v1405 = vsel %vm1396, %v392, %v552
      %v1406 = vsel %vm1396, %v302, %v554
      %v1407 = vsel %vm1396, %v393, %v556
      %v1408 = vsel %vm1396, %v305, %v558
      %v1409 = vsel %vm1396, %v394, %v560
      %v1410 = vsel %vm1396, %v308, %v562
      %v1411 = vsel %vm1396, %v395, %v564
      %v1412 = vsel %vm1396, %v311, %v566
      %v1413 = vsel %vm1396, %v396, %v568
      %v1414 = vsel %vm1396, %v314, %v570
      %v1415 = vsel %vm1396, %v397, %v572
      %v1416 = vsel %vm1396, %v317, %v574
      %v1417 = vsel %vm1396, %v398, %v576
      %v1418 = vsel %vm1396, %v320, %v578
      %v1419 = vsel %vm1396, %v399, %v580
      %v1420 = vsel %vm1396, %v323, %v582
      %v1421 = vsel %vm1396, %v400, %v584
      %v1422 = vsel %vm1396, %v326, %v586
      %v1423 = vsel %vm1396, %v401, %v588
      %v1424 = vsel %vm1396, %v329, %v590
      %v1425 = vsel %vm1396, %v402, %v592
      %v1426 = vsel %vm1396, %v332, %v594
      %v1427 = vsel %vm1396, %v403, %v596
      %v1428 = vsel %vm1396, %v335, %v598
      %vm1429 = vcmask 64512
      %v1430 = vsel %vm1429, %v1397, %v713
      %v1431 = vsel %vm1429, %v1398, %v715
      %v1432 = vsel %vm1429, %v1399, %v717
      %v1433 = vsel %vm1429, %v1400, %v719
      %v1434 = vsel %vm1429, %v1401, %v721
      %v1435 = vsel %vm1429, %v1402, %v723
      %v1436 = vsel %vm1429, %v1403, %v725
      %v1437 = vsel %vm1429, %v1404, %v727
      %v1438 = vsel %vm1429, %v1405, %v729
      %v1439 = vsel %vm1429, %v1406, %v731
      %v1440 = vsel %vm1429, %v1407, %v733
      %v1441 = vsel %vm1429, %v1408, %v735
      %v1442 = vsel %vm1429, %v1409, %v737
      %v1443 = vsel %vm1429, %v1410, %v739
      %v1444 = vsel %vm1429, %v1411, %v741
      %v1445 = vsel %vm1429, %v1412, %v743
      %v1446 = vsel %vm1429, %v1413, %v745
      %v1447 = vsel %vm1429, %v1414, %v747
      %v1448 = vsel %vm1429, %v1415, %v749
      %v1449 = vsel %vm1429, %v1416, %v751
      %v1450 = vsel %vm1429, %v1417, %v753
      %v1451 = vsel %vm1429, %v1418, %v755
      %v1452 = vsel %vm1429, %v1419, %v757
      %v1453 = vsel %vm1429, %v1420, %v759
      %v1454 = vsel %vm1429, %v1421, %v761
      %v1455 = vsel %vm1429, %v1422, %v763
      %v1456 = vsel %vm1429, %v1423, %v765
      %v1457 = vsel %vm1429, %v1424, %v767
      %v1458 = vsel %vm1429, %v1425, %v769
      %v1459 = vsel %vm1429, %v1426, %v771
      %v1460 = vsel %vm1429, %v1427, %v773
      %v1461 = vsel %vm1429, %v1428, %v775
      %vm1462 = vcmask 97280
      %v1463 = vsel %vm1462, %v1430, %v810
      %v1464 = vsel %vm1462, %v1431, %v812
      %v1465 = vsel %vm1462, %v1432, %v814
      %v1466 = vsel %vm1462, %v1433, %v816
      %v1467 = vsel %vm1462, %v1434, %v818
      %v1468 = vsel %vm1462, %v1435, %v820
      %v1469 = vsel %vm1462, %v1436, %v822
      %v1470 = vsel %vm1462, %v1437, %v824
      %v1471 = vsel %vm1462, %v1438, %v826
      %v1472 = vsel %vm1462, %v1439, %v828
      %v1473 = vsel %vm1462, %v1440, %v830
      %v1474 = vsel %vm1462, %v1441, %v832
      %v1475 = vsel %vm1462, %v1442, %v834
      %v1476 = vsel %vm1462, %v1443, %v836
      %v1477 = vsel %vm1462, %v1444, %v838
      %v1478 = vsel %vm1462, %v1445, %v840
      %v1479 = vsel %vm1462, %v1446, %v842
      %v1480 = vsel %vm1462, %v1447, %v844
      %v1481 = vsel %vm1462, %v1448, %v846
      %v1482 = vsel %vm1462, %v1449, %v848
      %v1483 = vsel %vm1462, %v1450, %v850
      %v1484 = vsel %vm1462, %v1451, %v852
      %v1485 = vsel %vm1462, %v1452, %v854
      %v1486 = vsel %vm1462, %v1453, %v856
      %v1487 = vsel %vm1462, %v1454, %v858
      %v1488 = vsel %vm1462, %v1455, %v860
      %v1489 = vsel %vm1462, %v1456, %v862
      %v1490 = vsel %vm1462, %v1457, %v864
      %v1491 = vsel %vm1462, %v1458, %v866
      %v1492 = vsel %vm1462, %v1459, %v868
      %v1493 = vsel %vm1462, %v1460, %v870
      %v1494 = vsel %vm1462, %v1461, %v872
      %vm1495 = vcmask 130048
      %v1496 = vsel %vm1495, %v1463, %v912
      %v1497 = vsel %vm1495, %v1464, %v914
      %v1498 = vsel %vm1495, %v1465, %v916
      %v1499 = vsel %vm1495, %v1466, %v918
      %v1500 = vsel %vm1495, %v1467, %v920
      %v1501 = vsel %vm1495, %v1468, %v922
      %v1502 = vsel %vm1495, %v1469, %v924
      %v1503 = vsel %vm1495, %v1470, %v926
      %v1504 = vsel %vm1495, %v1471, %v928
      %v1505 = vsel %vm1495, %v1472, %v930
      %v1506 = vsel %vm1495, %v1473, %v932
      %v1507 = vsel %vm1495, %v1474, %v934
      %v1508 = vsel %vm1495, %v1475, %v936
      %v1509 = vsel %vm1495, %v1476, %v938
      %v1510 = vsel %vm1495, %v1477, %v940
      %v1511 = vsel %vm1495, %v1478, %v942
      %v1512 = vsel %vm1495, %v1479, %v944
      %v1513 = vsel %vm1495, %v1480, %v946
      %v1514 = vsel %vm1495, %v1481, %v948
      %v1515 = vsel %vm1495, %v1482, %v950
      %v1516 = vsel %vm1495, %v1483, %v952
      %v1517 = vsel %vm1495, %v1484, %v954
      %v1518 = vsel %vm1495, %v1485, %v956
      %v1519 = vsel %vm1495, %v1486, %v958
      %v1520 = vsel %vm1495, %v1487, %v960
      %v1521 = vsel %vm1495, %v1488, %v962
      %v1522 = vsel %vm1495, %v1489, %v964
      %v1523 = vsel %vm1495, %v1490, %v966
      %v1524 = vsel %vm1495, %v1491, %v968
      %v1525 = vsel %vm1495, %v1492, %v970
      %v1526 = vsel %vm1495, %v1493, %v972
      %v1527 = vsel %vm1495, %v1494, %v974
      %vm1528 = vcmask 162816
      %v1529 = vsel %vm1528, %v1496, %v1013
      %v1530 = vsel %vm1528, %v1497, %v1015
      %v1531 = vsel %vm1528, %v1498, %v1017
      %v1532 = vsel %vm1528, %v1499, %v1019
      %v1533 = vsel %vm1528, %v1500, %v1021
      %v1534 = vsel %vm1528, %v1501, %v1023
      %v1535 = vsel %vm1528, %v1502, %v1025
      %v1536 = vsel %vm1528, %v1503, %v1027
      %v1537 = vsel %vm1528, %v1504, %v1029
      %v1538 = vsel %vm1528, %v1505, %v1031
      %v1539 = vsel %vm1528, %v1506, %v1033
      %v1540 = vsel %vm1528, %v1507, %v1035
      %v1541 = vsel %vm1528, %v1508, %v1037
      %v1542 = vsel %vm1528, %v1509, %v1039
      %v1543 = vsel %vm1528, %v1510, %v1041
      %v1544 = vsel %vm1528, %v1511, %v1043
      %v1545 = vsel %vm1528, %v1512, %v1045
      %v1546 = vsel %vm1528, %v1513, %v1047
      %v1547 = vsel %vm1528, %v1514, %v1049
      %v1548 = vsel %vm1528, %v1515, %v1051
      %v1549 = vsel %vm1528, %v1516, %v1053
      %v1550 = vsel %vm1528, %v1517, %v1055
      %v1551 = vsel %vm1528, %v1518, %v1057
      %v1552 = vsel %vm1528, %v1519, %v1059
      %v1553 = vsel %vm1528, %v1520, %v1061
      %v1554 = vsel %vm1528, %v1521, %v1063
      %v1555 = vsel %vm1528, %v1522, %v1065
      %v1556 = vsel %vm1528, %v1523, %v1067
      %v1557 = vsel %vm1528, %v1524, %v1069
      %v1558 = vsel %vm1528, %v1525, %v1071
      %v1559 = vsel %vm1528, %v1526, %v1073
      %v1560 = vsel %vm1528, %v1527, %v1075
      %vm1561 = vcmask 195584
      %v1562 = vsel %vm1561, %v1529, %v1109
      %v1563 = vsel %vm1561, %v1530, %v1111
      %v1564 = vsel %vm1561, %v1531, %v1113
      %v1565 = vsel %vm1561, %v1532, %v1115
      %v1566 = vsel %vm1561, %v1533, %v1117
      %v1567 = vsel %vm1561, %v1534, %v1119
      %v1568 = vsel %vm1561, %v1535, %v1121
      %v1569 = vsel %vm1561, %v1536, %v1123
      %v1570 = vsel %vm1561, %v1537, %v1125
      %v1571 = vsel %vm1561, %v1538, %v1127
      %v1572 = vsel %vm1561, %v1539, %v1129
      %v1573 = vsel %vm1561, %v1540, %v1131
      %v1574 = vsel %vm1561, %v1541, %v1133
      %v1575 = vsel %vm1561, %v1542, %v1135
      %v1576 = vsel %vm1561, %v1543, %v1137
      %v1577 = vsel %vm1561, %v1544, %v1139
      %v1578 = vsel %vm1561, %v1545, %v1141
      %v1579 = vsel %vm1561, %v1546, %v1143
      %v1580 = vsel %vm1561, %v1547, %v1145
      %v1581 = vsel %vm1561, %v1548, %v1147
      %v1582 = vsel %vm1561, %v1549, %v1149
      %v1583 = vsel %vm1561, %v1550, %v1151
      %v1584 = vsel %vm1561, %v1551, %v1153
      %v1585 = vsel %vm1561, %v1552, %v1155
      %v1586 = vsel %vm1561, %v1553, %v1157
      %v1587 = vsel %vm1561, %v1554, %v1159
      %v1588 = vsel %vm1561, %v1555, %v1161
      %v1589 = vsel %vm1561, %v1556, %v1163
      %v1590 = vsel %vm1561, %v1557, %v1165
      %v1591 = vsel %vm1561, %v1558, %v1167
      %v1592 = vsel %vm1561, %v1559, %v1169
      %v1593 = vsel %vm1561, %v1560, %v1171
      %vm1594 = vcmask 228352
      %v1595 = vsel %vm1594, %v1562, %v1205
      %v1596 = vsel %vm1594, %v1563, %v1207
      %v1597 = vsel %vm1594, %v1564, %v1209
      %v1598 = vsel %vm1594, %v1565, %v1211
      %v1599 = vsel %vm1594, %v1566, %v1213
      %v1600 = vsel %vm1594, %v1567, %v1215
      %v1601 = vsel %vm1594, %v1568, %v1217
      %v1602 = vsel %vm1594, %v1569, %v1219
      %v1603 = vsel %vm1594, %v1570, %v1221
      %v1604 = vsel %vm1594, %v1571, %v1223
      %v1605 = vsel %vm1594, %v1572, %v1225
      %v1606 = vsel %vm1594, %v1573, %v1227
      %v1607 = vsel %vm1594, %v1574, %v1229
      %v1608 = vsel %vm1594, %v1575, %v1231
      %v1609 = vsel %vm1594, %v1576, %v1233
      %v1610 = vsel %vm1594, %v1577, %v1235
      %v1611 = vsel %vm1594, %v1578, %v1237
      %v1612 = vsel %vm1594, %v1579, %v1239
      %v1613 = vsel %vm1594, %v1580, %v1241
      %v1614 = vsel %vm1594, %v1581, %v1243
      %v1615 = vsel %vm1594, %v1582, %v1245
      %v1616 = vsel %vm1594, %v1583, %v1247
      %v1617 = vsel %vm1594, %v1584, %v1249
      %v1618 = vsel %vm1594, %v1585, %v1251
      %v1619 = vsel %vm1594, %v1586, %v1253
      %v1620 = vsel %vm1594, %v1587, %v1255
      %v1621 = vsel %vm1594, %v1588, %v1257
      %v1622 = vsel %vm1594, %v1589, %v1259
      %v1623 = vsel %vm1594, %v1590, %v1261
      %v1624 = vsel %vm1594, %v1591, %v1263
      %v1625 = vsel %vm1594, %v1592, %v1265
      %v1626 = vsel %vm1594, %v1593, %v1267
      %vm1627 = vcmask 261120
      %v1628 = vsel %vm1627, %v1595, %v1301
      %v1629 = vsel %vm1627, %v1596, %v1303
      %v1630 = vsel %vm1627, %v1597, %v1305
      %v1631 = vsel %vm1627, %v1598, %v1307
      %v1632 = vsel %vm1627, %v1599, %v1309
      %v1633 = vsel %vm1627, %v1600, %v1311
      %v1634 = vsel %vm1627, %v1601, %v1313
      %v1635 = vsel %vm1627, %v1602, %v1315
      %v1636 = vsel %vm1627, %v1603, %v1317
      %v1637 = vsel %vm1627, %v1604, %v1319
      %v1638 = vsel %vm1627, %v1605, %v1321
      %v1639 = vsel %vm1627, %v1606, %v1323
      %v1640 = vsel %vm1627, %v1607, %v1325
      %v1641 = vsel %vm1627, %v1608, %v1327
      %v1642 = vsel %vm1627, %v1609, %v1329
      %v1643 = vsel %vm1627, %v1610, %v1331
      %v1644 = vsel %vm1627, %v1611, %v1333
      %v1645 = vsel %vm1627, %v1612, %v1335
      %v1646 = vsel %vm1627, %v1613, %v1337
      %v1647 = vsel %vm1627, %v1614, %v1339
      %v1648 = vsel %vm1627, %v1615, %v1341
      %v1649 = vsel %vm1627, %v1616, %v1343
      %v1650 = vsel %vm1627, %v1617, %v1345
      %v1651 = vsel %vm1627, %v1618, %v1347
      %v1652 = vsel %vm1627, %v1619, %v1349
      %v1653 = vsel %vm1627, %v1620, %v1351
      %v1654 = vsel %vm1627, %v1621, %v1353
      %v1655 = vsel %vm1627, %v1622, %v1355
      %v1656 = vsel %vm1627, %v1623, %v1357
      %v1657 = vsel %vm1627, %v1624, %v1359
      %v1658 = vsel %vm1627, %v1625, %v1361
      %v1659 = vsel %vm1627, %v1626, %v1363
      %vm1660 = vcmask 293888
      %v1662 = vsel %vm1660, %v1628, 0
      %v1665 = vsel %vm1660, %v1629, 0
      %v1668 = vsel %vm1660, %v1630, 0
      %v1671 = vsel %vm1660, %v1631, 0
      %v1674 = vsel %vm1660, %v1632, 0
      %v1677 = vsel %vm1660, %v1633, 0
      %v1680 = vsel %vm1660, %v1634, 0
      %v1683 = vsel %vm1660, %v1635, 0
      %v1686 = vsel %vm1660, %v1636, 0
      %v1689 = vsel %vm1660, %v1637, 0
      %v1692 = vsel %vm1660, %v1638, 0
      %v1695 = vsel %vm1660, %v1639, 0
      %v1698 = vsel %vm1660, %v1640, 0
      %v1701 = vsel %vm1660, %v1641, 0
      %v1704 = vsel %vm1660, %v1642, 0
      %v1707 = vsel %vm1660, %v1643, 0
      %v1710 = vsel %vm1660, %v1644, 0
      %v1713 = vsel %vm1660, %v1645, 0
      %v1716 = vsel %vm1660, %v1646, 0
      %v1719 = vsel %vm1660, %v1647, 0
      %v1722 = vsel %vm1660, %v1648, 0
      %v1725 = vsel %vm1660, %v1649, 0
      %v1728 = vsel %vm1660, %v1650, 0
      %v1731 = vsel %vm1660, %v1651, 0
      %v1734 = vsel %vm1660, %v1652, 0
      %v1737 = vsel %vm1660, %v1653, 0
      %v1740 = vsel %vm1660, %v1654, 0
      %v1743 = vsel %vm1660, %v1655, 0
      %v1746 = vsel %vm1660, %v1656, 0
      %v1749 = vsel %vm1660, %v1657, 0
      %v1752 = vsel %vm1660, %v1658, 0
      %v1755 = vsel %vm1660, %v1659, 0
      %vm1757 = vcmask 1043456
      %v1759 = vsel %vm1757, %v254, 0
      %1761 = vmatprep.subr.mxu0 0.0
      %1762 = vmatpush1.msra.mxu0 %v250
      %1763 = vmatprep.subr.mxu0 0.0
      %1764 = vmatpush1.msra.mxu0 %v251
      %1765 = vmatprep.subr.mxu0 0.0
      %1766 = vmatpush1.msra.mxu0 %v252
      %1767 = vmatprep.subr.mxu0 0.0
      %1768 = vmatpush1.msra.mxu0 %v253
      %1769 = vmatprep.subr.mxu0 0.0
      %1770 = vmatpush1.msra.mxu0 %v1759
      %1771 = vmatprep.subr.mxu0 0.0
      %1772 = vmatpush1.msra.mxu0 0.0
      %1773 = vmatprep.subr.mxu0 0.0
      %1774 = vmatpush1.msra.mxu0 0.0
      %1775 = vmatprep.subr.mxu0 0.0
      %1776 = vmatpush1.msra.mxu0 0.0
      %1777 = vmatprep.subr.mxu0 0.0
      %1778 = vmatpush1.msra.mxu0 0.0
      %1779 = vmatprep.subr.mxu0 0.0
      %1780 = vmatpush1.msra.mxu0 0.0
      %1781 = vmatprep.subr.mxu0 0.0
      %1782 = vmatpush1.msra.mxu0 0.0
      %1783 = vmatprep.subr.mxu0 0.0
      %1784 = vmatpush1.msra.mxu0 0.0
      %1785 = vmatprep.subr.mxu0 0.0
      %1786 = vmatpush1.msra.mxu0 0.0
      %1787 = vmatprep.subr.mxu0 0.0
      %1788 = vmatpush1.msra.mxu0 0.0
      %1789 = vmatprep.subr.mxu0 0.0
      %1790 = vmatpush1.msra.mxu0 0.0
      %1791 = vmatprep.subr.mxu0 0.0
      %1792 = vmatpush1.msra.mxu0 0.0
      %1793 = vmatprep.subr.mxu0 0.0
      %1794 = vmatpush1.msra.mxu0 0.0
      %1795 = vmatprep.subr.mxu0 0.0
      %1796 = vmatpush1.msra.mxu0 0.0
      %1797 = vmatprep.subr.mxu0 0.0
      %1798 = vmatpush1.msra.mxu0 0.0
      %1799 = vmatprep.subr.mxu0 0.0
      %1800 = vmatpush1.msra.mxu0 0.0
      %1801 = vmatprep.subr.mxu0 0.0
      %1802 = vmatpush1.msra.mxu0 0.0
      %1803 = vmatprep.subr.mxu0 0.0
      %1804 = vmatpush1.msra.mxu0 0.0
      %1805 = vmatprep.subr.mxu0 0.0
      %1806 = vmatpush1.msra.mxu0 0.0
      %1807 = vmatprep.subr.mxu0 0.0
      %1808 = vmatpush1.msra.mxu0 0.0
      %1809 = vmatprep.subr.mxu0 0.0
      %1810 = vmatpush1.msra.mxu0 0.0
      %1811 = vmatprep.subr.mxu0 0.0
      %1812 = vmatpush1.msra.mxu0 0.0
      %1813 = vmatprep.subr.mxu0 0.0
      %1814 = vmatpush1.msra.mxu0 0.0
      %1815 = vmatprep.subr.mxu0 0.0
      %1816 = vmatpush1.msra.mxu0 0.0
      %1817 = vmatprep.subr.mxu0 0.0
      %1818 = vmatpush1.msra.mxu0 0.0
      %1819 = vmatprep.subr.mxu0 0.0
      %1820 = vmatpush1.msra.mxu0 0.0
      %1821 = vmatprep.subr.mxu0 0.0
      %1822 = vmatpush1.msra.mxu0 0.0
      %1823 = vmatprep.subr.mxu0 0.0
      %1824 = vmatpush1.msra.mxu0 0.0
      %1825 = vmatprep.mubr.f32.mxu0 0.0
      %1826 = vmatmul.mubr.f32.gmra.mrb[0].mxu0 %v1662
      %v1827 = vpop.f32.mrb[0].mxu0
      %v1828 = vadd.f32 0.0, %v1827
      %v1829 = vpop.f32.mrb[0].mxu0
      %1830 = vmatprep.mubr.f32.mxu0 0.0
      %1831 = vmatmul.mubr.f32.gmra.mrb[0].mxu0 %v1665
      %v1832 = vpop.f32.mrb[0].mxu0
      %v1833 = vadd.f32 0.0, %v1832
      %v1834 = vpop.f32.mrb[0].mxu0
      %1835 = vmatprep.mubr.f32.mxu0 0.0
      %1836 = vmatmul.mubr.f32.gmra.mrb[0].mxu0 %v1668
      %v1837 = vpop.f32.mrb[0].mxu0
      %v1838 = vadd.f32 0.0, %v1837
      %v1839 = vpop.f32.mrb[0].mxu0
      %1840 = vmatprep.mubr.f32.mxu0 0.0
      %1841 = vmatmul.mubr.f32.gmra.mrb[0].mxu0 %v1671
      %v1842 = vpop.f32.mrb[0].mxu0
      %v1843 = vadd.f32 0.0, %v1842
      %v1844 = vpop.f32.mrb[0].mxu0
      %1845 = vmatprep.mubr.f32.mxu0 0.0
      %1846 = vmatmul.mubr.f32.gmra.mrb[0].mxu0 %v1674
      %v1847 = vpop.f32.mrb[0].mxu0
      %v1848 = vadd.f32 0.0, %v1847
      %v1849 = vpop.f32.mrb[0].mxu0
      %1850 = vmatprep.mubr.f32.mxu0 0.0
      %1851 = vmatmul.mubr.f32.gmra.mrb[0].mxu0 %v1677
      %v1852 = vpop.f32.mrb[0].mxu0
      %v1853 = vadd.f32 0.0, %v1852
      %v1854 = vpop.f32.mrb[0].mxu0
      %1855 = vmatprep.mubr.f32.mxu0 0.0
      %1856 = vmatmul.mubr.f32.gmra.mrb[0].mxu0 %v1680
      %v1857 = vpop.f32.mrb[0].mxu0
      %v1858 = vadd.f32 0.0, %v1857
      %v1859 = vpop.f32.mrb[0].mxu0
      %1860 = vmatprep.mubr.f32.mxu0 0.0
      %1861 = vmatmul.mubr.f32.gmra.mrb[0].mxu0 %v1683
      %v1862 = vpop.f32.mrb[0].mxu0
      %v1863 = vadd.f32 0.0, %v1862
      %v1864 = vpop.f32.mrb[0].mxu0
      %1865 = vmatprep.mubr.f32.mxu0 0.0
      %1866 = vmatmul.mubr.f32.gmra.mrb[0].mxu0 %v1686
      %v1867 = vpop.f32.mrb[0].mxu0
      %v1868 = vadd.f32 0.0, %v1867
      %v1869 = vpop.f32.mrb[0].mxu0
      %1870 = vmatprep.mubr.f32.mxu0 0.0
      %1871 = vmatmul.mubr.f32.gmra.mrb[0].mxu0 %v1689
      %v1872 = vpop.f32.mrb[0].mxu0
      %v1873 = vadd.f32 0.0, %v1872
      %v1874 = vpop.f32.mrb[0].mxu0
      %1875 = vmatprep.mubr.f32.mxu0 0.0
      %1876 = vmatmul.mubr.f32.gmra.mrb[0].mxu0 %v1692
      %v1877 = vpop.f32.mrb[0].mxu0
      %v1878 = vadd.f32 0.0, %v1877
      %v1879 = vpop.f32.mrb[0].mxu0
      %1880 = vmatprep.mubr.f32.mxu0 0.0
      %1881 = vmatmul.mubr.f32.gmra.mrb[0].mxu0 %v1695
      %v1882 = vpop.f32.mrb[0].mxu0
      %v1883 = vadd.f32 0.0, %v1882
      %v1884 = vpop.f32.mrb[0].mxu0
      %1885 = vmatprep.mubr.f32.mxu0 0.0
      %1886 = vmatmul.mubr.f32.gmra.mrb[0].mxu0 %v1698
      %v1887 = vpop.f32.mrb[0].mxu0
      %v1888 = vadd.f32 0.0, %v1887
      %v1889 = vpop.f32.mrb[0].mxu0
      %1890 = vmatprep.mubr.f32.mxu0 0.0
      %1891 = vmatmul.mubr.f32.gmra.mrb[0].mxu0 %v1701
      %v1892 = vpop.f32.mrb[0].mxu0
      %v1893 = vadd.f32 0.0, %v1892
      %v1894 = vpop.f32.mrb[0].mxu0
      %1895 = vmatprep.mubr.f32.mxu0 0.0
      %1896 = vmatmul.mubr.f32.gmra.mrb[0].mxu0 %v1704
      %v1897 = vpop.f32.mrb[0].mxu0
      %v1898 = vadd.f32 0.0, %v1897
      %v1899 = vpop.f32.mrb[0].mxu0
      %1900 = vmatprep.mubr.f32.mxu0 0.0
      %1901 = vmatmul.mubr.f32.gmra.mrb[0].mxu0 %v1707
      %v1902 = vpop.f32.mrb[0].mxu0
      %v1903 = vadd.f32 0.0, %v1902
      %v1904 = vpop.f32.mrb[0].mxu0
      %1905 = vmatprep.mubr.f32.mxu0 0.0
      %1906 = vmatmul.mubr.f32.gmra.mrb[0].mxu0 %v1710
      %v1907 = vpop.f32.mrb[0].mxu0
      %v1908 = vadd.f32 0.0, %v1907
      %v1909 = vpop.f32.mrb[0].mxu0
      %1910 = vmatprep.mubr.f32.mxu0 0.0
      %1911 = vmatmul.mubr.f32.gmra.mrb[0].mxu0 %v1713
      %v1912 = vpop.f32.mrb[0].mxu0
      %v1913 = vadd.f32 0.0, %v1912
      %v1914 = vpop.f32.mrb[0].mxu0
      %1915 = vmatprep.mubr.f32.mxu0 0.0
      %1916 = vmatmul.mubr.f32.gmra.mrb[0].mxu0 %v1716
      %v1917 = vpop.f32.mrb[0].mxu0
      %v1918 = vadd.f32 0.0, %v1917
      %v1919 = vpop.f32.mrb[0].mxu0
      %1920 = vmatprep.mubr.f32.mxu0 0.0
      %1921 = vmatmul.mubr.f32.gmra.mrb[0].mxu0 %v1719
      %v1922 = vpop.f32.mrb[0].mxu0
      %v1923 = vadd.f32 0.0, %v1922
      %v1924 = vpop.f32.mrb[0].mxu0
      %1925 = vmatprep.mubr.f32.mxu0 0.0
      %1926 = vmatmul.mubr.f32.gmra.mrb[0].mxu0 %v1722
      %v1927 = vpop.f32.mrb[0].mxu0
      %v1928 = vadd.f32 0.0, %v1927
      %v1929 = vpop.f32.mrb[0].mxu0
      %1930 = vmatprep.mubr.f32.mxu0 0.0
      %1931 = vmatmul.mubr.f32.gmra.mrb[0].mxu0 %v1725
      %v1932 = vpop.f32.mrb[0].mxu0
      %v1933 = vadd.f32 0.0, %v1932
      %v1934 = vpop.f32.mrb[0].mxu0
      %1935 = vmatprep.mubr.f32.mxu0 0.0
      %1936 = vmatmul.mubr.f32.gmra.mrb[0].mxu0 %v1728
      %v1937 = vpop.f32.mrb[0].mxu0
      %v1938 = vadd.f32 0.0, %v1937
      %v1939 = vpop.f32.mrb[0].mxu0
      %1940 = vmatprep.mubr.f32.mxu0 0.0
      %1941 = vmatmul.mubr.f32.gmra.mrb[0].mxu0 %v1731
      %v1942 = vpop.f32.mrb[0].mxu0
      %v1943 = vadd.f32 0.0, %v1942
      %v1944 = vpop.f32.mrb[0].mxu0
      %1945 = vmatprep.mubr.f32.mxu0 0.0
      %1946 = vmatmul.mubr.f32.gmra.mrb[0].mxu0 %v1734
      %v1947 = vpop.f32.mrb[0].mxu0
      %v1948 = vadd.f32 0.0, %v1947
      %v1949 = vpop.f32.mrb[0].mxu0
      %1950 = vmatprep.mubr.f32.mxu0 0.0
      %1951 = vmatmul.mubr.f32.gmra.mrb[0].mxu0 %v1737
      %v1952 = vpop.f32.mrb[0].mxu0
      %v1953 = vadd.f32 0.0, %v1952
      %v1954 = vpop.f32.mrb[0].mxu0
      %1955 = vmatprep.mubr.f32.mxu0 0.0
      %1956 = vmatmul.mubr.f32.gmra.mrb[0].mxu0 %v1740
      %v1957 = vpop.f32.mrb[0].mxu0
      %v1958 = vadd.f32 0.0, %v1957
      %v1959 = vpop.f32.mrb[0].mxu0
      %1960 = vmatprep.mubr.f32.mxu0 0.0
      %1961 = vmatmul.mubr.f32.gmra.mrb[0].mxu0 %v1743
      %v1962 = vpop.f32.mrb[0].mxu0
      %v1963 = vadd.f32 0.0, %v1962
      %v1964 = vpop.f32.mrb[0].mxu0
      %1965 = vmatprep.mubr.f32.mxu0 0.0
      %1966 = vmatmul.mubr.f32.gmra.mrb[0].mxu0 %v1746
      %v1967 = vpop.f32.mrb[0].mxu0
      %v1968 = vadd.f32 0.0, %v1967
      %v1969 = vpop.f32.mrb[0].mxu0
      %1970 = vmatprep.mubr.f32.mxu0 0.0
      %1971 = vmatmul.mubr.f32.gmra.mrb[0].mxu0 %v1749
      %v1972 = vpop.f32.mrb[0].mxu0
      %v1973 = vadd.f32 0.0, %v1972
      %v1974 = vpop.f32.mrb[0].mxu0
      %1975 = vmatprep.mubr.f32.mxu0 0.0
      %1976 = vmatmul.mubr.f32.gmra.mrb[0].mxu0 %v1752
      %v1977 = vpop.f32.mrb[0].mxu0
      %v1978 = vadd.f32 0.0, %v1977
      %v1979 = vpop.f32.mrb[0].mxu0
      %1980 = vmatprep.mubr.f32.mxu0 0.0
      %1981 = vmatmul.mubr.f32.gmra.mrb[0].mxu0 %v1755
      %v1982 = vpop.f32.mrb[0].mxu0
      %v1983 = vadd.f32 0.0, %v1982
      %v1984 = vpop.f32.mrb[0].mxu0
      %1985 = vdwg.mxu0
      %1986 = vxpose.xlu0.b32.start [1/16] %v1828, 128
      %1987 = vxpose.xlu0.b32.cont [2/16] %v1833, 128
      %1988 = vxpose.xlu0.b32.cont [3/16] %v1838, 128
      %1989 = vxpose.xlu0.b32.cont [4/16] %v1843, 128
      %1990 = vxpose.xlu0.b32.cont [5/16] %v1848, 128
      %1991 = vxpose.xlu0.b32.cont [6/16] %v1853, 128
      %1992 = vxpose.xlu0.b32.cont [7/16] %v1858, 128
      %1993 = vxpose.xlu0.b32.cont [8/16] %v1863, 128
      %1994 = vxpose.xlu0.b32.cont [9/16] %v1868, 128
      %1995 = vxpose.xlu0.b32.cont [10/16] %v1873, 128
      %1996 = vxpose.xlu0.b32.cont [11/16] %v1878, 128
      %1997 = vxpose.xlu0.b32.cont [12/16] %v1883, 128
      %1998 = vxpose.xlu0.b32.cont [13/16] %v1888, 128
      %1999 = vxpose.xlu0.b32.cont [14/16] %v1893, 128
      %2000 = vxpose.xlu0.b32.cont [15/16] %v1898, 128
      %2001 = vxpose.xlu0.b32.end [16/16] %v1903, 128
      %v2002 = vpop.trf.xlu0
      %v2003 = vpop.trf.xlu0
      %v2004 = vpop.trf.xlu0
      %v2005 = vpop.trf.xlu0
      %v2006 = vpop.trf.xlu0
      %v2007 = vpop.trf.xlu0
      %v2008 = vpop.trf.xlu0
      %v2009 = vpop.trf.xlu0
      %v2010 = vpop.trf.xlu0
      %v2011 = vpop.trf.xlu0
      %v2012 = vpop.trf.xlu0
      %v2013 = vpop.trf.xlu0
      %v2014 = vpop.trf.xlu0
      %v2015 = vpop.trf.xlu0
      %v2016 = vpop.trf.xlu0
      %v2017 = vpop.trf.xlu0
      %2018 = vxpose.xlu0.b32.start [1/16] %v1908, 128
      %2019 = vxpose.xlu0.b32.cont [2/16] %v1913, 128
      %2020 = vxpose.xlu0.b32.cont [3/16] %v1918, 128
      %2021 = vxpose.xlu0.b32.cont [4/16] %v1923, 128
      %2022 = vxpose.xlu0.b32.cont [5/16] %v1928, 128
      %2023 = vxpose.xlu0.b32.cont [6/16] %v1933, 128
      %2024 = vxpose.xlu0.b32.cont [7/16] %v1938, 128
      %2025 = vxpose.xlu0.b32.cont [8/16] %v1943, 128
      %2026 = vxpose.xlu0.b32.cont [9/16] %v1948, 128
      %2027 = vxpose.xlu0.b32.cont [10/16] %v1953, 128
      %2028 = vxpose.xlu0.b32.cont [11/16] %v1958, 128
      %2029 = vxpose.xlu0.b32.cont [12/16] %v1963, 128
      %2030 = vxpose.xlu0.b32.cont [13/16] %v1968, 128
      %2031 = vxpose.xlu0.b32.cont [14/16] %v1973, 128
      %2032 = vxpose.xlu0.b32.cont [15/16] %v1978, 128
      %2033 = vxpose.xlu0.b32.end [16/16] %v1983, 128
      %v2034 = vpop.trf.xlu0
      %v2035 = vpop.trf.xlu0
      %v2036 = vpop.trf.xlu0
      %v2037 = vpop.trf.xlu0
      %v2038 = vpop.trf.xlu0
      %v2039 = vpop.trf.xlu0
      %v2040 = vpop.trf.xlu0
      %v2041 = vpop.trf.xlu0
      %v2042 = vpop.trf.xlu0
      %v2043 = vpop.trf.xlu0
      %v2044 = vpop.trf.xlu0
      %v2045 = vpop.trf.xlu0
      %v2046 = vpop.trf.xlu0
      %v2047 = vpop.trf.xlu0
      %v2048 = vpop.trf.xlu0
      %v2049 = vpop.trf.xlu0
      %2050 = vst [vmem:[%s177] sm:$0xff] %v2002
      %2051 = vst [vmem:[%s177 + $0x8] sm:$0xff] %v2034
      %v2052 = vsel %vm1429, %v1828, 0.0
      %v2053 = vsel %vm1429, %v1833, 0.0
      %v2054 = vadd.f32 %v2052, %v2053
      %v2055 = vsel %vm1429, %v1838, 0.0
      %v2056 = vadd.f32 %v2054, %v2055
      %v2057 = vsel %vm1429, %v1843, 0.0
      %v2058 = vadd.f32 %v2056, %v2057
      %v2059 = vsel %vm1429, %v1848, 0.0
      %v2060 = vadd.f32 %v2058, %v2059
      %v2061 = vsel %vm1429, %v1853, 0.0
      %v2062 = vadd.f32 %v2060, %v2061
      %v2063 = vsel %vm1429, %v1858, 0.0
      %v2064 = vadd.f32 %v2062, %v2063
      %v2065 = vsel %vm1429, %v1863, 0.0
      %v2066 = vadd.f32 %v2064, %v2065
      %v2067 = vsel %vm1429, %v1868, 0.0
      %v2068 = vadd.f32 %v2066, %v2067
      %v2069 = vsel %vm1429, %v1873, 0.0
      %v2070 = vadd.f32 %v2068, %v2069
      %v2071 = vsel %vm1429, %v1878, 0.0
      %v2072 = vadd.f32 %v2070, %v2071
      %v2073 = vsel %vm1429, %v1883, 0.0
      %v2074 = vadd.f32 %v2072, %v2073
      %v2075 = vsel %vm1429, %v1888, 0.0
      %v2076 = vadd.f32 %v2074, %v2075
      %v2077 = vsel %vm1429, %v1893, 0.0
      %v2078 = vadd.f32 %v2076, %v2077
      %v2079 = vsel %vm1429, %v1898, 0.0
      %v2080 = vadd.f32 %v2078, %v2079
      %v2081 = vsel %vm1429, %v1903, 0.0
      %v2082 = vadd.f32 %v2080, %v2081
      %v2083 = vsel %vm1429, %v1908, 0.0
      %v2084 = vadd.f32 %v2082, %v2083
      %v2085 = vsel %vm1429, %v1913, 0.0
      %v2086 = vadd.f32 %v2084, %v2085
      %v2087 = vsel %vm1429, %v1918, 0.0
      %v2088 = vadd.f32 %v2086, %v2087
      %v2089 = vsel %vm1429, %v1923, 0.0
      %v2090 = vadd.f32 %v2088, %v2089
      %v2091 = vsel %vm1429, %v1928, 0.0
      %v2092 = vadd.f32 %v2090, %v2091
      %v2093 = vsel %vm1429, %v1933, 0.0
      %v2094 = vadd.f32 %v2092, %v2093
      %v2095 = vsel %vm1429, %v1938, 0.0
      %v2096 = vadd.f32 %v2094, %v2095
      %v2097 = vsel %vm1429, %v1943, 0.0
      %v2098 = vadd.f32 %v2096, %v2097
      %v2099 = vsel %vm1429, %v1948, 0.0
      %v2100 = vadd.f32 %v2098, %v2099
      %v2101 = vsel %vm1429, %v1953, 0.0
      %v2102 = vadd.f32 %v2100, %v2101
      %v2103 = vsel %vm1429, %v1958, 0.0
      %v2104 = vadd.f32 %v2102, %v2103
      %v2105 = vsel %vm1429, %v1963, 0.0
      %v2106 = vadd.f32 %v2104, %v2105
      %v2107 = vsel %vm1429, %v1968, 0.0
      %v2108 = vadd.f32 %v2106, %v2107
      %v2109 = vsel %vm1429, %v1973, 0.0
      %v2110 = vadd.f32 %v2108, %v2109
      %v2111 = vsel %vm1429, %v1978, 0.0
      %v2112 = vadd.f32 %v2110, %v2111
      %v2113 = vsel %vm1429, %v1983, 0.0
      %v2114 = vadd.f32 %v2112, %v2113
      %v2115 = vrot.slane %v2114, 4
      %v2116 = vadd.f32 %v2114, %v2115
      %v2117 = vrot.slane %v2116, 2
      %v2118 = vadd.f32 %v2116, %v2117
      %v2119 = vrot.slane %v2118, 1
      %v2120 = vadd.f32 %v2118, %v2119
      %v2121 = vmul.f32 %v1828, %v1828
      %v2122 = vmul.f32 %v1833, %v1833
      %v2123 = vmul.f32 %v1838, %v1838
      %v2124 = vmul.f32 %v1843, %v1843
      %v2125 = vmul.f32 %v1848, %v1848
      %v2126 = vmul.f32 %v1853, %v1853
      %v2127 = vmul.f32 %v1858, %v1858
      %v2128 = vmul.f32 %v1863, %v1863
      %v2129 = vmul.f32 %v1868, %v1868
      %v2130 = vmul.f32 %v1873, %v1873
      %v2131 = vmul.f32 %v1878, %v1878
      %v2132 = vmul.f32 %v1883, %v1883
      %v2133 = vmul.f32 %v1888, %v1888
      %v2134 = vmul.f32 %v1893, %v1893
      %v2135 = vmul.f32 %v1898, %v1898
      %v2136 = vmul.f32 %v1903, %v1903
      %v2137 = vmul.f32 %v1908, %v1908
      %v2138 = vmul.f32 %v1913, %v1913
      %v2139 = vmul.f32 %v1918, %v1918
      %v2140 = vmul.f32 %v1923, %v1923
      %v2141 = vmul.f32 %v1928, %v1928
      %v2142 = vmul.f32 %v1933, %v1933
      %v2143 = vmul.f32 %v1938, %v1938
      %v2144 = vmul.f32 %v1943, %v1943
      %v2145 = vmul.f32 %v1948, %v1948
      %v2146 = vmul.f32 %v1953, %v1953
      %v2147 = vmul.f32 %v1958, %v1958
      %v2148 = vmul.f32 %v1963, %v1963
      %v2149 = vmul.f32 %v1968, %v1968
      %v2150 = vmul.f32 %v1973, %v1973
      %v2151 = vmul.f32 %v1978, %v1978
      %v2152 = vmul.f32 %v1983, %v1983
      %v2153 = vsel %vm1429, %v2121, 0.0
      %v2154 = vsel %vm1429, %v2122, 0.0
      %v2155 = vadd.f32 %v2153, %v2154
      %v2156 = vsel %vm1429, %v2123, 0.0
      %v2157 = vadd.f32 %v2155, %v2156
      %v2158 = vsel %vm1429, %v2124, 0.0
      %v2159 = vadd.f32 %v2157, %v2158
      %v2160 = vsel %vm1429, %v2125, 0.0
      %v2161 = vadd.f32 %v2159, %v2160
      %v2162 = vsel %vm1429, %v2126, 0.0
      %v2163 = vadd.f32 %v2161, %v2162
      %v2164 = vsel %vm1429, %v2127, 0.0
      %v2165 = vadd.f32 %v2163, %v2164
      %v2166 = vsel %vm1429, %v2128, 0.0
      %v2167 = vadd.f32 %v2165, %v2166
      %v2168 = vsel %vm1429, %v2129, 0.0
      %v2169 = vadd.f32 %v2167, %v2168
      %v2170 = vsel %vm1429, %v2130, 0.0
      %v2171 = vadd.f32 %v2169, %v2170
      %v2172 = vsel %vm1429, %v2131, 0.0
      %v2173 = vadd.f32 %v2171, %v2172
      %v2174 = vsel %vm1429, %v2132, 0.0
      %v2175 = vadd.f32 %v2173, %v2174
      %v2176 = vsel %vm1429, %v2133, 0.0
      %v2177 = vadd.f32 %v2175, %v2176
      %v2178 = vsel %vm1429, %v2134, 0.0
      %v2179 = vadd.f32 %v2177, %v2178
      %v2180 = vsel %vm1429, %v2135, 0.0
      %v2181 = vadd.f32 %v2179, %v2180
      %v2182 = vsel %vm1429, %v2136, 0.0
      %v2183 = vadd.f32 %v2181, %v2182
      %v2184 = vsel %vm1429, %v2137, 0.0
      %v2185 = vadd.f32 %v2183, %v2184
      %v2186 = vsel %vm1429, %v2138, 0.0
      %v2187 = vadd.f32 %v2185, %v2186
      %v2188 = vsel %vm1429, %v2139, 0.0
      %v2189 = vadd.f32 %v2187, %v2188
      %v2190 = vsel %vm1429, %v2140, 0.0
      %v2191 = vadd.f32 %v2189, %v2190
      %v2192 = vsel %vm1429, %v2141, 0.0
      %v2193 = vadd.f32 %v2191, %v2192
      %v2194 = vsel %vm1429, %v2142, 0.0
      %v2195 = vadd.f32 %v2193, %v2194
      %v2196 = vsel %vm1429, %v2143, 0.0
      %v2197 = vadd.f32 %v2195, %v2196
      %v2198 = vsel %vm1429, %v2144, 0.0
      %v2199 = vadd.f32 %v2197, %v2198
      %v2200 = vsel %vm1429, %v2145, 0.0
      %v2201 = vadd.f32 %v2199, %v2200
      %v2202 = vsel %vm1429, %v2146, 0.0
      %v2203 = vadd.f32 %v2201, %v2202
      %v2204 = vsel %vm1429, %v2147, 0.0
      %v2205 = vadd.f32 %v2203, %v2204
      %v2206 = vsel %vm1429, %v2148, 0.0
      %v2207 = vadd.f32 %v2205, %v2206
      %v2208 = vsel %vm1429, %v2149, 0.0
      %v2209 = vadd.f32 %v2207, %v2208
      %v2210 = vsel %vm1429, %v2150, 0.0
      %v2211 = vadd.f32 %v2209, %v2210
      %v2212 = vsel %vm1429, %v2151, 0.0
      %v2213 = vadd.f32 %v2211, %v2212
      %v2214 = vsel %vm1429, %v2152, 0.0
      %v2215 = vadd.f32 %v2213, %v2214
      %v2216 = vrot.slane %v2215, 4
      %v2217 = vadd.f32 %v2215, %v2216
      %v2218 = vrot.slane %v2217, 2
      %v2219 = vadd.f32 %v2217, %v2218
      %v2220 = vrot.slane %v2219, 1
      %v2221 = vadd.f32 %v2219, %v2220
      %v2222 = vsel %vm288, %v2120, %v2221
      %vm2223 = vcmask 58368
      %2224 = vst.msk [vmem:[%s181] sm:$0x3] %vm2223, %v2222
      %p2225 = scmp.lt.s32.totalorder %s15, 1
      %s2226 = scalar_select %p2225, %s15, 1
      %s2227 = smul.addr %s2226, 2
      %s2228 = smul.addr %s2227, 8
      %s2229 = scalar_lea.vmem %s2, %s2228
      %p2230 = scmp.lt.s32.totalorder %s15, 1
      %s2231 = scalar_select %p2230, %s15, 1
      %s2232 = smul.addr %s2231, 2
      %s2233 = scalar_lea.vmem %s3, %s2232
      // Predicated region
      $region29: #{conv_block_forward.3} parent=27 // pred_check
        %p2234 = pneg %p80
      $region30: #{conv_block_forward.3} parent=27 // pred_check_branch
        %2236 = sbr.rel (%p2234) target = $region32
      $region31: #{conv_block_forward.3} parent=27 // pred_region
        _
      $region32: #{conv_block_forward.3} parent=27 // pred_fallthru
        _
      // Predicated region
      $region33: #{conv_block_forward.3} parent=27 // pred_check
        %p2237 = pneg %p106
      $region34: #{conv_block_forward.3} parent=27 // pred_check_branch
        %2239 = sbr.rel (%p2237) target = $region36
      $region35: #{conv_block_forward.3} parent=27 // pred_region
        _
      $region36: #{conv_block_forward.3} parent=27 // pred_fallthru
        _
    $region28: #{conv_block_forward.3} parent=5 // pred_fallthru
      _
    %p2240 = scmp.le.s32.totalorder 2, %s10
    // Predicated region
    $region37: #{conv_block_forward.3} parent=5 // pred_check
      %p2241 = pneg %p2240
    $region38: #{conv_block_forward.3} parent=5 // pred_check_branch
      %2243 = sbr.rel (%p2241) target = $region40
    $region39: #{conv_block_forward.3} parent=5 // pred_region
      %s2244 = ssub.s32 %s10, 2
      // Predicated region
      $region41: #{conv_block_forward.3} parent=39 // pred_check
        %p2245 = pneg %p86
      $region42: #{conv_block_forward.3} parent=39 // pred_check_branch
        %2247 = sbr.rel (%p2245) target = $region44
      $region43: #{conv_block_forward.3} parent=39 // pred_region
        %p2248 = scmp.lt.s32.totalorder %s16, 1
        %s2249 = scalar_select %p2248, %s16, 1
        %s2250 = smul.addr %s2249, 2
        %s2251 = smul.addr %s2250, 8
        %s2252 = scalar_lea.vmem %s2, %s2251
      $region44: #{conv_block_forward.3} parent=39 // pred_fallthru
        _
      // Predicated region
      $region45: #{conv_block_forward.3} parent=39 // pred_check
        %p2253 = pneg %p112
      $region46: #{conv_block_forward.3} parent=39 // pred_check_branch
        %2255 = sbr.rel (%p2253) target = $region48
      $region47: #{conv_block_forward.3} parent=39 // pred_region
        %p2256 = scmp.lt.s32.totalorder %s16, 1
        %s2257 = scalar_select %p2256, %s16, 1
        %s2258 = smul.addr %s2257, 2
        %s2259 = scalar_lea.vmem %s3, %s2258
      $region48: #{conv_block_forward.3} parent=39 // pred_fallthru
        _
    $region40: #{conv_block_forward.3} parent=5 // pred_fallthru
      _
  $region6: #{conv_block_forward.3} parent=0 // loop_footer
    %s14 = sadd.s32 1, %s10
  $region7: #{conv_block_forward.3} parent=0 // loop_footer_branch
    %9 = sbr.rel target = $region3
  $region8: #{conv_block_forward.3} parent=0 // loop_exit
    _

// kernel: conv_block_forward.4
$region0: #{conv_block_forward.4}
  #allocation0 [shape = 'u32[]', space=smem, size = 0x4, offset = 0x4, fixed_abs, tag = 'smem constant byte address 0x4 - core index']
  #allocation1 [shape = 'u32[144,128]{1,0:T(1,128)}', space=vmem, size = 0x12000, scoped, tag = 'internal scratch']
  %s0 = inlined_call_operand.vmem [shape: f32[2,8,256], index: 0, kind: input, shape index: {}]
  %s1 = inlined_call_operand.vmem [shape: f32[8,1], index: 1, kind: input, shape index: {}]
  %s2 = inlined_call_operand.vmem [shape: f32[8,1], index: 2, kind: input, shape index: {}]
  %s3 = inlined_call_operand.vmem [shape: f32[72,8], index: 3, kind: input, shape index: {}]
  %s4 = inlined_call_operand.vmem [shape: f32[2,8,256], index: 4, kind: output, shape index: {0}]
  %s5 = inlined_call_operand.vmem [shape: f32[2,2,8], index: 5, kind: output, shape index: {1}]
  %6 = xla_tuple %s4, %s5
  %s7 = sld [smem:[#allocation0]]
  $region57: #{conv_block_forward.4} parent=0
    _
  %s9 = ssub.s32 1, %s7
  %s10 = scalar_select 0, %s9, %s7
  loop: start=0, step=1, limit=4
  $region2: #{conv_block_forward.4} parent=0 // loop_pre_header
    _
  $region3: #{conv_block_forward.4} parent=0 // loop_header
    %s12 = sphi 0, %s16
    %p13 = scmp.ge.s32.totalorder %s12, 4
    %s22 = sphi 0, %s24
    %s25 = sphi 0, %s22
    %s26 = sphi 0, %s25
    %s42 = sphi 0, %s26
    %s46 = sphi 0, %s46
    %s48 = sphi 0, %s46
    %s49 = sphi 0, %s48
    %s63 = sphi 0, %s49
    %s67 = sphi 0, %s67
    %s69 = sphi 0, %s67
    %s70 = sphi 0, %s69
    %s84 = sphi 0, %s70
    %s88 = sphi 0, %s88
    %s90 = sphi 0, %s88
    %s91 = sphi 0, %s90
    %s105 = sphi 0, %s91
    %s111 = sphi 0, %s113
    %s114 = sphi 0, %s111
    %s115 = sphi 0, %s114
    %s131 = sphi 0, %s115
    %s137 = sphi 0, %s139
    %s140 = sphi 0, %s137
    %s141 = sphi 0, %s140
    %s157 = sphi 0, %s141
  $region4: #{conv_block_forward.4} parent=0 // loop_header_branch
    %15 = sbr.rel (%p13) target = $region8
  $region5: #{conv_block_forward.4} parent=0 // loop_body
    %s17 = ssub.s32 %s12, 1
    %s18 = ssub.s32 %s12, 2
    %s19 = sadd.s32 %s12, 1
    %s20 = ssub.s32 %s12, %s19
    %p21 = scmp.eq.s32.totalorder %s20, 0
    %s23 = sadd.s32 %s22, 1
    %s24 = scalar_select %p21, %s22, %s23
    %p27 = pneg %p21
    %p28 = scmp.eq.s32.totalorder %s12, 1
    %p29 = por %p27, %p28
    %p30 = scmp.ne.s32.totalorder %s22, %s25
    %p31 = scmp.eq.s32.totalorder %s12, 0
    %p32 = por %p30, %p31
    %p33 = scmp.ne.s32.totalorder %s22, %s25
    %p34 = scmp.eq.s32.totalorder %s17, 1
    %p35 = por %p33, %p34
    %p36 = scmp.ne.s32.totalorder %s25, %s26
    %p37 = scmp.eq.s32.totalorder %s17, 0
    %p38 = por %p36, %p37
    %p39 = scmp.ne.s32.totalorder %s25, %s26
    %p40 = scmp.eq.s32.totalorder %s18, 1
    %p41 = por %p39, %p40
    %p43 = scmp.ne.s32.totalorder %s26, %s42
    %p44 = scmp.eq.s32.totalorder %s18, 0
    %p45 = por %p43, %p44
    %s47 = sadd.s32 %s46, 1
    %p50 = scmp.eq.s32.totalorder %s12, 1
    %p51 = scmp.ne.s32.totalorder %s46, %s48
    %p52 = scmp.eq.s32.totalorder %s12, 0
    %p53 = por %p51, %p52
    %p54 = scmp.ne.s32.totalorder %s46, %s48
    %p55 = scmp.eq.s32.totalorder %s17, 1
    %p56 = por %p54, %p55
    %p57 = scmp.ne.s32.totalorder %s48, %s49
    %p58 = scmp.eq.s32.totalorder %s17, 0
    %p59 = por %p57, %p58
    %p60 = scmp.ne.s32.totalorder %s48, %s49
    %p61 = scmp.eq.s32.totalorder %s18, 1
    %p62 = por %p60, %p61
    %p64 = scmp.ne.s32.totalorder %s49, %s63
    %p65 = scmp.eq.s32.totalorder %s18, 0
    %p66 = por %p64, %p65
    %s68 = sadd.s32 %s67, 1
    %p71 = scmp.eq.s32.totalorder %s12, 1
    %p72 = scmp.ne.s32.totalorder %s67, %s69
    %p73 = scmp.eq.s32.totalorder %s12, 0
    %p74 = por %p72, %p73
    %p75 = scmp.ne.s32.totalorder %s67, %s69
    %p76 = scmp.eq.s32.totalorder %s17, 1
    %p77 = por %p75, %p76
    %p78 = scmp.ne.s32.totalorder %s69, %s70
    %p79 = scmp.eq.s32.totalorder %s17, 0
    %p80 = por %p78, %p79
    %p81 = scmp.ne.s32.totalorder %s69, %s70
    %p82 = scmp.eq.s32.totalorder %s18, 1
    %p83 = por %p81, %p82
    %p85 = scmp.ne.s32.totalorder %s70, %s84
    %p86 = scmp.eq.s32.totalorder %s18, 0
    %p87 = por %p85, %p86
    %s89 = sadd.s32 %s88, 1
    %p92 = scmp.eq.s32.totalorder %s12, 1
    %p93 = scmp.ne.s32.totalorder %s88, %s90
    %p94 = scmp.eq.s32.totalorder %s12, 0
    %p95 = por %p93, %p94
    %p96 = scmp.ne.s32.totalorder %s88, %s90
    %p97 = scmp.eq.s32.totalorder %s17, 1
    %p98 = por %p96, %p97
    %p99 = scmp.ne.s32.totalorder %s90, %s91
    %p100 = scmp.eq.s32.totalorder %s17, 0
    %p101 = por %p99, %p100
    %p102 = scmp.ne.s32.totalorder %s90, %s91
    %p103 = scmp.eq.s32.totalorder %s18, 1
    %p104 = por %p102, %p103
    %p106 = scmp.ne.s32.totalorder %s91, %s105
    %p107 = scmp.eq.s32.totalorder %s18, 0
    %p108 = por %p106, %p107
    %s109 = ssub.s32 %s12, %s19
    %p110 = scmp.eq.s32.totalorder %s109, 0
    %s112 = sadd.s32 %s111, 1
    %s113 = scalar_select %p110, %s111, %s112
    %p116 = pneg %p110
    %p117 = scmp.eq.s32.totalorder %s12, 1
    %p118 = por %p116, %p117
    %p119 = scmp.ne.s32.totalorder %s111, %s114
    %p120 = scmp.eq.s32.totalorder %s12, 0
    %p121 = por %p119, %p120
    %p122 = scmp.ne.s32.totalorder %s111, %s114
    %p123 = scmp.eq.s32.totalorder %s17, 1
    %p124 = por %p122, %p123
    %p125 = scmp.ne.s32.totalorder %s114, %s115
    %p126 = scmp.eq.s32.totalorder %s17, 0
    %p127 = por %p125, %p126
    %p128 = scmp.ne.s32.totalorder %s114, %s115
    %p129 = scmp.eq.s32.totalorder %s18, 1
    %p130 = por %p128, %p129
    %p132 = scmp.ne.s32.totalorder %s115, %s131
    %p133 = scmp.eq.s32.totalorder %s18, 0
    %p134 = por %p132, %p133
    %s135 = ssub.s32 %s12, %s19
    %p136 = scmp.eq.s32.totalorder %s135, 0
    %s138 = sadd.s32 %s137, 1
    %s139 = scalar_select %p136, %s137, %s138
    %p142 = pneg %p136
    %p143 = scmp.eq.s32.totalorder %s12, 1
    %p144 = por %p142, %p143
    %p145 = scmp.ne.s32.totalorder %s137, %s140
    %p146 = scmp.eq.s32.totalorder %s12, 0
    %p147 = por %p145, %p146
    %p148 = scmp.ne.s32.totalorder %s137, %s140
    %p149 = scmp.eq.s32.totalorder %s17, 1
    %p150 = por %p148, %p149
    %p151 = scmp.ne.s32.totalorder %s140, %s141
    %p152 = scmp.eq.s32.totalorder %s17, 0
    %p153 = por %p151, %p152
    %p154 = scmp.ne.s32.totalorder %s140, %s141
    %p155 = scmp.eq.s32.totalorder %s18, 1
    %p156 = por %p154, %p155
    %p158 = scmp.ne.s32.totalorder %s141, %s157
    %p159 = scmp.eq.s32.totalorder %s18, 0
    %p160 = por %p158, %p159
    %p161 = scmp.le.s32.totalorder 1, %s12
    %p162 = scmp.lt.s32.totalorder %s12, 3
    %p163 = pnand %p161, %p162
    %p164 = pneg %p163
    // Predicated region
    $region9: #{conv_block_forward.4} parent=5 // pred_check
      _
    $region10: #{conv_block_forward.4} parent=5 // pred_check_branch
      %166 = sbr.rel (%p163) target = $region12
    $region11: #{conv_block_forward.4} parent=5 // pred_region
      %s167 = ssub.s32 %s12, 1
      // Predicated region
      $region13: #{conv_block_forward.4} parent=11 // pred_check
        %p168 = pneg %p59
      $region14: #{conv_block_forward.4} parent=11 // pred_check_branch
        %170 = sbr.rel (%p168) target = $region16
      $region15: #{conv_block_forward.4} parent=11 // pred_region
        _
      $region16: #{conv_block_forward.4} parent=11 // pred_fallthru
        _
      // Predicated region
      $region17: #{conv_block_forward.4} parent=11 // pred_check
        %p171 = pneg %p80
      $region18: #{conv_block_forward.4} parent=11 // pred_check_branch
        %173 = sbr.rel (%p171) target = $region20
      $region19: #{conv_block_forward.4} parent=11 // pred_region
        _
      $region20: #{conv_block_forward.4} parent=11 // pred_fallthru
        _
      // Predicated region
      $region21: #{conv_block_forward.4} parent=11 // pred_check
        %p174 = pneg %p101
      $region22: #{conv_block_forward.4} parent=11 // pred_check_branch
        %176 = sbr.rel (%p174) target = $region24
      $region23: #{conv_block_forward.4} parent=11 // pred_region
        _
      $region24: #{conv_block_forward.4} parent=11 // pred_fallthru
        _
    $region12: #{conv_block_forward.4} parent=5 // pred_fallthru
      _
    %p177 = scmp.lt.s32.totalorder %s12, 2
    // Predicated region
    $region25: #{conv_block_forward.4} parent=5 // pred_check
      %p178 = pneg %p177
    $region26: #{conv_block_forward.4} parent=5 // pred_check_branch
      %180 = sbr.rel (%p178) target = $region28
    $region27: #{conv_block_forward.4} parent=5 // pred_region
      // Predicated region
      $region29: #{conv_block_forward.4} parent=27 // pred_check
        %p181 = pneg %p32
      $region30: #{conv_block_forward.4} parent=27 // pred_check_branch
        %183 = sbr.rel (%p181) target = $region32
      $region31: #{conv_block_forward.4} parent=27 // pred_region
        %p184 = scmp.lt.s32.totalorder %s12, 1
        %s185 = scalar_select %p184, %s12, 1
        %s186 = smul.addr %s185, 2
        %s187 = smul.addr %s186, 8
        %s188 = scalar_lea.vmem %s0, %s187
      $region32: #{conv_block_forward.4} parent=27 // pred_fallthru
        _
    $region28: #{conv_block_forward.4} parent=5 // pred_fallthru
      _
    %p189 = scmp.le.s32.totalorder 1, %s12
    %p190 = scmp.lt.s32.totalorder %s12, 3
    %p191 = pnand %p189, %p190
    %p192 = pneg %p191
    // Predicated region
    $region33: #{conv_block_forward.4} parent=5 // pred_check
      _
    $region34: #{conv_block_forward.4} parent=5 // pred_check_branch
      %194 = sbr.rel (%p191) target = $region36
    $region35: #{conv_block_forward.4} parent=5 // pred_region
      %s195 = ssub.s32 %s12, 1
      %p196 = scmp.lt.s32.totalorder %s17, 1
      %s197 = scalar_select %p196, %s17, 1
      %s198 = smul.addr %s197, 2
      %s199 = smul.addr %s198, 8
      %s200 = scalar_lea.vmem %s0, %s199
      %p201 = pneg %p38
      %p202 = pneg %p35
      %p203 = pneg %p59
      %p204 = pneg %p56
      %p205 = pneg %p80
      %p206 = pneg %p77
      %p207 = pneg %p101
      %p208 = pneg %p98
      %p209 = pneg %p127
      %p210 = pneg %p124
      %p211 = scmp.lt.s32.totalorder %s17, 1
      %s212 = scalar_select %p211, %s17, 1
      %s213 = smul.addr %s212, 2
      %s214 = smul.addr %s213, 8
      %s215 = scalar_lea.vmem %s4, %s214
      %p216 = pneg %p153
      %p217 = pneg %p150
      %p218 = scmp.lt.s32.totalorder %s17, 1
      %s219 = scalar_select %p218, %s17, 1
      %s220 = smul.addr %s219, 2
      %s221 = scalar_lea.vmem %s5, %s220
      %p222 = scmp.lt.s32.totalorder %s17, 1
      %s223 = scalar_select %p222, %s17, 1
      %s224 = smul.addr %s223, 2
      %s225 = smul.addr %s224, 8
      %s226 = scalar_lea.vmem %s0, %s225
      %p227 = scmp.lt.s32.totalorder %s17, 1
      %s228 = scalar_select %p227, %s17, 1
      %s229 = smul.addr %s228, 2
      %s230 = smul.addr %s229, 8
      %s231 = scalar_lea.vmem %s4, %s230
      %p232 = scmp.lt.s32.totalorder %s17, 1
      %s233 = scalar_select %p232, %s17, 1
      %s234 = smul.addr %s233, 2
      %s235 = scalar_lea.vmem %s5, %s234
      %v236 = vld [vmem:[%s226] sm:$0xff]
      %v237 = vld [vmem:[%s226 + $0x8] sm:$0xff]
      %v238 = vld [vmem:[%s1] sm:$0xff]
      %240 = vset.pattern.permute.xlu0 0
      %241 = vperm.xlu0 %240, %v238
      %v242 = vpop.permute.xlu0 %241
      %v244 = vmul.f32 %v236, %v242
      %v245 = vmul.f32 %v237, %v242
      %v246 = vld [vmem:[%s2] sm:$0xff]
      %248 = vset.pattern.permute.xlu0 0
      %249 = vperm.xlu0 %248, %v246
      %v250 = vpop.permute.xlu0 %249
      %v252 = vadd.f32 %v244, %v250
      %v253 = vadd.f32 %v245, %v250
      %vm254 = vcmp.gt.f32.partialorder %v252, 0.0
      %vm255 = vcmp.gt.f32.partialorder %v253, 0.0
      %v256 = vmul.f32 %v252, 0.01
      %v257 = vmul.f32 %v253, 0.01
      %v258 = vsel %vm254, %v252, %v256
      %v259 = vsel %vm255, %v253, %v257
      %260 = vxpose.xlu0.b32.start [1/16] %v258, 128
      %261 = vxpose.xlu0.b32.cont [2/16] 0.0, 128
      %262 = vxpose.xlu0.b32.cont [3/16] 0.0, 128
      %263 = vxpose.xlu0.b32.cont [4/16] 0.0, 128
      %264 = vxpose.xlu0.b32.cont [5/16] 0.0, 128
      %265 = vxpose.xlu0.b32.cont [6/16] 0.0, 128
      %266 = vxpose.xlu0.b32.cont [7/16] 0.0, 128
      %267 = vxpose.xlu0.b32.cont [8/16] 0.0, 128
      %268 = vxpose.xlu0.b32.cont [9/16] 0.0, 128
      %269 = vxpose.xlu0.b32.cont [10/16] 0.0, 128
      %270 = vxpose.xlu0.b32.cont [11/16] 0.0, 128
      %271 = vxpose.xlu0.b32.cont [12/16] 0.0, 128
      %272 = vxpose.xlu0.b32.cont [13/16] 0.0, 128
      %273 = vxpose.xlu0.b32.cont [14/16] 0.0, 128
      %274 = vxpose.xlu0.b32.cont [15/16] 0.0, 128
      %275 = vxpose.xlu0.b32.end [16/16] 0.0, 128
      %v276 = vpop.trf.xlu0
      %v277 = vpop.trf.xlu0
      %v278 = vpop.trf.xlu0
      %v279 = vpop.trf.xlu0
      %v280 = vpop.trf.xlu0
      %v281 = vpop.trf.xlu0
      %v282 = vpop.trf.xlu0
      %v283 = vpop.trf.xlu0
      %v284 = vpop.trf.xlu0
      %v285 = vpop.trf.xlu0
      %v286 = vpop.trf.xlu0
      %v287 = vpop.trf.xlu0
      %v288 = vpop.trf.xlu0
      %v289 = vpop.trf.xlu0
      %v290 = vpop.trf.xlu0
      %v291 = vpop.trf.xlu0
      %292 = vxpose.xlu0.b32.start [1/16] %v259, 128
      %293 = vxpose.xlu0.b32.cont [2/16] 0.0, 128
      %294 = vxpose.xlu0.b32.cont [3/16] 0.0, 128
      %295 = vxpose.xlu0.b32.cont [4/16] 0.0, 128
      %296 = vxpose.xlu0.b32.cont [5/16] 0.0, 128
      %297 = vxpose.xlu0.b32.cont [6/16] 0.0, 128
      %298 = vxpose.xlu0.b32.cont [7/16] 0.0, 128
      %299 = vxpose.xlu0.b32.cont [8/16] 0.0, 128
      %300 = vxpose.xlu0.b32.cont [9/16] 0.0, 128
      %301 = vxpose.xlu0.b32.cont [10/16] 0.0, 128
      %302 = vxpose.xlu0.b32.cont [11/16] 0.0, 128
      %303 = vxpose.xlu0.b32.cont [12/16] 0.0, 128
      %304 = vxpose.xlu0.b32.cont [13/16] 0.0, 128
      %305 = vxpose.xlu0.b32.cont [14/16] 0.0, 128
      %306 = vxpose.xlu0.b32.cont [15/16] 0.0, 128
      %307 = vxpose.xlu0.b32.end [16/16] 0.0, 128
      %v308 = vpop.trf.xlu0
      %v309 = vpop.trf.xlu0
      %v310 = vpop.trf.xlu0
      %v311 = vpop.trf.xlu0
      %v312 = vpop.trf.xlu0
      %v313 = vpop.trf.xlu0
      %v314 = vpop.trf.xlu0
      %v315 = vpop.trf.xlu0
      %v316 = vpop.trf.xlu0
      %v317 = vpop.trf.xlu0
      %v318 = vpop.trf.xlu0
      %v319 = vpop.trf.xlu0
      %v320 = vpop.trf.xlu0
      %v321 = vpop.trf.xlu0
      %v322 = vpop.trf.xlu0
      %v323 = vpop.trf.xlu0
      %v324 = vld [vmem:[%s3] sm:$0xff]
      %v325 = vld [vmem:[%s3 + $0x8] sm:$0xff]
      %v326 = vld [vmem:[%s3 + $0x10] sm:$0xff]
      %v327 = vld [vmem:[%s3 + $0x18] sm:$0xff]
      %v328 = vld [vmem:[%s3 + $0x20] sm:$0xff]
      %v329 = vld [vmem:[%s3 + $0x28] sm:$0xff]
      %v330 = vld [vmem:[%s3 + $0x30] sm:$0xff]
      %v331 = vld [vmem:[%s3 + $0x38] sm:$0xff]
      %v332 = vld [vmem:[%s3 + $0x40] sm:$0xff]
      %vm366 = vcmask 1040384
      %v367 = vrot.slane 0.0, 7
      %v368 = vsel %vm366, %v367, %v367
      %v369 = vrot.slane %v276, 7
      %v370 = vrot.slane %v277, 7
      %v371 = vsel %vm366, %v369, %v370
      %v372 = vrot.slane %v278, 7
      %v373 = vrot.slane %v279, 7
      %v374 = vsel %vm366, %v372, %v373
      %v375 = vrot.slane %v280, 7
      %v376 = vrot.slane %v281, 7
      %v377 = vsel %vm366, %v375, %v376
      %v378 = vrot.slane %v282, 7
      %v379 = vrot.slane %v283, 7
      %v380 = vsel %vm366, %v378, %v379
      %v381 = vrot.slane %v284, 7
      %v382 = vrot.slane %v285, 7
      %v383 = vsel %vm366, %v381, %v382
      %v384 = vrot.slane %v286, 7
      %v385 = vrot.slane %v287, 7
      %v386 = vsel %vm366, %v384, %v385
      %v387 = vrot.slane %v288, 7
      %v388 = vrot.slane %v289, 7
      %v389 = vsel %vm366, %v387, %v388
      %v390 = vrot.slane %v290, 7
      %v391 = vrot.slane %v291, 7
      %v392 = vsel %vm366, %v390, %v391
      %v393 = vrot.slane %v308, 7
      %v394 = vrot.slane %v309, 7
      %v395 = vsel %vm366, %v393, %v394
      %v396 = vrot.slane %v310, 7
      %v397 = vrot.slane %v311, 7
      %v398 = vsel %vm366, %v396, %v397
      %v399 = vrot.slane %v312, 7
      %v400 = vrot.slane %v313, 7
      %v401 = vsel %vm366, %v399, %v400
      %v402 = vrot.slane %v314, 7
      %v403 = vrot.slane %v315, 7
      %v404 = vsel %vm366, %v402, %v403
      %v405 = vrot.slane %v316, 7
      %v406 = vrot.slane %v317, 7
      %v407 = vsel %vm366, %v405, %v406
      %v408 = vrot.slane %v318, 7
      %v409 = vrot.slane %v319, 7
      %v410 = vsel %vm366, %v408, %v409
      %v411 = vrot.slane %v320, 7
      %v412 = vrot.slane %v321, 7
      %v413 = vsel %vm366, %v411, %v412
      %v414 = vrot.slane %v322, 7
      %v415 = vrot.slane %v323, 7
      %v416 = vsel %vm366, %v414, %v415
      %v466 = vsel %vm366, 0.0, %v367
      %v467 = vsel %vm366, 0.0, %v369
      %v468 = vsel %vm366, 0.0, %v372
      %v469 = vsel %vm366, 0.0, %v375
      %v470 = vsel %vm366, 0.0, %v378
      %v471 = vsel %vm366, 0.0, %v381
      %v472 = vsel %vm366, 0.0, %v384
      %v473 = vsel %vm366, 0.0, %v387
      %v474 = vsel %vm366, 0.0, %v390
      %v475 = vsel %vm366, 0.0, %v393
      %v476 = vsel %vm366, 0.0, %v396
      %v477 = vsel %vm366, 0.0, %v399
      %v478 = vsel %vm366, 0.0, %v402
      %v479 = vsel %vm366, 0.0, %v405
      %v480 = vsel %vm366, 0.0, %v408
      %v481 = vsel %vm366, 0.0, %v411
      %v482 = vsel %vm366, 0.0, %v414
      %v483 = vsel %vm366, %v367, 0.0
      %v484 = vsel %vm366, %v370, 0.0
      %v485 = vsel %vm366, %v373, 0.0
      %v486 = vsel %vm366, %v376, 0.0
      %v487 = vsel %vm366, %v379, 0.0
      %v488 = vsel %vm366, %v382, 0.0
      %v489 = vsel %vm366, %v385, 0.0
      %v490 = vsel %vm366, %v388, 0.0
      %v491 = vsel %vm366, %v391, 0.0
      %v492 = vsel %vm366, %v394, 0.0
      %v493 = vsel %vm366, %v397, 0.0
      %v494 = vsel %vm366, %v400, 0.0
      %v495 = vsel %vm366, %v403, 0.0
      %v496 = vsel %vm366, %v406, 0.0
      %v497 = vsel %vm366, %v409, 0.0
      %v498 = vsel %vm366, %v412, 0.0
      %v499 = vsel %vm366, %v415, 0.0
      %vm532 = vcmask 1046528
      %v533 = vrot.slane %v466, 1
      %v534 = vrot.slane %v368, 1
      %v535 = vsel %vm532, %v533, %v534
      %v536 = vrot.slane %v483, 1
      %v537 = vsel %vm532, %v534, %v536
      %v538 = vrot.slane %v467, 1
      %v539 = vrot.slane %v371, 1
      %v540 = vsel %vm532, %v538, %v539
      %v541 = vrot.slane %v484, 1
      %v542 = vsel %vm532, %v539, %v541
      %v543 = vrot.slane %v468, 1
      %v544 = vrot.slane %v374, 1
      %v545 = vsel %vm532, %v543, %v544
      %v546 = vrot.slane %v485, 1
      %v547 = vsel %vm532, %v544, %v546
      %v548 = vrot.slane %v469, 1
      %v549 = vrot.slane %v377, 1
      %v550 = vsel %vm532, %v548, %v549
      %v551 = vrot.slane %v486, 1
      %v552 = vsel %vm532, %v549, %v551
      %v553 = vrot.slane %v470, 1
      %v554 = vrot.slane %v380, 1
      %v555 = vsel %vm532, %v553, %v554
      %v556 = vrot.slane %v487, 1
      %v557 = vsel %vm532, %v554, %v556
      %v558 = vrot.slane %v471, 1
      %v559 = vrot.slane %v383, 1
      %v560 = vsel %vm532, %v558, %v559
      %v561 = vrot.slane %v488, 1
      %v562 = vsel %vm532, %v559, %v561
      %v563 = vrot.slane %v472, 1
      %v564 = vrot.slane %v386, 1
      %v565 = vsel %vm532, %v563, %v564
      %v566 = vrot.slane %v489, 1
      %v567 = vsel %vm532, %v564, %v566
      %v568 = vrot.slane %v473, 1
      %v569 = vrot.slane %v389, 1
      %v570 = vsel %vm532, %v568, %v569
      %v571 = vrot.slane %v490, 1
      %v572 = vsel %vm532, %v569, %v571
      %v573 = vrot.slane %v474, 1
      %v574 = vrot.slane %v392, 1
      %v575 = vsel %vm532, %v573, %v574
      %v576 = vrot.slane %v491, 1
      %v577 = vsel %vm532, %v574, %v576
      %v578 = vrot.slane %v475, 1
      %v579 = vrot.slane %v395, 1
      %v580 = vsel %vm532, %v578, %v579
      %v581 = vrot.slane %v492, 1
      %v582 = vsel %vm532, %v579, %v581
      %v583 = vrot.slane %v476, 1
      %v584 = vrot.slane %v398, 1
      %v585 = vsel %vm532, %v583, %v584
      %v586 = vrot.slane %v493, 1
      %v587 = vsel %vm532, %v584, %v586
      %v588 = vrot.slane %v477, 1
      %v589 = vrot.slane %v401, 1
      %v590 = vsel %vm532, %v588, %v589
      %v591 = vrot.slane %v494, 1
      %v592 = vsel %vm532, %v589, %v591
      %v593 = vrot.slane %v478, 1
      %v594 = vrot.slane %v404, 1
      %v595 = vsel %vm532, %v593, %v594
      %v596 = vrot.slane %v495, 1
      %v597 = vsel %vm532, %v594, %v596
      %v598 = vrot.slane %v479, 1
      %v599 = vrot.slane %v407, 1
      %v600 = vsel %vm532, %v598, %v599
      %v601 = vrot.slane %v496, 1
      %v602 = vsel %vm532, %v599, %v601
      %v603 = vrot.slane %v480, 1
      %v604 = vrot.slane %v410, 1
      %v605 = vsel %vm532, %v603, %v604
      %v606 = vrot.slane %v497, 1
      %v607 = vsel %vm532, %v604, %v606
      %v608 = vrot.slane %v481, 1
      %v609 = vrot.slane %v413, 1
      %v610 = vsel %vm532, %v608, %v609
      %v611 = vrot.slane %v498, 1
      %v612 = vsel %vm532, %v609, %v611
      %613 = vrot.lane.b32.xlu0 %v535, 8
      %v614 = vpop.permute.xlu0 %613
      %615 = vrot.lane.b32.xlu0 %v537, 8
      %v616 = vpop.permute.xlu0 %615
      %617 = vrot.lane.b32.xlu0 %v540, 8
      %v618 = vpop.permute.xlu0 %617
      %619 = vrot.lane.b32.xlu0 %v542, 8
      %v620 = vpop.permute.xlu0 %619
      %621 = vrot.lane.b32.xlu0 %v545, 8
      %v622 = vpop.permute.xlu0 %621
      %623 = vrot.lane.b32.xlu0 %v547, 8
      %v624 = vpop.permute.xlu0 %623
      %625 = vrot.lane.b32.xlu0 %v550, 8
      %v626 = vpop.permute.xlu0 %625
      %627 = vrot.lane.b32.xlu0 %v552, 8
      %v628 = vpop.permute.xlu0 %627
      %629 = vrot.lane.b32.xlu0 %v555, 8
      %v630 = vpop.permute.xlu0 %629
      %631 = vrot.lane.b32.xlu0 %v557, 8
      %v632 = vpop.permute.xlu0 %631
      %633 = vrot.lane.b32.xlu0 %v560, 8
      %v634 = vpop.permute.xlu0 %633
      %635 = vrot.lane.b32.xlu0 %v562, 8
      %v636 = vpop.permute.xlu0 %635
      %637 = vrot.lane.b32.xlu0 %v565, 8
      %v638 = vpop.permute.xlu0 %637
      %639 = vrot.lane.b32.xlu0 %v567, 8
      %v640 = vpop.permute.xlu0 %639
      %641 = vrot.lane.b32.xlu0 %v570, 8
      %v642 = vpop.permute.xlu0 %641
      %643 = vrot.lane.b32.xlu0 %v572, 8
      %v644 = vpop.permute.xlu0 %643
      %645 = vrot.lane.b32.xlu0 %v575, 8
      %v646 = vpop.permute.xlu0 %645
      %647 = vrot.lane.b32.xlu0 %v577, 8
      %v648 = vpop.permute.xlu0 %647
      %649 = vrot.lane.b32.xlu0 %v580, 8
      %v650 = vpop.permute.xlu0 %649
      %651 = vrot.lane.b32.xlu0 %v582, 8
      %v652 = vpop.permute.xlu0 %651
      %653 = vrot.lane.b32.xlu0 %v585, 8
      %v654 = vpop.permute.xlu0 %653
      %655 = vrot.lane.b32.xlu0 %v587, 8
      %v656 = vpop.permute.xlu0 %655
      %657 = vrot.lane.b32.xlu0 %v590, 8
      %v658 = vpop.permute.xlu0 %657
      %659 = vrot.lane.b32.xlu0 %v592, 8
      %v660 = vpop.permute.xlu0 %659
      %661 = vrot.lane.b32.xlu0 %v595, 8
      %v662 = vpop.permute.xlu0 %661
      %663 = vrot.lane.b32.xlu0 %v597, 8
      %v664 = vpop.permute.xlu0 %663
      %665 = vrot.lane.b32.xlu0 %v600, 8
      %v666 = vpop.permute.xlu0 %665
      %667 = vrot.lane.b32.xlu0 %v602, 8
      %v668 = vpop.permute.xlu0 %667
      %669 = vrot.lane.b32.xlu0 %v605, 8
      %v670 = vpop.permute.xlu0 %669
      %671 = vrot.lane.b32.xlu0 %v607, 8
      %v672 = vpop.permute.xlu0 %671
      %673 = vrot.lane.b32.xlu0 %v610, 8
      %v674 = vpop.permute.xlu0 %673
      %675 = vrot.lane.b32.xlu0 %v612, 8
      %v676 = vpop.permute.xlu0 %675
      %vm709 = vcmask 1045504
      %v710 = vrot.slane %v466, 2
      %v711 = vrot.slane %v368, 2
      %v712 = vsel %vm709, %v710, %v711
      %v713 = vrot.slane %v483, 2
      %v714 = vsel %vm709, %v711, %v713
      %v715 = vrot.slane %v467, 2
      %v716 = vrot.slane %v371, 2
      %v717 = vsel %vm709, %v715, %v716
      %v718 = vrot.slane %v484, 2
      %v719 = vsel %vm709, %v716, %v718
      %v720 = vrot.slane %v468, 2
      %v721 = vrot.slane %v374, 2
      %v722 = vsel %vm709, %v720, %v721
      %v723 = vrot.slane %v485, 2
      %v724 = vsel %vm709, %v721, %v723
      %v725 = vrot.slane %v469, 2
      %v726 = vrot.slane %v377, 2
      %v727 = vsel %vm709, %v725, %v726
      %v728 = vrot.slane %v486, 2
      %v729 = vsel %vm709, %v726, %v728
      %v730 = vrot.slane %v470, 2
      %v731 = vrot.slane %v380, 2
      %v732 = vsel %vm709, %v730, %v731
      %v733 = vrot.slane %v487, 2
      %v734 = vsel %vm709, %v731, %v733
      %v735 = vrot.slane %v471, 2
      %v736 = vrot.slane %v383, 2
      %v737 = vsel %vm709, %v735, %v736
      %v738 = vrot.slane %v488, 2
      %v739 = vsel %vm709, %v736, %v738
      %v740 = vrot.slane %v472, 2
      %v741 = vrot.slane %v386, 2
      %v742 = vsel %vm709, %v740, %v741
      %v743 = vrot.slane %v489, 2
      %v744 = vsel %vm709, %v741, %v743
      %v745 = vrot.slane %v473, 2
      %v746 = vrot.slane %v389, 2
      %v747 = vsel %vm709, %v745, %v746
      %v748 = vrot.slane %v490, 2
      %v749 = vsel %vm709, %v746, %v748
      %v750 = vrot.slane %v474, 2
      %v751 = vrot.slane %v392, 2
      %v752 = vsel %vm709, %v750, %v751
      %v753 = vrot.slane %v491, 2
      %v754 = vsel %vm709, %v751, %v753
      %v755 = vrot.slane %v475, 2
      %v756 = vrot.slane %v395, 2
      %v757 = vsel %vm709, %v755, %v756
      %v758 = vrot.slane %v492, 2
      %v759 = vsel %vm709, %v756, %v758
      %v760 = vrot.slane %v476, 2
      %v761 = vrot.slane %v398, 2
      %v762 = vsel %vm709, %v760, %v761
      %v763 = vrot.slane %v493, 2
      %v764 = vsel %vm709, %v761, %v763
      %v765 = vrot.slane %v477, 2
      %v766 = vrot.slane %v401, 2
      %v767 = vsel %vm709, %v765, %v766
      %v768 = vrot.slane %v494, 2
      %v769 = vsel %vm709, %v766, %v768
      %v770 = vrot.slane %v478, 2
      %v771 = vrot.slane %v404, 2
      %v772 = vsel %vm709, %v770, %v771
      %v773 = vrot.slane %v495, 2
      %v774 = vsel %vm709, %v771, %v773
      %v775 = vrot.slane %v479, 2
      %v776 = vrot.slane %v407, 2
      %v777 = vsel %vm709, %v775, %v776
      %v778 = vrot.slane %v496, 2
      %v779 = vsel %vm709, %v776, %v778
      %v780 = vrot.slane %v480, 2
      %v781 = vrot.slane %v410, 2
      %v782 = vsel %vm709, %v780, %v781
      %v783 = vrot.slane %v497, 2
      %v784 = vsel %vm709, %v781, %v783
      %v785 = vrot.slane %v481, 2
      %v786 = vrot.slane %v413, 2
      %v787 = vsel %vm709, %v785, %v786
      %v788 = vrot.slane %v498, 2
      %v789 = vsel %vm709, %v786, %v788
      %790 = vrot.lane.b32.xlu0 %v712, 16
      %v791 = vpop.permute.xlu0 %790
      %792 = vrot.lane.b32.xlu0 %v714, 16
      %v793 = vpop.permute.xlu0 %792
      %794 = vrot.lane.b32.xlu0 %v717, 16
      %v795 = vpop.permute.xlu0 %794
      %796 = vrot.lane.b32.xlu0 %v719, 16
      %v797 = vpop.permute.xlu0 %796
      %798 = vrot.lane.b32.xlu0 %v722, 16
      %v799 = vpop.permute.xlu0 %798
      %800 = vrot.lane.b32.xlu0 %v724, 16
      %v801 = vpop.permute.xlu0 %800
      %802 = vrot.lane.b32.xlu0 %v727, 16
      %v803 = vpop.permute.xlu0 %802
      %804 = vrot.lane.b32.xlu0 %v729, 16
      %v805 = vpop.permute.xlu0 %804
      %806 = vrot.lane.b32.xlu0 %v732, 16
      %v807 = vpop.permute.xlu0 %806
      %808 = vrot.lane.b32.xlu0 %v734, 16
      %v809 = vpop.permute.xlu0 %808
      %810 = vrot.lane.b32.xlu0 %v737, 16
      %v811 = vpop.permute.xlu0 %810
      %812 = vrot.lane.b32.xlu0 %v739, 16
      %v813 = vpop.permute.xlu0 %812
      %814 = vrot.lane.b32.xlu0 %v742, 16
      %v815 = vpop.permute.xlu0 %814
      %816 = vrot.lane.b32.xlu0 %v744, 16
      %v817 = vpop.permute.xlu0 %816
      %818 = vrot.lane.b32.xlu0 %v747, 16
      %v819 = vpop.permute.xlu0 %818
      %820 = vrot.lane.b32.xlu0 %v749, 16
      %v821 = vpop.permute.xlu0 %820
      %822 = vrot.lane.b32.xlu0 %v752, 16
      %v823 = vpop.permute.xlu0 %822
      %824 = vrot.lane.b32.xlu0 %v754, 16
      %v825 = vpop.permute.xlu0 %824
      %826 = vrot.lane.b32.xlu0 %v757, 16
      %v827 = vpop.permute.xlu0 %826
      %828 = vrot.lane.b32.xlu0 %v759, 16
      %v829 = vpop.permute.xlu0 %828
      %830 = vrot.lane.b32.xlu0 %v762, 16
      %v831 = vpop.permute.xlu0 %830
      %832 = vrot.lane.b32.xlu0 %v764, 16
      %v833 = vpop.permute.xlu0 %832
      %834 = vrot.lane.b32.xlu0 %v767, 16
      %v835 = vpop.permute.xlu0 %834
      %836 = vrot.lane.b32.xlu0 %v769, 16
      %v837 = vpop.permute.xlu0 %836
      %838 = vrot.lane.b32.xlu0 %v772, 16
      %v839 = vpop.permute.xlu0 %838
      %840 = vrot.lane.b32.xlu0 %v774, 16
      %v841 = vpop.permute.xlu0 %840
      %842 = vrot.lane.b32.xlu0 %v777, 16
      %v843 = vpop.permute.xlu0 %842
      %844 = vrot.lane.b32.xlu0 %v779, 16
      %v845 = vpop.permute.xlu0 %844
      %846 = vrot.lane.b32.xlu0 %v782, 16
      %v847 = vpop.permute.xlu0 %846
      %848 = vrot.lane.b32.xlu0 %v784, 16
      %v849 = vpop.permute.xlu0 %848
      %850 = vrot.lane.b32.xlu0 %v787, 16
      %v851 = vpop.permute.xlu0 %850
      %852 = vrot.lane.b32.xlu0 %v789, 16
      %v853 = vpop.permute.xlu0 %852
      %887 = vrot.lane.b32.xlu0 %v467, 24
      %v888 = vpop.permute.xlu0 %887
      %889 = vrot.lane.b32.xlu0 %v371, 24
      %v890 = vpop.permute.xlu0 %889
      %891 = vrot.lane.b32.xlu0 %v468, 24
      %v892 = vpop.permute.xlu0 %891
      %893 = vrot.lane.b32.xlu0 %v374, 24
      %v894 = vpop.permute.xlu0 %893
      %895 = vrot.lane.b32.xlu0 %v469, 24
      %v896 = vpop.permute.xlu0 %895
      %897 = vrot.lane.b32.xlu0 %v377, 24
      %v898 = vpop.permute.xlu0 %897
      %899 = vrot.lane.b32.xlu0 %v470, 24
      %v900 = vpop.permute.xlu0 %899
      %901 = vrot.lane.b32.xlu0 %v380, 24
      %v902 = vpop.permute.xlu0 %901
      %903 = vrot.lane.b32.xlu0 %v471, 24
      %v904 = vpop.permute.xlu0 %903
      %905 = vrot.lane.b32.xlu0 %v383, 24
      %v906 = vpop.permute.xlu0 %905
      %907 = vrot.lane.b32.xlu0 %v472, 24
      %v908 = vpop.permute.xlu0 %907
      %909 = vrot.lane.b32.xlu0 %v386, 24
      %v910 = vpop.permute.xlu0 %909
      %911 = vrot.lane.b32.xlu0 %v473, 24
      %v912 = vpop.permute.xlu0 %911
      %913 = vrot.lane.b32.xlu0 %v389, 24
      %v914 = vpop.permute.xlu0 %913
      %915 = vrot.lane.b32.xlu0 %v474, 24
      %v916 = vpop.permute.xlu0 %915
      %917 = vrot.lane.b32.xlu0 %v392, 24
      %v918 = vpop.permute.xlu0 %917
      %919 = vrot.lane.b32.xlu0 %v475, 24
      %v920 = vpop.permute.xlu0 %919
      %921 = vrot.lane.b32.xlu0 %v395, 24
      %v922 = vpop.permute.xlu0 %921
      %923 = vrot.lane.b32.xlu0 %v476, 24
      %v924 = vpop.permute.xlu0 %923
      %925 = vrot.lane.b32.xlu0 %v398, 24
      %v926 = vpop.permute.xlu0 %925
      %927 = vrot.lane.b32.xlu0 %v477, 24
      %v928 = vpop.permute.xlu0 %927
      %929 = vrot.lane.b32.xlu0 %v401, 24
      %v930 = vpop.permute.xlu0 %929
      %931 = vrot.lane.b32.xlu0 %v478, 24
      %v932 = vpop.permute.xlu0 %931
      %933 = vrot.lane.b32.xlu0 %v404, 24
      %v934 = vpop.permute.xlu0 %933
      %935 = vrot.lane.b32.xlu0 %v479, 24
      %v936 = vpop.permute.xlu0 %935
      %937 = vrot.lane.b32.xlu0 %v407, 24
      %v938 = vpop.permute.xlu0 %937
      %939 = vrot.lane.b32.xlu0 %v480, 24
      %v940 = vpop.permute.xlu0 %939
      %941 = vrot.lane.b32.xlu0 %v410, 24
      %v942 = vpop.permute.xlu0 %941
      %943 = vrot.lane.b32.xlu0 %v481, 24
      %v944 = vpop.permute.xlu0 %943
      %945 = vrot.lane.b32.xlu0 %v413, 24
      %v946 = vpop.permute.xlu0 %945
      %947 = vrot.lane.b32.xlu0 %v482, 24
      %v948 = vpop.permute.xlu0 %947
      %949 = vrot.lane.b32.xlu0 %v416, 24
      %v950 = vpop.permute.xlu0 %949
      %v984 = vrot.slane %v482, 1
      %v985 = vrot.slane %v416, 1
      %v986 = vsel %vm532, %v984, %v985
      %v987 = vrot.slane %v499, 1
      %v988 = vsel %vm532, %v985, %v987
      %989 = vrot.lane.b32.xlu0 %v540, 32
      %v990 = vpop.permute.xlu0 %989
      %991 = vrot.lane.b32.xlu0 %v542, 32
      %v992 = vpop.permute.xlu0 %991
      %993 = vrot.lane.b32.xlu0 %v545, 32
      %v994 = vpop.permute.xlu0 %993
      %995 = vrot.lane.b32.xlu0 %v547, 32
      %v996 = vpop.permute.xlu0 %995
      %997 = vrot.lane.b32.xlu0 %v550, 32
      %v998 = vpop.permute.xlu0 %997
      %999 = vrot.lane.b32.xlu0 %v552, 32
      %v1000 = vpop.permute.xlu0 %999
      %1001 = vrot.lane.b32.xlu0 %v555, 32
      %v1002 = vpop.permute.xlu0 %1001
      %1003 = vrot.lane.b32.xlu0 %v557, 32
      %v1004 = vpop.permute.xlu0 %1003
      %1005 = vrot.lane.b32.xlu0 %v560, 32
      %v1006 = vpop.permute.xlu0 %1005
      %1007 = vrot.lane.b32.xlu0 %v562, 32
      %v1008 = vpop.permute.xlu0 %1007
      %1009 = vrot.lane.b32.xlu0 %v565, 32
      %v1010 = vpop.permute.xlu0 %1009
      %1011 = vrot.lane.b32.xlu0 %v567, 32
      %v1012 = vpop.permute.xlu0 %1011
      %1013 = vrot.lane.b32.xlu0 %v570, 32
      %v1014 = vpop.permute.xlu0 %1013
      %1015 = vrot.lane.b32.xlu0 %v572, 32
      %v1016 = vpop.permute.xlu0 %1015
      %1017 = vrot.lane.b32.xlu0 %v575, 32
      %v1018 = vpop.permute.xlu0 %1017
      %1019 = vrot.lane.b32.xlu0 %v577, 32
      %v1020 = vpop.permute.xlu0 %1019
      %1021 = vrot.lane.b32.xlu0 %v580, 32
      %v1022 = vpop.permute.xlu0 %1021
      %1023 = vrot.lane.b32.xlu0 %v582, 32
      %v1024 = vpop.permute.xlu0 %1023
      %1025 = vrot.lane.b32.xlu0 %v585, 32
      %v1026 = vpop.permute.xlu0 %1025
      %1027 = vrot.lane.b32.xlu0 %v587, 32
      %v1028 = vpop.permute.xlu0 %1027
      %1029 = vrot.lane.b32.xlu0 %v590, 32
      %v1030 = vpop.permute.xlu0 %1029
      %1031 = vrot.lane.b32.xlu0 %v592, 32
      %v1032 = vpop.permute.xlu0 %1031
      %1033 = vrot.lane.b32.xlu0 %v595, 32
      %v1034 = vpop.permute.xlu0 %1033
      %1035 = vrot.lane.b32.xlu0 %v597, 32
      %v1036 = vpop.permute.xlu0 %1035
      %1037 = vrot.lane.b32.xlu0 %v600, 32
      %v1038 = vpop.permute.xlu0 %1037
      %1039 = vrot.lane.b32.xlu0 %v602, 32
      %v1040 = vpop.permute.xlu0 %1039
      %1041 = vrot.lane.b32.xlu0 %v605, 32
      %v1042 = vpop.permute.xlu0 %1041
      %1043 = vrot.lane.b32.xlu0 %v607, 32
      %v1044 = vpop.permute.xlu0 %1043
      %1045 = vrot.lane.b32.xlu0 %v610, 32
      %v1046 = vpop.permute.xlu0 %1045
      %1047 = vrot.lane.b32.xlu0 %v612, 32
      %v1048 = vpop.permute.xlu0 %1047
      %1049 = vrot.lane.b32.xlu0 %v986, 32
      %v1050 = vpop.permute.xlu0 %1049
      %1051 = vrot.lane.b32.xlu0 %v988, 32
      %v1052 = vpop.permute.xlu0 %1051
      %v1085 = vrot.slane %v482, 2
      %v1086 = vrot.slane %v416, 2
      %v1087 = vsel %vm709, %v1085, %v1086
      %v1088 = vrot.slane %v499, 2
      %v1089 = vsel %vm709, %v1086, %v1088
      %1090 = vrot.lane.b32.xlu0 %v717, 40
      %v1091 = vpop.permute.xlu0 %1090
      %1092 = vrot.lane.b32.xlu0 %v719, 40
      %v1093 = vpop.permute.xlu0 %1092
      %1094 = vrot.lane.b32.xlu0 %v722, 40
      %v1095 = vpop.permute.xlu0 %1094
      %1096 = vrot.lane.b32.xlu0 %v724, 40
      %v1097 = vpop.permute.xlu0 %1096
      %1098 = vrot.lane.b32.xlu0 %v727, 40
      %v1099 = vpop.permute.xlu0 %1098
      %1100 = vrot.lane.b32.xlu0 %v729, 40
      %v1101 = vpop.permute.xlu0 %1100
      %1102 = vrot.lane.b32.xlu0 %v732, 40
      %v1103 = vpop.permute.xlu0 %1102
      %1104 = vrot.lane.b32.xlu0 %v734, 40
      %v1105 = vpop.permute.xlu0 %1104
      %1106 = vrot.lane.b32.xlu0 %v737, 40
      %v1107 = vpop.permute.xlu0 %1106
      %1108 = vrot.lane.b32.xlu0 %v739, 40
      %v1109 = vpop.permute.xlu0 %1108
      %1110 = vrot.lane.b32.xlu0 %v742, 40
      %v1111 = vpop.permute.xlu0 %1110
      %1112 = vrot.lane.b32.xlu0 %v744, 40
      %v1113 = vpop.permute.xlu0 %1112
      %1114 = vrot.lane.b32.xlu0 %v747, 40
      %v1115 = vpop.permute.xlu0 %1114
      %1116 = vrot.lane.b32.xlu0 %v749, 40
      %v1117 = vpop.permute.xlu0 %1116
      %1118 = vrot.lane.b32.xlu0 %v752, 40
      %v1119 = vpop.permute.xlu0 %1118
      %1120 = vrot.lane.b32.xlu0 %v754, 40
      %v1121 = vpop.permute.xlu0 %1120
      %1122 = vrot.lane.b32.xlu0 %v757, 40
      %v1123 = vpop.permute.xlu0 %1122
      %1124 = vrot.lane.b32.xlu0 %v759, 40
      %v1125 = vpop.permute.xlu0 %1124
      %1126 = vrot.lane.b32.xlu0 %v762, 40
      %v1127 = vpop.permute.xlu0 %1126
      %1128 = vrot.lane.b32.xlu0 %v764, 40
      %v1129 = vpop.permute.xlu0 %1128
      %1130 = vrot.lane.b32.xlu0 %v767, 40
      %v1131 = vpop.permute.xlu0 %1130
      %1132 = vrot.lane.b32.xlu0 %v769, 40
      %v1133 = vpop.permute.xlu0 %1132
      %1134 = vrot.lane.b32.xlu0 %v772, 40
      %v1135 = vpop.permute.xlu0 %1134
      %1136 = vrot.lane.b32.xlu0 %v774, 40
      %v1137 = vpop.permute.xlu0 %1136
      %1138 = vrot.lane.b32.xlu0 %v777, 40
      %v1139 = vpop.permute.xlu0 %1138
      %1140 = vrot.lane.b32.xlu0 %v779, 40
      %v1141 = vpop.permute.xlu0 %1140
      %1142 = vrot.lane.b32.xlu0 %v782, 40
      %v1143 = vpop.permute.xlu0 %1142
      %1144 = vrot.lane.b32.xlu0 %v784, 40
      %v1145 = vpop.permute.xlu0 %1144
      %1146 = vrot.lane.b32.xlu0 %v787, 40
      %v1147 = vpop.permute.xlu0 %1146
      %1148 = vrot.lane.b32.xlu0 %v789, 40
      %v1149 = vpop.permute.xlu0 %1148
      %1150 = vrot.lane.b32.xlu0 %v1087, 40
      %v1151 = vpop.permute.xlu0 %1150
      %1152 = vrot.lane.b32.xlu0 %v1089, 40
      %v1153 = vpop.permute.xlu0 %1152
      %1186 = vrot.lane.b32.xlu0 %v468, 48
      %v1187 = vpop.permute.xlu0 %1186
      %1188 = vrot.lane.b32.xlu0 %v374, 48
      %v1189 = vpop.permute.xlu0 %1188
      %1190 = vrot.lane.b32.xlu0 %v469, 48
      %v1191 = vpop.permute.xlu0 %1190
      %1192 = vrot.lane.b32.xlu0 %v377, 48
      %v1193 = vpop.permute.xlu0 %1192
      %1194 = vrot.lane.b32.xlu0 %v470, 48
      %v1195 = vpop.permute.xlu0 %1194
      %1196 = vrot.lane.b32.xlu0 %v380, 48
      %v1197 = vpop.permute.xlu0 %1196
      %1198 = vrot.lane.b32.xlu0 %v471, 48
      %v1199 = vpop.permute.xlu0 %1198
      %1200 = vrot.lane.b32.xlu0 %v383, 48
      %v1201 = vpop.permute.xlu0 %1200
      %1202 = vrot.lane.b32.xlu0 %v472, 48
      %v1203 = vpop.permute.xlu0 %1202
      %1204 = vrot.lane.b32.xlu0 %v386, 48
      %v1205 = vpop.permute.xlu0 %1204
      %1206 = vrot.lane.b32.xlu0 %v473, 48
      %v1207 = vpop.permute.xlu0 %1206
      %1208 = vrot.lane.b32.xlu0 %v389, 48
      %v1209 = vpop.permute.xlu0 %1208
      %1210 = vrot.lane.b32.xlu0 %v474, 48
      %v1211 = vpop.permute.xlu0 %1210
      %1212 = vrot.lane.b32.xlu0 %v392, 48
      %v1213 = vpop.permute.xlu0 %1212
      %1214 = vrot.lane.b32.xlu0 %v475, 48
      %v1215 = vpop.permute.xlu0 %1214
      %1216 = vrot.lane.b32.xlu0 %v395, 48
      %v1217 = vpop.permute.xlu0 %1216
      %1218 = vrot.lane.b32.xlu0 %v476, 48
      %v1219 = vpop.permute.xlu0 %1218
      %1220 = vrot.lane.b32.xlu0 %v398, 48
      %v1221 = vpop.permute.xlu0 %1220
      %1222 = vrot.lane.b32.xlu0 %v477, 48
      %v1223 = vpop.permute.xlu0 %1222
      %1224 = vrot.lane.b32.xlu0 %v401, 48
      %v1225 = vpop.permute.xlu0 %1224
      %1226 = vrot.lane.b32.xlu0 %v478, 48
      %v1227 = vpop.permute.xlu0 %1226
      %1228 = vrot.lane.b32.xlu0 %v404, 48
      %v1229 = vpop.permute.xlu0 %1228
      %1230 = vrot.lane.b32.xlu0 %v479, 48
      %v1231 = vpop.permute.xlu0 %1230
      %1232 = vrot.lane.b32.xlu0 %v407, 48
      %v1233 = vpop.permute.xlu0 %1232
      %1234 = vrot.lane.b32.xlu0 %v480, 48
      %v1235 = vpop.permute.xlu0 %1234
      %1236 = vrot.lane.b32.xlu0 %v410, 48
      %v1237 = vpop.permute.xlu0 %1236
      %1238 = vrot.lane.b32.xlu0 %v481, 48
      %v1239 = vpop.permute.xlu0 %1238
      %1240 = vrot.lane.b32.xlu0 %v413, 48
      %v1241 = vpop.permute.xlu0 %1240
      %1242 = vrot.lane.b32.xlu0 %v482, 48
      %v1243 = vpop.permute.xlu0 %1242
      %1244 = vrot.lane.b32.xlu0 %v416, 48
      %v1245 = vpop.permute.xlu0 %1244
      %1246 = vrot.lane.b32.xlu0 %v466, 48
      %v1247 = vpop.permute.xlu0 %1246
      %1248 = vrot.lane.b32.xlu0 %v368, 48
      %v1249 = vpop.permute.xlu0 %1248
      %1282 = vrot.lane.b32.xlu0 %v545, 56
      %v1283 = vpop.permute.xlu0 %1282
      %1284 = vrot.lane.b32.xlu0 %v547, 56
      %v1285 = vpop.permute.xlu0 %1284
      %1286 = vrot.lane.b32.xlu0 %v550, 56
      %v1287 = vpop.permute.xlu0 %1286
      %1288 = vrot.lane.b32.xlu0 %v552, 56
      %v1289 = vpop.permute.xlu0 %1288
      %1290 = vrot.lane.b32.xlu0 %v555, 56
      %v1291 = vpop.permute.xlu0 %1290
      %1292 = vrot.lane.b32.xlu0 %v557, 56
      %v1293 = vpop.permute.xlu0 %1292
      %1294 = vrot.lane.b32.xlu0 %v560, 56
      %v1295 = vpop.permute.xlu0 %1294
      %1296 = vrot.lane.b32.xlu0 %v562, 56
      %v1297 = vpop.permute.xlu0 %1296
      %1298 = vrot.lane.b32.xlu0 %v565, 56
      %v1299 = vpop.permute.xlu0 %1298
      %1300 = vrot.lane.b32.xlu0 %v567, 56
      %v1301 = vpop.permute.xlu0 %1300
      %1302 = vrot.lane.b32.xlu0 %v570, 56
      %v1303 = vpop.permute.xlu0 %1302
      %1304 = vrot.lane.b32.xlu0 %v572, 56
      %v1305 = vpop.permute.xlu0 %1304
      %1306 = vrot.lane.b32.xlu0 %v575, 56
      %v1307 = vpop.permute.xlu0 %1306
      %1308 = vrot.lane.b32.xlu0 %v577, 56
      %v1309 = vpop.permute.xlu0 %1308
      %1310 = vrot.lane.b32.xlu0 %v580, 56
      %v1311 = vpop.permute.xlu0 %1310
      %1312 = vrot.lane.b32.xlu0 %v582, 56
      %v1313 = vpop.permute.xlu0 %1312
      %1314 = vrot.lane.b32.xlu0 %v585, 56
      %v1315 = vpop.permute.xlu0 %1314
      %1316 = vrot.lane.b32.xlu0 %v587, 56
      %v1317 = vpop.permute.xlu0 %1316
      %1318 = vrot.lane.b32.xlu0 %v590, 56
      %v1319 = vpop.permute.xlu0 %1318
      %1320 = vrot.lane.b32.xlu0 %v592, 56
      %v1321 = vpop.permute.xlu0 %1320
      %1322 = vrot.lane.b32.xlu0 %v595, 56
      %v1323 = vpop.permute.xlu0 %1322
      %1324 = vrot.lane.b32.xlu0 %v597, 56
      %v1325 = vpop.permute.xlu0 %1324
      %1326 = vrot.lane.b32.xlu0 %v600, 56
      %v1327 = vpop.permute.xlu0 %1326
      %1328 = vrot.lane.b32.xlu0 %v602, 56
      %v1329 = vpop.permute.xlu0 %1328
      %1330 = vrot.lane.b32.xlu0 %v605, 56
      %v1331 = vpop.permute.xlu0 %1330
      %1332 = vrot.lane.b32.xlu0 %v607, 56
      %v1333 = vpop.permute.xlu0 %1332
      %1334 = vrot.lane.b32.xlu0 %v610, 56
      %v1335 = vpop.permute.xlu0 %1334
      %1336 = vrot.lane.b32.xlu0 %v612, 56
      %v1337 = vpop.permute.xlu0 %1336
      %1338 = vrot.lane.b32.xlu0 %v986, 56
      %v1339 = vpop.permute.xlu0 %1338
      %1340 = vrot.lane.b32.xlu0 %v988, 56
      %v1341 = vpop.permute.xlu0 %1340
      %1342 = vrot.lane.b32.xlu0 %v535, 56
      %v1343 = vpop.permute.xlu0 %1342
      %1344 = vrot.lane.b32.xlu0 %v537, 56
      %v1345 = vpop.permute.xlu0 %1344
      %1378 = vrot.lane.b32.xlu0 %v722, 64
      %v1379 = vpop.permute.xlu0 %1378
      %1380 = vrot.lane.b32.xlu0 %v724, 64
      %v1381 = vpop.permute.xlu0 %1380
      %1382 = vrot.lane.b32.xlu0 %v727, 64
      %v1383 = vpop.permute.xlu0 %1382
      %1384 = vrot.lane.b32.xlu0 %v729, 64
      %v1385 = vpop.permute.xlu0 %1384
      %1386 = vrot.lane.b32.xlu0 %v732, 64
      %v1387 = vpop.permute.xlu0 %1386
      %1388 = vrot.lane.b32.xlu0 %v734, 64
      %v1389 = vpop.permute.xlu0 %1388
      %1390 = vrot.lane.b32.xlu0 %v737, 64
      %v1391 = vpop.permute.xlu0 %1390
      %1392 = vrot.lane.b32.xlu0 %v739, 64
      %v1393 = vpop.permute.xlu0 %1392
      %1394 = vrot.lane.b32.xlu0 %v742, 64
      %v1395 = vpop.permute.xlu0 %1394
      %1396 = vrot.lane.b32.xlu0 %v744, 64
      %v1397 = vpop.permute.xlu0 %1396
      %1398 = vrot.lane.b32.xlu0 %v747, 64
      %v1399 = vpop.permute.xlu0 %1398
      %1400 = vrot.lane.b32.xlu0 %v749, 64
      %v1401 = vpop.permute.xlu0 %1400
      %1402 = vrot.lane.b32.xlu0 %v752, 64
      %v1403 = vpop.permute.xlu0 %1402
      %1404 = vrot.lane.b32.xlu0 %v754, 64
      %v1405 = vpop.permute.xlu0 %1404
      %1406 = vrot.lane.b32.xlu0 %v757, 64
      %v1407 = vpop.permute.xlu0 %1406
      %1408 = vrot.lane.b32.xlu0 %v759, 64
      %v1409 = vpop.permute.xlu0 %1408
      %1410 = vrot.lane.b32.xlu0 %v762, 64
      %v1411 = vpop.permute.xlu0 %1410
      %1412 = vrot.lane.b32.xlu0 %v764, 64
      %v1413 = vpop.permute.xlu0 %1412
      %1414 = vrot.lane.b32.xlu0 %v767, 64
      %v1415 = vpop.permute.xlu0 %1414
      %1416 = vrot.lane.b32.xlu0 %v769, 64
      %v1417 = vpop.permute.xlu0 %1416
      %1418 = vrot.lane.b32.xlu0 %v772, 64
      %v1419 = vpop.permute.xlu0 %1418
      %1420 = vrot.lane.b32.xlu0 %v774, 64
      %v1421 = vpop.permute.xlu0 %1420
      %1422 = vrot.lane.b32.xlu0 %v777, 64
      %v1423 = vpop.permute.xlu0 %1422
      %1424 = vrot.lane.b32.xlu0 %v779, 64
      %v1425 = vpop.permute.xlu0 %1424
      %1426 = vrot.lane.b32.xlu0 %v782, 64
      %v1427 = vpop.permute.xlu0 %1426
      %1428 = vrot.lane.b32.xlu0 %v784, 64
      %v1429 = vpop.permute.xlu0 %1428
      %1430 = vrot.lane.b32.xlu0 %v787, 64
      %v1431 = vpop.permute.xlu0 %1430
      %1432 = vrot.lane.b32.xlu0 %v789, 64
      %v1433 = vpop.permute.xlu0 %1432
      %1434 = vrot.lane.b32.xlu0 %v1087, 64
      %v1435 = vpop.permute.xlu0 %1434
      %1436 = vrot.lane.b32.xlu0 %v1089, 64
      %v1437 = vpop.permute.xlu0 %1436
      %1438 = vrot.lane.b32.xlu0 %v712, 64
      %v1439 = vpop.permute.xlu0 %1438
      %1440 = vrot.lane.b32.xlu0 %v714, 64
      %v1441 = vpop.permute.xlu0 %1440
      %vm1474 = vcmask 64512
      %v1475 = vsel %vm1474, %v466, %v614
      %v1476 = vsel %vm1474, %v368, %v616
      %v1477 = vsel %vm1474, %v467, %v618
      %v1478 = vsel %vm1474, %v371, %v620
      %v1479 = vsel %vm1474, %v468, %v622
      %v1480 = vsel %vm1474, %v374, %v624
      %v1481 = vsel %vm1474, %v469, %v626
      %v1482 = vsel %vm1474, %v377, %v628
      %v1483 = vsel %vm1474, %v470, %v630
      %v1484 = vsel %vm1474, %v380, %v632
      %v1485 = vsel %vm1474, %v471, %v634
      %v1486 = vsel %vm1474, %v383, %v636
      %v1487 = vsel %vm1474, %v472, %v638
      %v1488 = vsel %vm1474, %v386, %v640
      %v1489 = vsel %vm1474, %v473, %v642
      %v1490 = vsel %vm1474, %v389, %v644
      %v1491 = vsel %vm1474, %v474, %v646
      %v1492 = vsel %vm1474, %v392, %v648
      %v1493 = vsel %vm1474, %v475, %v650
      %v1494 = vsel %vm1474, %v395, %v652
      %v1495 = vsel %vm1474, %v476, %v654
      %v1496 = vsel %vm1474, %v398, %v656
      %v1497 = vsel %vm1474, %v477, %v658
      %v1498 = vsel %vm1474, %v401, %v660
      %v1499 = vsel %vm1474, %v478, %v662
      %v1500 = vsel %vm1474, %v404, %v664
      %v1501 = vsel %vm1474, %v479, %v666
      %v1502 = vsel %vm1474, %v407, %v668
      %v1503 = vsel %vm1474, %v480, %v670
      %v1504 = vsel %vm1474, %v410, %v672
      %v1505 = vsel %vm1474, %v481, %v674
      %v1506 = vsel %vm1474, %v413, %v676
      %vm1507 = vcmask 130048
      %v1508 = vsel %vm1507, %v1475, %v791
      %v1509 = vsel %vm1507, %v1476, %v793
      %v1510 = vsel %vm1507, %v1477, %v795
      %v1511 = vsel %vm1507, %v1478, %v797
      %v1512 = vsel %vm1507, %v1479, %v799
      %v1513 = vsel %vm1507, %v1480, %v801
      %v1514 = vsel %vm1507, %v1481, %v803
      %v1515 = vsel %vm1507, %v1482, %v805
      %v1516 = vsel %vm1507, %v1483, %v807
      %v1517 = vsel %vm1507, %v1484, %v809
      %v1518 = vsel %vm1507, %v1485, %v811
      %v1519 = vsel %vm1507, %v1486, %v813
      %v1520 = vsel %vm1507, %v1487, %v815
      %v1521 = vsel %vm1507, %v1488, %v817
      %v1522 = vsel %vm1507, %v1489, %v819
      %v1523 = vsel %vm1507, %v1490, %v821
      %v1524 = vsel %vm1507, %v1491, %v823
      %v1525 = vsel %vm1507, %v1492, %v825
      %v1526 = vsel %vm1507, %v1493, %v827
      %v1527 = vsel %vm1507, %v1494, %v829
      %v1528 = vsel %vm1507, %v1495, %v831
      %v1529 = vsel %vm1507, %v1496, %v833
      %v1530 = vsel %vm1507, %v1497, %v835
      %v1531 = vsel %vm1507, %v1498, %v837
      %v1532 = vsel %vm1507, %v1499, %v839
      %v1533 = vsel %vm1507, %v1500, %v841
      %v1534 = vsel %vm1507, %v1501, %v843
      %v1535 = vsel %vm1507, %v1502, %v845
      %v1536 = vsel %vm1507, %v1503, %v847
      %v1537 = vsel %vm1507, %v1504, %v849
      %v1538 = vsel %vm1507, %v1505, %v851
      %v1539 = vsel %vm1507, %v1506, %v853
      %vm1540 = vcmask 195584
      %v1541 = vsel %vm1540, %v1508, %v888
      %v1542 = vsel %vm1540, %v1509, %v890
      %v1543 = vsel %vm1540, %v1510, %v892
      %v1544 = vsel %vm1540, %v1511, %v894
      %v1545 = vsel %vm1540, %v1512, %v896
      %v1546 = vsel %vm1540, %v1513, %v898
      %v1547 = vsel %vm1540, %v1514, %v900
      %v1548 = vsel %vm1540, %v1515, %v902
      %v1549 = vsel %vm1540, %v1516, %v904
      %v1550 = vsel %vm1540, %v1517, %v906
      %v1551 = vsel %vm1540, %v1518, %v908
      %v1552 = vsel %vm1540, %v1519, %v910
      %v1553 = vsel %vm1540, %v1520, %v912
      %v1554 = vsel %vm1540, %v1521, %v914
      %v1555 = vsel %vm1540, %v1522, %v916
      %v1556 = vsel %vm1540, %v1523, %v918
      %v1557 = vsel %vm1540, %v1524, %v920
      %v1558 = vsel %vm1540, %v1525, %v922
      %v1559 = vsel %vm1540, %v1526, %v924
      %v1560 = vsel %vm1540, %v1527, %v926
      %v1561 = vsel %vm1540, %v1528, %v928
      %v1562 = vsel %vm1540, %v1529, %v930
      %v1563 = vsel %vm1540, %v1530, %v932
      %v1564 = vsel %vm1540, %v1531, %v934
      %v1565 = vsel %vm1540, %v1532, %v936
      %v1566 = vsel %vm1540, %v1533, %v938
      %v1567 = vsel %vm1540, %v1534, %v940
      %v1568 = vsel %vm1540, %v1535, %v942
      %v1569 = vsel %vm1540, %v1536, %v944
      %v1570 = vsel %vm1540, %v1537, %v946
      %v1571 = vsel %vm1540, %v1538, %v948
      %v1572 = vsel %vm1540, %v1539, %v950
      %vm1573 = vcmask 261120
      %v1574 = vsel %vm1573, %v1541, %v990
      %v1575 = vsel %vm1573, %v1542, %v992
      %v1576 = vsel %vm1573, %v1543, %v994
      %v1577 = vsel %vm1573, %v1544, %v996
      %v1578 = vsel %vm1573, %v1545, %v998
      %v1579 = vsel %vm1573, %v1546, %v1000
      %v1580 = vsel %vm1573, %v1547, %v1002
      %v1581 = vsel %vm1573, %v1548, %v1004
      %v1582 = vsel %vm1573, %v1549, %v1006
      %v1583 = vsel %vm1573, %v1550, %v1008
      %v1584 = vsel %vm1573, %v1551, %v1010
      %v1585 = vsel %vm1573, %v1552, %v1012
      %v1586 = vsel %vm1573, %v1553, %v1014
      %v1587 = vsel %vm1573, %v1554, %v1016
      %v1588 = vsel %vm1573, %v1555, %v1018
      %v1589 = vsel %vm1573, %v1556, %v1020
      %v1590 = vsel %vm1573, %v1557, %v1022
      %v1591 = vsel %vm1573, %v1558, %v1024
      %v1592 = vsel %vm1573, %v1559, %v1026
      %v1593 = vsel %vm1573, %v1560, %v1028
      %v1594 = vsel %vm1573, %v1561, %v1030
      %v1595 = vsel %vm1573, %v1562, %v1032
      %v1596 = vsel %vm1573, %v1563, %v1034
      %v1597 = vsel %vm1573, %v1564, %v1036
      %v1598 = vsel %vm1573, %v1565, %v1038
      %v1599 = vsel %vm1573, %v1566, %v1040
      %v1600 = vsel %vm1573, %v1567, %v1042
      %v1601 = vsel %vm1573, %v1568, %v1044
      %v1602 = vsel %vm1573, %v1569, %v1046
      %v1603 = vsel %vm1573, %v1570, %v1048
      %v1604 = vsel %vm1573, %v1571, %v1050
      %v1605 = vsel %vm1573, %v1572, %v1052
      %vm1606 = vcmask 326656
      %v1607 = vsel %vm1606, %v1574, %v1091
      %v1608 = vsel %vm1606, %v1575, %v1093
      %v1609 = vsel %vm1606, %v1576, %v1095
      %v1610 = vsel %vm1606, %v1577, %v1097
      %v1611 = vsel %vm1606, %v1578, %v1099
      %v1612 = vsel %vm1606, %v1579, %v1101
      %v1613 = vsel %vm1606, %v1580, %v1103
      %v1614 = vsel %vm1606, %v1581, %v1105
      %v1615 = vsel %vm1606, %v1582, %v1107
      %v1616 = vsel %vm1606, %v1583, %v1109
      %v1617 = vsel %vm1606, %v1584, %v1111
      %v1618 = vsel %vm1606, %v1585, %v1113
      %v1619 = vsel %vm1606, %v1586, %v1115
      %v1620 = vsel %vm1606, %v1587, %v1117
      %v1621 = vsel %vm1606, %v1588, %v1119
      %v1622 = vsel %vm1606, %v1589, %v1121
      %v1623 = vsel %vm1606, %v1590, %v1123
      %v1624 = vsel %vm1606, %v1591, %v1125
      %v1625 = vsel %vm1606, %v1592, %v1127
      %v1626 = vsel %vm1606, %v1593, %v1129
      %v1627 = vsel %vm1606, %v1594, %v1131
      %v1628 = vsel %vm1606, %v1595, %v1133
      %v1629 = vsel %vm1606, %v1596, %v1135
      %v1630 = vsel %vm1606, %v1597, %v1137
      %v1631 = vsel %vm1606, %v1598, %v1139
      %v1632 = vsel %vm1606, %v1599, %v1141
      %v1633 = vsel %vm1606, %v1600, %v1143
      %v1634 = vsel %vm1606, %v1601, %v1145
      %v1635 = vsel %vm1606, %v1602, %v1147
      %v1636 = vsel %vm1606, %v1603, %v1149
      %v1637 = vsel %vm1606, %v1604, %v1151
      %v1638 = vsel %vm1606, %v1605, %v1153
      %vm1639 = vcmask 392192
      %v1640 = vsel %vm1639, %v1607, %v1187
      %v1641 = vsel %vm1639, %v1608, %v1189
      %v1642 = vsel %vm1639, %v1609, %v1191
      %v1643 = vsel %vm1639, %v1610, %v1193
      %v1644 = vsel %vm1639, %v1611, %v1195
      %v1645 = vsel %vm1639, %v1612, %v1197
      %v1646 = vsel %vm1639, %v1613, %v1199
      %v1647 = vsel %vm1639, %v1614, %v1201
      %v1648 = vsel %vm1639, %v1615, %v1203
      %v1649 = vsel %vm1639, %v1616, %v1205
      %v1650 = vsel %vm1639, %v1617, %v1207
      %v1651 = vsel %vm1639, %v1618, %v1209
      %v1652 = vsel %vm1639, %v1619, %v1211
      %v1653 = vsel %vm1639, %v1620, %v1213
      %v1654 = vsel %vm1639, %v1621, %v1215
      %v1655 = vsel %vm1639, %v1622, %v1217
      %v1656 = vsel %vm1639, %v1623, %v1219
      %v1657 = vsel %vm1639, %v1624, %v1221
      %v1658 = vsel %vm1639, %v1625, %v1223
      %v1659 = vsel %vm1639, %v1626, %v1225
      %v1660 = vsel %vm1639, %v1627, %v1227
      %v1661 = vsel %vm1639, %v1628, %v1229
      %v1662 = vsel %vm1639, %v1629, %v1231
      %v1663 = vsel %vm1639, %v1630, %v1233
      %v1664 = vsel %vm1639, %v1631, %v1235
      %v1665 = vsel %vm1639, %v1632, %v1237
      %v1666 = vsel %vm1639, %v1633, %v1239
      %v1667 = vsel %vm1639, %v1634, %v1241
      %v1668 = vsel %vm1639, %v1635, %v1243
      %v1669 = vsel %vm1639, %v1636, %v1245
      %v1670 = vsel %vm1639, %v1637, %v1247
      %v1671 = vsel %vm1639, %v1638, %v1249
      %vm1672 = vcmask 457728
      %v1673 = vsel %vm1672, %v1640, %v1283
      %v1674 = vsel %vm1672, %v1641, %v1285
      %v1675 = vsel %vm1672, %v1642, %v1287
      %v1676 = vsel %vm1672, %v1643, %v1289
      %v1677 = vsel %vm1672, %v1644, %v1291
      %v1678 = vsel %vm1672, %v1645, %v1293
      %v1679 = vsel %vm1672, %v1646, %v1295
      %v1680 = vsel %vm1672, %v1647, %v1297
      %v1681 = vsel %vm1672, %v1648, %v1299
      %v1682 = vsel %vm1672, %v1649, %v1301
      %v1683 = vsel %vm1672, %v1650, %v1303
      %v1684 = vsel %vm1672, %v1651, %v1305
      %v1685 = vsel %vm1672, %v1652, %v1307
      %v1686 = vsel %vm1672, %v1653, %v1309
      %v1687 = vsel %vm1672, %v1654, %v1311
      %v1688 = vsel %vm1672, %v1655, %v1313
      %v1689 = vsel %vm1672, %v1656, %v1315
      %v1690 = vsel %vm1672, %v1657, %v1317
      %v1691 = vsel %vm1672, %v1658, %v1319
      %v1692 = vsel %vm1672, %v1659, %v1321
      %v1693 = vsel %vm1672, %v1660, %v1323
      %v1694 = vsel %vm1672, %v1661, %v1325
      %v1695 = vsel %vm1672, %v1662, %v1327
      %v1696 = vsel %vm1672, %v1663, %v1329
      %v1697 = vsel %vm1672, %v1664, %v1331
      %v1698 = vsel %vm1672, %v1665, %v1333
      %v1699 = vsel %vm1672, %v1666, %v1335
      %v1700 = vsel %vm1672, %v1667, %v1337
      %v1701 = vsel %vm1672, %v1668, %v1339
      %v1702 = vsel %vm1672, %v1669, %v1341
      %v1703 = vsel %vm1672, %v1670, %v1343
      %v1704 = vsel %vm1672, %v1671, %v1345
      %vm1705 = vcmask 523264
      %v1706 = vsel %vm1705, %v1673, %v1379
      %v1707 = vsel %vm1705, %v1674, %v1381
      %v1708 = vsel %vm1705, %v1675, %v1383
      %v1709 = vsel %vm1705, %v1676, %v1385
      %v1710 = vsel %vm1705, %v1677, %v1387
      %v1711 = vsel %vm1705, %v1678, %v1389
      %v1712 = vsel %vm1705, %v1679, %v1391
      %v1713 = vsel %vm1705, %v1680, %v1393
      %v1714 = vsel %vm1705, %v1681, %v1395
      %v1715 = vsel %vm1705, %v1682, %v1397
      %v1716 = vsel %vm1705, %v1683, %v1399
      %v1717 = vsel %vm1705, %v1684, %v1401
      %v1718 = vsel %vm1705, %v1685, %v1403
      %v1719 = vsel %vm1705, %v1686, %v1405
      %v1720 = vsel %vm1705, %v1687, %v1407
      %v1721 = vsel %vm1705, %v1688, %v1409
      %v1722 = vsel %vm1705, %v1689, %v1411
      %v1723 = vsel %vm1705, %v1690, %v1413
      %v1724 = vsel %vm1705, %v1691, %v1415
      %v1725 = vsel %vm1705, %v1692, %v1417
      %v1726 = vsel %vm1705, %v1693, %v1419
      %v1727 = vsel %vm1705, %v1694, %v1421
      %v1728 = vsel %vm1705, %v1695, %v1423
      %v1729 = vsel %vm1705, %v1696, %v1425
      %v1730 = vsel %vm1705, %v1697, %v1427
      %v1731 = vsel %vm1705, %v1698, %v1429
      %v1732 = vsel %vm1705, %v1699, %v1431
      %v1733 = vsel %vm1705, %v1700, %v1433
      %v1734 = vsel %vm1705, %v1701, %v1435
      %v1735 = vsel %vm1705, %v1702, %v1437
      %v1736 = vsel %vm1705, %v1703, %v1439
      %v1737 = vsel %vm1705, %v1704, %v1441
      %vm1738 = vcmask 588800
      %v1740 = vsel %vm1738, %v1706, 0
      %v1743 = vsel %vm1738, %v1707, 0
      %v1746 = vsel %vm1738, %v1708, 0
      %v1749 = vsel %vm1738, %v1709, 0
      %v1752 = vsel %vm1738, %v1710, 0
      %v1755 = vsel %vm1738, %v1711, 0
      %v1758 = vsel %vm1738, %v1712, 0
      %v1761 = vsel %vm1738, %v1713, 0
      %v1764 = vsel %vm1738, %v1714, 0
      %v1767 = vsel %vm1738, %v1715, 0
      %v1770 = vsel %vm1738, %v1716, 0
      %v1773 = vsel %vm1738, %v1717, 0
      %v1776 = vsel %vm1738, %v1718, 0
      %v1779 = vsel %vm1738, %v1719, 0
      %v1782 = vsel %vm1738, %v1720, 0
      %v1785 = vsel %vm1738, %v1721, 0
      %v1788 = vsel %vm1738, %v1722, 0
      %v1791 = vsel %vm1738, %v1723, 0
      %v1794 = vsel %vm1738, %v1724, 0
      %v1797 = vsel %vm1738, %v1725, 0
      %v1800 = vsel %vm1738, %v1726, 0
      %v1803 = vsel %vm1738, %v1727, 0
      %v1806 = vsel %vm1738, %v1728, 0
      %v1809 = vsel %vm1738, %v1729, 0
      %v1812 = vsel %vm1738, %v1730, 0
      %v1815 = vsel %vm1738, %v1731, 0
      %v1818 = vsel %vm1738, %v1732, 0
      %v1821 = vsel %vm1738, %v1733, 0
      %v1824 = vsel %vm1738, %v1734, 0
      %v1827 = vsel %vm1738, %v1735, 0
      %v1830 = vsel %vm1738, %v1736, 0
      %v1833 = vsel %vm1738, %v1737, 0
      %1835 = vmatprep.subr.mxu0 0.0
      %1836 = vmatpush1.msra.mxu0 %v324
      %1837 = vmatprep.subr.mxu0 0.0
      %1838 = vmatpush1.msra.mxu0 %v325
      %1839 = vmatprep.subr.mxu0 0.0
      %1840 = vmatpush1.msra.mxu0 %v326
      %1841 = vmatprep.subr.mxu0 0.0
      %1842 = vmatpush1.msra.mxu0 %v327
      %1843 = vmatprep.subr.mxu0 0.0
      %1844 = vmatpush1.msra.mxu0 %v328
      %1845 = vmatprep.subr.mxu0 0.0
      %1846 = vmatpush1.msra.mxu0 %v329
      %1847 = vmatprep.subr.mxu0 0.0
      %1848 = vmatpush1.msra.mxu0 %v330
      %1849 = vmatprep.subr.mxu0 0.0
      %1850 = vmatpush1.msra.mxu0 %v331
      %1851 = vmatprep.subr.mxu0 0.0
      %1852 = vmatpush1.msra.mxu0 %v332
      %1853 = vmatprep.subr.mxu0 0.0
      %1854 = vmatpush1.msra.mxu0 0.0
      %1855 = vmatprep.subr.mxu0 0.0
      %1856 = vmatpush1.msra.mxu0 0.0
      %1857 = vmatprep.subr.mxu0 0.0
      %1858 = vmatpush1.msra.mxu0 0.0
      %1859 = vmatprep.subr.mxu0 0.0
      %1860 = vmatpush1.msra.mxu0 0.0
      %1861 = vmatprep.subr.mxu0 0.0
      %1862 = vmatpush1.msra.mxu0 0.0
      %1863 = vmatprep.subr.mxu0 0.0
      %1864 = vmatpush1.msra.mxu0 0.0
      %1865 = vmatprep.subr.mxu0 0.0
      %1866 = vmatpush1.msra.mxu0 0.0
      %1867 = vmatprep.subr.mxu0 0.0
      %1868 = vmatpush1.msra.mxu0 0.0
      %1869 = vmatprep.subr.mxu0 0.0
      %1870 = vmatpush1.msra.mxu0 0.0
      %1871 = vmatprep.subr.mxu0 0.0
      %1872 = vmatpush1.msra.mxu0 0.0
      %1873 = vmatprep.subr.mxu0 0.0
      %1874 = vmatpush1.msra.mxu0 0.0
      %1875 = vmatprep.subr.mxu0 0.0
      %1876 = vmatpush1.msra.mxu0 0.0
      %1877 = vmatprep.subr.mxu0 0.0
      %1878 = vmatpush1.msra.mxu0 0.0
      %1879 = vmatprep.subr.mxu0 0.0
      %1880 = vmatpush1.msra.mxu0 0.0
      %1881 = vmatprep.subr.mxu0 0.0
      %1882 = vmatpush1.msra.mxu0 0.0
      %1883 = vmatprep.subr.mxu0 0.0
      %1884 = vmatpush1.msra.mxu0 0.0
      %1885 = vmatprep.subr.mxu0 0.0
      %1886 = vmatpush1.msra.mxu0 0.0
      %1887 = vmatprep.subr.mxu0 0.0
      %1888 = vmatpush1.msra.mxu0 0.0
      %1889 = vmatprep.subr.mxu0 0.0
      %1890 = vmatpush1.msra.mxu0 0.0
      %1891 = vmatprep.subr.mxu0 0.0
      %1892 = vmatpush1.msra.mxu0 0.0
      %1893 = vmatprep.subr.mxu0 0.0
      %1894 = vmatpush1.msra.mxu0 0.0
      %1895 = vmatprep.subr.mxu0 0.0
      %1896 = vmatpush1.msra.mxu0 0.0
      %1897 = vmatprep.subr.mxu0 0.0
      %1898 = vmatpush1.msra.mxu0 0.0
      %1899 = vmatprep.mubr.f32.mxu0 0.0
      %1900 = vmatmul.mubr.f32.gmra.mrb[0].mxu0 %v1740
      %v1901 = vpop.f32.mrb[0].mxu0
      %v1902 = vadd.f32 0.0, %v1901
      %v1903 = vpop.f32.mrb[0].mxu0
      %1904 = vmatprep.mubr.f32.mxu0 0.0
      %1905 = vmatmul.mubr.f32.gmra.mrb[0].mxu0 %v1743
      %v1906 = vpop.f32.mrb[0].mxu0
      %v1907 = vadd.f32 0.0, %v1906
      %v1908 = vpop.f32.mrb[0].mxu0
      %1909 = vmatprep.mubr.f32.mxu0 0.0
      %1910 = vmatmul.mubr.f32.gmra.mrb[0].mxu0 %v1746
      %v1911 = vpop.f32.mrb[0].mxu0
      %v1912 = vadd.f32 0.0, %v1911
      %v1913 = vpop.f32.mrb[0].mxu0
      %1914 = vmatprep.mubr.f32.mxu0 0.0
      %1915 = vmatmul.mubr.f32.gmra.mrb[0].mxu0 %v1749
      %v1916 = vpop.f32.mrb[0].mxu0
      %v1917 = vadd.f32 0.0, %v1916
      %v1918 = vpop.f32.mrb[0].mxu0
      %1919 = vmatprep.mubr.f32.mxu0 0.0
      %1920 = vmatmul.mubr.f32.gmra.mrb[0].mxu0 %v1752
      %v1921 = vpop.f32.mrb[0].mxu0
      %v1922 = vadd.f32 0.0, %v1921
      %v1923 = vpop.f32.mrb[0].mxu0
      %1924 = vmatprep.mubr.f32.mxu0 0.0
      %1925 = vmatmul.mubr.f32.gmra.mrb[0].mxu0 %v1755
      %v1926 = vpop.f32.mrb[0].mxu0
      %v1927 = vadd.f32 0.0, %v1926
      %v1928 = vpop.f32.mrb[0].mxu0
      %1929 = vmatprep.mubr.f32.mxu0 0.0
      %1930 = vmatmul.mubr.f32.gmra.mrb[0].mxu0 %v1758
      %v1931 = vpop.f32.mrb[0].mxu0
      %v1932 = vadd.f32 0.0, %v1931
      %v1933 = vpop.f32.mrb[0].mxu0
      %1934 = vmatprep.mubr.f32.mxu0 0.0
      %1935 = vmatmul.mubr.f32.gmra.mrb[0].mxu0 %v1761
      %v1936 = vpop.f32.mrb[0].mxu0
      %v1937 = vadd.f32 0.0, %v1936
      %v1938 = vpop.f32.mrb[0].mxu0
      %1939 = vmatprep.mubr.f32.mxu0 0.0
      %1940 = vmatmul.mubr.f32.gmra.mrb[0].mxu0 %v1764
      %v1941 = vpop.f32.mrb[0].mxu0
      %v1942 = vadd.f32 0.0, %v1941
      %v1943 = vpop.f32.mrb[0].mxu0
      %1944 = vmatprep.mubr.f32.mxu0 0.0
      %1945 = vmatmul.mubr.f32.gmra.mrb[0].mxu0 %v1767
      %v1946 = vpop.f32.mrb[0].mxu0
      %v1947 = vadd.f32 0.0, %v1946
      %v1948 = vpop.f32.mrb[0].mxu0
      %1949 = vmatprep.mubr.f32.mxu0 0.0
      %1950 = vmatmul.mubr.f32.gmra.mrb[0].mxu0 %v1770
      %v1951 = vpop.f32.mrb[0].mxu0
      %v1952 = vadd.f32 0.0, %v1951
      %v1953 = vpop.f32.mrb[0].mxu0
      %1954 = vmatprep.mubr.f32.mxu0 0.0
      %1955 = vmatmul.mubr.f32.gmra.mrb[0].mxu0 %v1773
      %v1956 = vpop.f32.mrb[0].mxu0
      %v1957 = vadd.f32 0.0, %v1956
      %v1958 = vpop.f32.mrb[0].mxu0
      %1959 = vmatprep.mubr.f32.mxu0 0.0
      %1960 = vmatmul.mubr.f32.gmra.mrb[0].mxu0 %v1776
      %v1961 = vpop.f32.mrb[0].mxu0
      %v1962 = vadd.f32 0.0, %v1961
      %v1963 = vpop.f32.mrb[0].mxu0
      %1964 = vmatprep.mubr.f32.mxu0 0.0
      %1965 = vmatmul.mubr.f32.gmra.mrb[0].mxu0 %v1779
      %v1966 = vpop.f32.mrb[0].mxu0
      %v1967 = vadd.f32 0.0, %v1966
      %v1968 = vpop.f32.mrb[0].mxu0
      %1969 = vmatprep.mubr.f32.mxu0 0.0
      %1970 = vmatmul.mubr.f32.gmra.mrb[0].mxu0 %v1782
      %v1971 = vpop.f32.mrb[0].mxu0
      %v1972 = vadd.f32 0.0, %v1971
      %v1973 = vpop.f32.mrb[0].mxu0
      %1974 = vmatprep.mubr.f32.mxu0 0.0
      %1975 = vmatmul.mubr.f32.gmra.mrb[0].mxu0 %v1785
      %v1976 = vpop.f32.mrb[0].mxu0
      %v1977 = vadd.f32 0.0, %v1976
      %v1978 = vpop.f32.mrb[0].mxu0
      %1979 = vmatprep.mubr.f32.mxu0 0.0
      %1980 = vmatmul.mubr.f32.gmra.mrb[0].mxu0 %v1788
      %v1981 = vpop.f32.mrb[0].mxu0
      %v1982 = vadd.f32 0.0, %v1981
      %v1983 = vpop.f32.mrb[0].mxu0
      %1984 = vmatprep.mubr.f32.mxu0 0.0
      %1985 = vmatmul.mubr.f32.gmra.mrb[0].mxu0 %v1791
      %v1986 = vpop.f32.mrb[0].mxu0
      %v1987 = vadd.f32 0.0, %v1986
      %v1988 = vpop.f32.mrb[0].mxu0
      %1989 = vmatprep.mubr.f32.mxu0 0.0
      %1990 = vmatmul.mubr.f32.gmra.mrb[0].mxu0 %v1794
      %v1991 = vpop.f32.mrb[0].mxu0
      %v1992 = vadd.f32 0.0, %v1991
      %v1993 = vpop.f32.mrb[0].mxu0
      %1994 = vmatprep.mubr.f32.mxu0 0.0
      %1995 = vmatmul.mubr.f32.gmra.mrb[0].mxu0 %v1797
      %v1996 = vpop.f32.mrb[0].mxu0
      %v1997 = vadd.f32 0.0, %v1996
      %v1998 = vpop.f32.mrb[0].mxu0
      %1999 = vmatprep.mubr.f32.mxu0 0.0
      %2000 = vmatmul.mubr.f32.gmra.mrb[0].mxu0 %v1800
      %v2001 = vpop.f32.mrb[0].mxu0
      %v2002 = vadd.f32 0.0, %v2001
      %v2003 = vpop.f32.mrb[0].mxu0
      %2004 = vmatprep.mubr.f32.mxu0 0.0
      %2005 = vmatmul.mubr.f32.gmra.mrb[0].mxu0 %v1803
      %v2006 = vpop.f32.mrb[0].mxu0
      %v2007 = vadd.f32 0.0, %v2006
      %v2008 = vpop.f32.mrb[0].mxu0
      %2009 = vmatprep.mubr.f32.mxu0 0.0
      %2010 = vmatmul.mubr.f32.gmra.mrb[0].mxu0 %v1806
      %v2011 = vpop.f32.mrb[0].mxu0
      %v2012 = vadd.f32 0.0, %v2011
      %v2013 = vpop.f32.mrb[0].mxu0
      %2014 = vmatprep.mubr.f32.mxu0 0.0
      %2015 = vmatmul.mubr.f32.gmra.mrb[0].mxu0 %v1809
      %v2016 = vpop.f32.mrb[0].mxu0
      %v2017 = vadd.f32 0.0, %v2016
      %v2018 = vpop.f32.mrb[0].mxu0
      %2019 = vmatprep.mubr.f32.mxu0 0.0
      %2020 = vmatmul.mubr.f32.gmra.mrb[0].mxu0 %v1812
      %v2021 = vpop.f32.mrb[0].mxu0
      %v2022 = vadd.f32 0.0, %v2021
      %v2023 = vpop.f32.mrb[0].mxu0
      %2024 = vmatprep.mubr.f32.mxu0 0.0
      %2025 = vmatmul.mubr.f32.gmra.mrb[0].mxu0 %v1815
      %v2026 = vpop.f32.mrb[0].mxu0
      %v2027 = vadd.f32 0.0, %v2026
      %v2028 = vpop.f32.mrb[0].mxu0
      %2029 = vmatprep.mubr.f32.mxu0 0.0
      %2030 = vmatmul.mubr.f32.gmra.mrb[0].mxu0 %v1818
      %v2031 = vpop.f32.mrb[0].mxu0
      %v2032 = vadd.f32 0.0, %v2031
      %v2033 = vpop.f32.mrb[0].mxu0
      %2034 = vmatprep.mubr.f32.mxu0 0.0
      %2035 = vmatmul.mubr.f32.gmra.mrb[0].mxu0 %v1821
      %v2036 = vpop.f32.mrb[0].mxu0
      %v2037 = vadd.f32 0.0, %v2036
      %v2038 = vpop.f32.mrb[0].mxu0
      %2039 = vmatprep.mubr.f32.mxu0 0.0
      %2040 = vmatmul.mubr.f32.gmra.mrb[0].mxu0 %v1824
      %v2041 = vpop.f32.mrb[0].mxu0
      %v2042 = vadd.f32 0.0, %v2041
      %v2043 = vpop.f32.mrb[0].mxu0
      %2044 = vmatprep.mubr.f32.mxu0 0.0
      %2045 = vmatmul.mubr.f32.gmra.mrb[0].mxu0 %v1827
      %v2046 = vpop.f32.mrb[0].mxu0
      %v2047 = vadd.f32 0.0, %v2046
      %v2048 = vpop.f32.mrb[0].mxu0
      %2049 = vmatprep.mubr.f32.mxu0 0.0
      %2050 = vmatmul.mubr.f32.gmra.mrb[0].mxu0 %v1830
      %v2051 = vpop.f32.mrb[0].mxu0
      %v2052 = vadd.f32 0.0, %v2051
      %v2053 = vpop.f32.mrb[0].mxu0
      %2054 = vmatprep.mubr.f32.mxu0 0.0
      %2055 = vmatmul.mubr.f32.gmra.mrb[0].mxu0 %v1833
      %v2056 = vpop.f32.mrb[0].mxu0
      %v2057 = vadd.f32 0.0, %v2056
      %v2058 = vpop.f32.mrb[0].mxu0
      %2059 = vdwg.mxu0
      %2060 = vxpose.xlu0.b32.start [1/16] %v1902, 128
      %2061 = vxpose.xlu0.b32.cont [2/16] %v1907, 128
      %2062 = vxpose.xlu0.b32.cont [3/16] %v1912, 128
      %2063 = vxpose.xlu0.b32.cont [4/16] %v1917, 128
      %2064 = vxpose.xlu0.b32.cont [5/16] %v1922, 128
      %2065 = vxpose.xlu0.b32.cont [6/16] %v1927, 128
      %2066 = vxpose.xlu0.b32.cont [7/16] %v1932, 128
      %2067 = vxpose.xlu0.b32.cont [8/16] %v1937, 128
      %2068 = vxpose.xlu0.b32.cont [9/16] %v1942, 128
      %2069 = vxpose.xlu0.b32.cont [10/16] %v1947, 128
      %2070 = vxpose.xlu0.b32.cont [11/16] %v1952, 128
      %2071 = vxpose.xlu0.b32.cont [12/16] %v1957, 128
      %2072 = vxpose.xlu0.b32.cont [13/16] %v1962, 128
      %2073 = vxpose.xlu0.b32.cont [14/16] %v1967, 128
      %2074 = vxpose.xlu0.b32.cont [15/16] %v1972, 128
      %2075 = vxpose.xlu0.b32.end [16/16] %v1977, 128
      %v2076 = vpop.trf.xlu0
      %v2077 = vpop.trf.xlu0
      %v2078 = vpop.trf.xlu0
      %v2079 = vpop.trf.xlu0
      %v2080 = vpop.trf.xlu0
      %v2081 = vpop.trf.xlu0
      %v2082 = vpop.trf.xlu0
      %v2083 = vpop.trf.xlu0
      %v2084 = vpop.trf.xlu0
      %v2085 = vpop.trf.xlu0
      %v2086 = vpop.trf.xlu0
      %v2087 = vpop.trf.xlu0
      %v2088 = vpop.trf.xlu0
      %v2089 = vpop.trf.xlu0
      %v2090 = vpop.trf.xlu0
      %v2091 = vpop.trf.xlu0
      %2092 = vxpose.xlu0.b32.start [1/16] %v1982, 128
      %2093 = vxpose.xlu0.b32.cont [2/16] %v1987, 128
      %2094 = vxpose.xlu0.b32.cont [3/16] %v1992, 128
      %2095 = vxpose.xlu0.b32.cont [4/16] %v1997, 128
      %2096 = vxpose.xlu0.b32.cont [5/16] %v2002, 128
      %2097 = vxpose.xlu0.b32.cont [6/16] %v2007, 128
      %2098 = vxpose.xlu0.b32.cont [7/16] %v2012, 128
      %2099 = vxpose.xlu0.b32.cont [8/16] %v2017, 128
      %2100 = vxpose.xlu0.b32.cont [9/16] %v2022, 128
      %2101 = vxpose.xlu0.b32.cont [10/16] %v2027, 128
      %2102 = vxpose.xlu0.b32.cont [11/16] %v2032, 128
      %2103 = vxpose.xlu0.b32.cont [12/16] %v2037, 128
      %2104 = vxpose.xlu0.b32.cont [13/16] %v2042, 128
      %2105 = vxpose.xlu0.b32.cont [14/16] %v2047, 128
      %2106 = vxpose.xlu0.b32.cont [15/16] %v2052, 128
      %2107 = vxpose.xlu0.b32.end [16/16] %v2057, 128
      %v2108 = vpop.trf.xlu0
      %v2109 = vpop.trf.xlu0
      %v2110 = vpop.trf.xlu0
      %v2111 = vpop.trf.xlu0
      %v2112 = vpop.trf.xlu0
      %v2113 = vpop.trf.xlu0
      %v2114 = vpop.trf.xlu0
      %v2115 = vpop.trf.xlu0
      %v2116 = vpop.trf.xlu0
      %v2117 = vpop.trf.xlu0
      %v2118 = vpop.trf.xlu0
      %v2119 = vpop.trf.xlu0
      %v2120 = vpop.trf.xlu0
      %v2121 = vpop.trf.xlu0
      %v2122 = vpop.trf.xlu0
      %v2123 = vpop.trf.xlu0
      %2124 = vst [vmem:[%s231] sm:$0xff] %v2076
      %2125 = vst [vmem:[%s231 + $0x8] sm:$0xff] %v2108
      %v2126 = vsel %vm1474, %v1902, 0.0
      %v2127 = vsel %vm1474, %v1907, 0.0
      %v2128 = vadd.f32 %v2126, %v2127
      %v2129 = vsel %vm1474, %v1912, 0.0
      %v2130 = vadd.f32 %v2128, %v2129
      %v2131 = vsel %vm1474, %v1917, 0.0
      %v2132 = vadd.f32 %v2130, %v2131
      %v2133 = vsel %vm1474, %v1922, 0.0
      %v2134 = vadd.f32 %v2132, %v2133
      %v2135 = vsel %vm1474, %v1927, 0.0
      %v2136 = vadd.f32 %v2134, %v2135
      %v2137 = vsel %vm1474, %v1932, 0.0
      %v2138 = vadd.f32 %v2136, %v2137
      %v2139 = vsel %vm1474, %v1937, 0.0
      %v2140 = vadd.f32 %v2138, %v2139
      %v2141 = vsel %vm1474, %v1942, 0.0
      %v2142 = vadd.f32 %v2140, %v2141
      %v2143 = vsel %vm1474, %v1947, 0.0
      %v2144 = vadd.f32 %v2142, %v2143
      %v2145 = vsel %vm1474, %v1952, 0.0
      %v2146 = vadd.f32 %v2144, %v2145
      %v2147 = vsel %vm1474, %v1957, 0.0
      %v2148 = vadd.f32 %v2146, %v2147
      %v2149 = vsel %vm1474, %v1962, 0.0
      %v2150 = vadd.f32 %v2148, %v2149
      %v2151 = vsel %vm1474, %v1967, 0.0
      %v2152 = vadd.f32 %v2150, %v2151
      %v2153 = vsel %vm1474, %v1972, 0.0
      %v2154 = vadd.f32 %v2152, %v2153
      %v2155 = vsel %vm1474, %v1977, 0.0
      %v2156 = vadd.f32 %v2154, %v2155
      %v2157 = vsel %vm1474, %v1982, 0.0
      %v2158 = vadd.f32 %v2156, %v2157
      %v2159 = vsel %vm1474, %v1987, 0.0
      %v2160 = vadd.f32 %v2158, %v2159
      %v2161 = vsel %vm1474, %v1992, 0.0
      %v2162 = vadd.f32 %v2160, %v2161
      %v2163 = vsel %vm1474, %v1997, 0.0
      %v2164 = vadd.f32 %v2162, %v2163
      %v2165 = vsel %vm1474, %v2002, 0.0
      %v2166 = vadd.f32 %v2164, %v2165
      %v2167 = vsel %vm1474, %v2007, 0.0
      %v2168 = vadd.f32 %v2166, %v2167
      %v2169 = vsel %vm1474, %v2012, 0.0
      %v2170 = vadd.f32 %v2168, %v2169
      %v2171 = vsel %vm1474, %v2017, 0.0
      %v2172 = vadd.f32 %v2170, %v2171
      %v2173 = vsel %vm1474, %v2022, 0.0
      %v2174 = vadd.f32 %v2172, %v2173
      %v2175 = vsel %vm1474, %v2027, 0.0
      %v2176 = vadd.f32 %v2174, %v2175
      %v2177 = vsel %vm1474, %v2032, 0.0
      %v2178 = vadd.f32 %v2176, %v2177
      %v2179 = vsel %vm1474, %v2037, 0.0
      %v2180 = vadd.f32 %v2178, %v2179
      %v2181 = vsel %vm1474, %v2042, 0.0
      %v2182 = vadd.f32 %v2180, %v2181
      %v2183 = vsel %vm1474, %v2047, 0.0
      %v2184 = vadd.f32 %v2182, %v2183
      %v2185 = vsel %vm1474, %v2052, 0.0
      %v2186 = vadd.f32 %v2184, %v2185
      %v2187 = vsel %vm1474, %v2057, 0.0
      %v2188 = vadd.f32 %v2186, %v2187
      %v2189 = vrot.slane %v2188, 4
      %v2190 = vadd.f32 %v2188, %v2189
      %v2191 = vrot.slane %v2190, 2
      %v2192 = vadd.f32 %v2190, %v2191
      %v2193 = vrot.slane %v2192, 1
      %v2194 = vadd.f32 %v2192, %v2193
      %v2195 = vmul.f32 %v1902, %v1902
      %v2196 = vmul.f32 %v1907, %v1907
      %v2197 = vmul.f32 %v1912, %v1912
      %v2198 = vmul.f32 %v1917, %v1917
      %v2199 = vmul.f32 %v1922, %v1922
      %v2200 = vmul.f32 %v1927, %v1927
      %v2201 = vmul.f32 %v1932, %v1932
      %v2202 = vmul.f32 %v1937, %v1937
      %v2203 = vmul.f32 %v1942, %v1942
      %v2204 = vmul.f32 %v1947, %v1947
      %v2205 = vmul.f32 %v1952, %v1952
      %v2206 = vmul.f32 %v1957, %v1957
      %v2207 = vmul.f32 %v1962, %v1962
      %v2208 = vmul.f32 %v1967, %v1967
      %v2209 = vmul.f32 %v1972, %v1972
      %v2210 = vmul.f32 %v1977, %v1977
      %v2211 = vmul.f32 %v1982, %v1982
      %v2212 = vmul.f32 %v1987, %v1987
      %v2213 = vmul.f32 %v1992, %v1992
      %v2214 = vmul.f32 %v1997, %v1997
      %v2215 = vmul.f32 %v2002, %v2002
      %v2216 = vmul.f32 %v2007, %v2007
      %v2217 = vmul.f32 %v2012, %v2012
      %v2218 = vmul.f32 %v2017, %v2017
      %v2219 = vmul.f32 %v2022, %v2022
      %v2220 = vmul.f32 %v2027, %v2027
      %v2221 = vmul.f32 %v2032, %v2032
      %v2222 = vmul.f32 %v2037, %v2037
      %v2223 = vmul.f32 %v2042, %v2042
      %v2224 = vmul.f32 %v2047, %v2047
      %v2225 = vmul.f32 %v2052, %v2052
      %v2226 = vmul.f32 %v2057, %v2057
      %v2227 = vsel %vm1474, %v2195, 0.0
      %v2228 = vsel %vm1474, %v2196, 0.0
      %v2229 = vadd.f32 %v2227, %v2228
      %v2230 = vsel %vm1474, %v2197, 0.0
      %v2231 = vadd.f32 %v2229, %v2230
      %v2232 = vsel %vm1474, %v2198, 0.0
      %v2233 = vadd.f32 %v2231, %v2232
      %v2234 = vsel %vm1474, %v2199, 0.0
      %v2235 = vadd.f32 %v2233, %v2234
      %v2236 = vsel %vm1474, %v2200, 0.0
      %v2237 = vadd.f32 %v2235, %v2236
      %v2238 = vsel %vm1474, %v2201, 0.0
      %v2239 = vadd.f32 %v2237, %v2238
      %v2240 = vsel %vm1474, %v2202, 0.0
      %v2241 = vadd.f32 %v2239, %v2240
      %v2242 = vsel %vm1474, %v2203, 0.0
      %v2243 = vadd.f32 %v2241, %v2242
      %v2244 = vsel %vm1474, %v2204, 0.0
      %v2245 = vadd.f32 %v2243, %v2244
      %v2246 = vsel %vm1474, %v2205, 0.0
      %v2247 = vadd.f32 %v2245, %v2246
      %v2248 = vsel %vm1474, %v2206, 0.0
      %v2249 = vadd.f32 %v2247, %v2248
      %v2250 = vsel %vm1474, %v2207, 0.0
      %v2251 = vadd.f32 %v2249, %v2250
      %v2252 = vsel %vm1474, %v2208, 0.0
      %v2253 = vadd.f32 %v2251, %v2252
      %v2254 = vsel %vm1474, %v2209, 0.0
      %v2255 = vadd.f32 %v2253, %v2254
      %v2256 = vsel %vm1474, %v2210, 0.0
      %v2257 = vadd.f32 %v2255, %v2256
      %v2258 = vsel %vm1474, %v2211, 0.0
      %v2259 = vadd.f32 %v2257, %v2258
      %v2260 = vsel %vm1474, %v2212, 0.0
      %v2261 = vadd.f32 %v2259, %v2260
      %v2262 = vsel %vm1474, %v2213, 0.0
      %v2263 = vadd.f32 %v2261, %v2262
      %v2264 = vsel %vm1474, %v2214, 0.0
      %v2265 = vadd.f32 %v2263, %v2264
      %v2266 = vsel %vm1474, %v2215, 0.0
      %v2267 = vadd.f32 %v2265, %v2266
      %v2268 = vsel %vm1474, %v2216, 0.0
      %v2269 = vadd.f32 %v2267, %v2268
      %v2270 = vsel %vm1474, %v2217, 0.0
      %v2271 = vadd.f32 %v2269, %v2270
      %v2272 = vsel %vm1474, %v2218, 0.0
      %v2273 = vadd.f32 %v2271, %v2272
      %v2274 = vsel %vm1474, %v2219, 0.0
      %v2275 = vadd.f32 %v2273, %v2274
      %v2276 = vsel %vm1474, %v2220, 0.0
      %v2277 = vadd.f32 %v2275, %v2276
      %v2278 = vsel %vm1474, %v2221, 0.0
      %v2279 = vadd.f32 %v2277, %v2278
      %v2280 = vsel %vm1474, %v2222, 0.0
      %v2281 = vadd.f32 %v2279, %v2280
      %v2282 = vsel %vm1474, %v2223, 0.0
      %v2283 = vadd.f32 %v2281, %v2282
      %v2284 = vsel %vm1474, %v2224, 0.0
      %v2285 = vadd.f32 %v2283, %v2284
      %v2286 = vsel %vm1474, %v2225, 0.0
      %v2287 = vadd.f32 %v2285, %v2286
      %v2288 = vsel %vm1474, %v2226, 0.0
      %v2289 = vadd.f32 %v2287, %v2288
      %v2290 = vrot.slane %v2289, 4
      %v2291 = vadd.f32 %v2289, %v2290
      %v2292 = vrot.slane %v2291, 2
      %v2293 = vadd.f32 %v2291, %v2292
      %v2294 = vrot.slane %v2293, 1
      %v2295 = vadd.f32 %v2293, %v2294
      %v2296 = vsel %vm366, %v2194, %v2295
      %vm2297 = vcmask 58368
      %2298 = vst.msk [vmem:[%s235] sm:$0x3] %vm2297, %v2296
      %p2299 = scmp.lt.s32.totalorder %s17, 1
      %s2300 = scalar_select %p2299, %s17, 1
      %s2301 = smul.addr %s2300, 2
      %s2302 = smul.addr %s2301, 8
      %s2303 = scalar_lea.vmem %s4, %s2302
      %p2304 = scmp.lt.s32.totalorder %s17, 1
      %s2305 = scalar_select %p2304, %s17, 1
      %s2306 = smul.addr %s2305, 2
      %s2307 = scalar_lea.vmem %s5, %s2306
      // Predicated region
      $region37: #{conv_block_forward.4} parent=35 // pred_check
        %p2308 = pneg %p124
      $region38: #{conv_block_forward.4} parent=35 // pred_check_branch
        %2310 = sbr.rel (%p2308) target = $region40
      $region39: #{conv_block_forward.4} parent=35 // pred_region
        _
      $region40: #{conv_block_forward.4} parent=35 // pred_fallthru
        _
      // Predicated region
      $region41: #{conv_block_forward.4} parent=35 // pred_check
        %p2311 = pneg %p150
      $region42: #{conv_block_forward.4} parent=35 // pred_check_branch
        %2313 = sbr.rel (%p2311) target = $region44
      $region43: #{conv_block_forward.4} parent=35 // pred_region
        _
      $region44: #{conv_block_forward.4} parent=35 // pred_fallthru
        _
    $region36: #{conv_block_forward.4} parent=5 // pred_fallthru
      _
    %p2314 = scmp.le.s32.totalorder 2, %s12
    // Predicated region
    $region45: #{conv_block_forward.4} parent=5 // pred_check
      %p2315 = pneg %p2314
    $region46: #{conv_block_forward.4} parent=5 // pred_check_branch
      %2317 = sbr.rel (%p2315) target = $region48
    $region47: #{conv_block_forward.4} parent=5 // pred_region
      %s2318 = ssub.s32 %s12, 2
      // Predicated region
      $region49: #{conv_block_forward.4} parent=47 // pred_check
        %p2319 = pneg %p130
      $region50: #{conv_block_forward.4} parent=47 // pred_check_branch
        %2321 = sbr.rel (%p2319) target = $region52
      $region51: #{conv_block_forward.4} parent=47 // pred_region
        %p2322 = scmp.lt.s32.totalorder %s18, 1
        %s2323 = scalar_select %p2322, %s18, 1
        %s2324 = smul.addr %s2323, 2
        %s2325 = smul.addr %s2324, 8
        %s2326 = scalar_lea.vmem %s4, %s2325
      $region52: #{conv_block_forward.4} parent=47 // pred_fallthru
        _
      // Predicated region
      $region53: #{conv_block_forward.4} parent=47 // pred_check
        %p2327 = pneg %p156
      $region54: #{conv_block_forward.4} parent=47 // pred_check_branch
        %2329 = sbr.rel (%p2327) target = $region56
      $region55: #{conv_block_forward.4} parent=47 // pred_region
        %p2330 = scmp.lt.s32.totalorder %s18, 1
        %s2331 = scalar_select %p2330, %s18, 1
        %s2332 = smul.addr %s2331, 2
        %s2333 = scalar_lea.vmem %s5, %s2332
      $region56: #{conv_block_forward.4} parent=47 // pred_fallthru
        _
    $region48: #{conv_block_forward.4} parent=5 // pred_fallthru
      _
  $region6: #{conv_block_forward.4} parent=0 // loop_footer
    %s16 = sadd.s32 1, %s12
  $region7: #{conv_block_forward.4} parent=0 // loop_footer_branch
    %11 = sbr.rel target = $region3
  $region8: #{conv_block_forward.4} parent=0 // loop_exit
    _

</llo_original>
